<compile_context>
chip_gen: v7x
topology: tpu7x:2x2x1
jax: 0.10.0
libtpu: 0.0.40
codegen_flags: <defaults>
</compile_context>

<pallas_src>
import functools

import jax
import jax.numpy as jnp
from jax import lax
from jax.experimental import pallas as pl
from jax.experimental.pallas import tpu as pltpu
import numpy as np

LANE = 128      # lane width  (last dim tile)
SUBLANE = 8     # sublane width (second-to-last dim tile)


def _round_up(x, m):
    return (x + m - 1) // m * m


# ---------------------------------------------------------------------------
# Recurrent kernel: one GRU layer over the sequence.  `gi` (input-side gate
# pre-activations with b_ih and the r/z parts of b_hh already folded in) is
# precomputed outside, so each timestep only does h @ W_hh^T + gate math.
# ---------------------------------------------------------------------------
def _gru_seq_kernel(gi_ref, whh_ref, bhhn_ref, out_ref, hfin_ref, h_scratch,
                    *, hidden_pad, t_chunk, seq_len, mask_tail):
    c = pl.program_id(1)                       # sequence-chunk index (serial)

    @pl.when(c == 0)
    def _():
        h_scratch[...] = jnp.zeros_like(h_scratch)

    Hp = hidden_pad
    whh = whh_ref[...]                         # (Hp, 3Hp) bf16, grid-constant
    bhh_n = bhhn_ref[...]                      # (1, Hp)   f32

    def step(t, h):
        gi = gi_ref[t].astype(jnp.float32)                       # (bt, 3Hp)
        gh = jnp.dot(h.astype(jnp.bfloat16), whh,
                     preferred_element_type=jnp.float32)          # (bt, 3Hp)
        # Lane-aligned gate slices (Hp is a multiple of 128).
        r = jax.nn.sigmoid(gi[:, :Hp] + gh[:, :Hp])
        z = jax.nn.sigmoid(gi[:, Hp:2 * Hp] + gh[:, Hp:2 * Hp])
        n = jnp.tanh(gi[:, 2 * Hp:] + r * (gh[:, 2 * Hp:] + bhh_n))
        h_new = (1.0 - z) * n + z * h
        if mask_tail:
            # Freeze h on zero-padded tail timesteps so h_final stays exact.
            h_new = jnp.where(c * t_chunk + t < seq_len, h_new, h)
        out_ref[t] = h_new.astype(out_ref.dtype)
        return h_new

    h_last = lax.fori_loop(0, t_chunk, step, h_scratch[...], unroll=True)
    h_scratch[...] = h_last

    @pl.when(c == pl.num_programs(1) - 1)
    def _():
        hfin_ref[...] = h_last


def _vmem_limit_bytes(t_chunk, bt, Hp, out_itemsize):
    G = 3 * Hp
    need = (
        t_chunk * bt * G * 2 * 2               # gi block (bf16, double-buffered)
        + Hp * G * 2 * 2                       # W_hh (bf16, 2 buffers allocated)
        + Hp * 4 * 2                           # b_hh_n
        + t_chunk * bt * Hp * out_itemsize * 2 # output block
        + bt * Hp * 4 * 2                      # final-hidden block
        + bt * Hp * 4                          # h scratch
    )
    return int(min(max(2 * need, 8 * 1024 * 1024), 64 * 1024 * 1024))


def _gru_recurrence(gi, whh_t, bhh_n, *, seq_len, t_chunk, batch_tile, out_dtype):
    """Run the recurrent Pallas kernel for one layer.

    gi    : (S_pad, Bp, 3*Hp) bf16  precomputed input-side gates
    whh_t : (Hp, 3*Hp)        bf16  hidden-side weights (gate-padded)
    bhh_n : (1, Hp)           f32   hidden bias of the n gate
    """
    S_pad, Bp, G = gi.shape
    Hp = G // 3
    num_chunks = S_pad // t_chunk
    num_btiles = Bp // batch_tile

    kernel = functools.partial(
        _gru_seq_kernel, hidden_pad=Hp, t_chunk=t_chunk, seq_len=seq_len,
        mask_tail=(S_pad != seq_len))

    outs, h_final = pl.pallas_call(
        kernel,
        out_shape=(
            jax.ShapeDtypeStruct((S_pad, Bp, Hp), out_dtype),
            jax.ShapeDtypeStruct((Bp, Hp), jnp.float32),
        ),
        grid_spec=pltpu.PrefetchScalarGridSpec(
            num_scalar_prefetch=0,
            grid=(num_btiles, num_chunks),
            in_specs=[
                pl.BlockSpec((t_chunk, batch_tile, G), lambda b, c: (c, b, 0)),
                pl.BlockSpec((Hp, G), lambda b, c: (0, 0)),
                pl.BlockSpec((1, Hp), lambda b, c: (0, 0)),
            ],
            out_specs=[
                pl.BlockSpec((t_chunk, batch_tile, Hp), lambda b, c: (c, b, 0)),
                pl.BlockSpec((batch_tile, Hp), lambda b, c: (b, 0)),
            ],
            scratch_shapes=[pltpu.VMEM((batch_tile, Hp), jnp.float32)],
        ),
        compiler_params=pltpu.CompilerParams(
            dimension_semantics=("parallel", "arbitrary"),
            vmem_limit_bytes=_vmem_limit_bytes(
                t_chunk, batch_tile, Hp, jnp.dtype(out_dtype).itemsize)),
    )(gi, whh_t, bhh_n)
    return outs, h_final


# ---------------------------------------------------------------------------
# One-time parameter preparation (transpose, gate-aligned padding, bf16 cast,
# bias folding) -- done outside the per-call forward.
# ---------------------------------------------------------------------------
def _pad_gate_cols(w, H, Hp):
    """(rows, 3H) -> (rows, 3Hp) with each gate segment zero-padded to Hp."""
    parts = [jnp.pad(w[:, g * H:(g + 1) * H], ((0, 0), (0, Hp - H)))
             for g in range(3)]
    return jnp.concatenate(parts, axis=1)


def _pad_gate_vec(b, H, Hp):
    parts = [jnp.pad(b[g * H:(g + 1) * H], (0, Hp - H)) for g in range(3)]
    return jnp.concatenate(parts)


def prepare_encoder_params(params, hidden_dim):
    H = hidden_dim
    Hp = _round_up(H, LANE)
    prepared = []
    for layer, (w_ih, w_hh, b_ih, b_hh) in enumerate(params):
        d_in = w_ih.shape[1]
        # input-side weights, transposed & gate-padded: (d_in[_pad], 3Hp)
        wih_t = _pad_gate_cols(jnp.asarray(w_ih, jnp.float32).T, H, Hp)
        if layer > 0:
            # layers > 0 consume the Hp-padded activations of the layer below;
            # pad the corresponding (zero) weight rows.
            wih_t = jnp.pad(wih_t, ((0, Hp - d_in), (0, 0)))
        # hidden-side weights: (Hp, 3Hp)
        whh_t = _pad_gate_cols(jnp.asarray(w_hh, jnp.float32).T, H, Hp)
        whh_t = jnp.pad(whh_t, ((0, Hp - H), (0, 0)))
        # bias folding: b_hh of the r/z gates can be merged into the hoisted
        # projection; b_hh_n cannot (it sits inside the r * (.) term).
        bih_p = _pad_gate_vec(jnp.asarray(b_ih, jnp.float32), H, Hp)
        bhh_p = _pad_gate_vec(jnp.asarray(b_hh, jnp.float32), H, Hp)
        bias_i = bih_p + jnp.concatenate(
            [bhh_p[:Hp], bhh_p[Hp:2 * Hp], jnp.zeros((Hp,), jnp.float32)])
        prepared.append({
            "wih_t": wih_t.astype(jnp.bfloat16),     # (d_in or Hp, 3Hp)
            "whh_t": whh_t.astype(jnp.bfloat16),     # (Hp, 3Hp)
            "bias_i": bias_i,                        # (3Hp,) f32
            "bhh_n": bhh_p[2 * Hp:].reshape(1, Hp),  # (1, Hp) f32
        })
    return prepared


def _project_inputs(x_sbd, wih_t, bias_i):
    """Hoisted, time-independent input projection for a whole layer:
    one (S*B, D) @ (D, 3Hp) bf16 matmul with f32 accumulation."""
    S, B, D = x_sbd.shape
    gi = jnp.dot(x_sbd.reshape(S * B, D).astype(jnp.bfloat16), wih_t,
                 preferred_element_type=jnp.float32) + bias_i
    return gi.reshape(S, B, -1).astype(jnp.bfloat16)


# ---------------------------------------------------------------------------
# Encoder forward (matches the PyTorch module's eval-mode forward).
# ---------------------------------------------------------------------------
def encoder_forward(inp_seq, prepared_params, hidden_dim):
    """inp_seq : (batch, seq, input_dim)
    returns (outputs (seq, batch, H), hidden (n_layers, batch, H))."""
    B, S, _ = inp_seq.shape
    H = hidden_dim

    # PyTorch `inp_seq.permute(1, 0, 2)` -> time-major.
    x = jnp.transpose(inp_seq, (1, 0, 2))

    # Pad to hardware-friendly shapes; padded batch rows / timesteps are
    # sliced off at the end (the kernel freezes h on padded timesteps).
    t_chunk = min(S, 32)
    S_pad = _round_up(S, t_chunk)
    Bp = _round_up(B, SUBLANE)
    batch_tile = min(Bp, 128)
    Bp = _round_up(Bp, batch_tile)
    x = jnp.pad(x, ((0, S_pad - S), (0, Bp - B), (0, 0)))

    n_layers = len(prepared_params)
    h_finals = []
    layer_in = x
    for li, p in enumerate(prepared_params):
        gi = _project_inputs(layer_in, p["wih_t"], p["bias_i"])
        # Inter-layer activations stay bf16 (and Hp-padded); final layer f32.
        out_dtype = jnp.float32 if li == n_layers - 1 else jnp.bfloat16
        layer_out, h_last = _gru_recurrence(
            gi, p["whh_t"], p["bhh_n"], seq_len=S, t_chunk=t_chunk,
            batch_tile=batch_tile, out_dtype=out_dtype)
        layer_in = layer_out
        h_finals.append(h_last[:B, :H])
    outputs = layer_in[:S, :B, :H].astype(jnp.float32)
    hidden = jnp.stack(h_finals, axis=0)
    return outputs, hidden


# ---------------------------------------------------------------------------
# Pure-JAX reference (PyTorch GRU equations, float32) and parameter init.
# ---------------------------------------------------------------------------
def encoder_reference(inp_seq, params):
    x = jnp.transpose(inp_seq, (1, 0, 2))
    S, B, _ = x.shape
    H = params[0][1].shape[1]
    h_finals = []
    layer_in = x
    for (w_ih, w_hh, b_ih, b_hh) in params:
        def step(h, xt):
            gi = xt @ w_ih.T + b_ih
            gh = h @ w_hh.T + b_hh
            i_r, i_z, i_n = gi[:, :H], gi[:, H:2 * H], gi[:, 2 * H:]
            h_r, h_z, h_n = gh[:, :H], gh[:, H:2 * H], gh[:, 2 * H:]
            r = jax.nn.sigmoid(i_r + h_r)
            z = jax.nn.sigmoid(i_z + h_z)
            n = jnp.tanh(i_n + r * h_n)
            h_new = (1.0 - z) * n + z * h
            return h_new, h_new
        h0 = jnp.zeros((B, H), jnp.float32)
        h_last, outs = lax.scan(step, h0, layer_in)
        layer_in = outs
        h_finals.append(h_last)
    return layer_in, jnp.stack(h_finals, axis=0)


def init_params(key, input_dim, hidden_dim, n_layers):
    """PyTorch-style uniform(-k, k) init, k = 1/sqrt(H)."""
    k = 1.0 / np.sqrt(hidden_dim)
    params = []
    for layer in range(n_layers):
        d_in = input_dim if layer == 0 else hidden_dim
        key, k1, k2, k3, k4 = jax.random.split(key, 5)
        w_ih = jax.random.uniform(k1, (3 * hidden_dim, d_in), jnp.float32, -k, k)
        w_hh = jax.random.uniform(k2, (3 * hidden_dim, hidden_dim), jnp.float32, -k, k)
        b_ih = jax.random.uniform(k3, (3 * hidden_dim,), jnp.float32, -k, k)
        b_hh = jax.random.uniform(k4, (3 * hidden_dim,), jnp.float32, -k, k)
        params.append((w_ih, w_hh, b_ih, b_hh))
    return params


if __name__ == "__main__":
    batch, seq, input_dim, hidden_dim, n_layers = 2, 8, 4, 32, 2

    key = jax.random.PRNGKey(0)
    key, pkey, xkey = jax.random.split(key, 3)
    params = init_params(pkey, input_dim, hidden_dim, n_layers)
    inp_seq = jax.random.normal(xkey, (batch, seq, input_dim), jnp.float32)

    prepared = prepare_encoder_params(params, hidden_dim)  # one-time weight prep

    fwd = jax.jit(functools.partial(encoder_forward, hidden_dim=hidden_dim))
    outputs, hidden = fwd(inp_seq, prepared)
    outputs, hidden = jax.block_until_ready((outputs, hidden))

    ref_out, ref_hid = encoder_reference(inp_seq, params)
    assert outputs.shape == (seq, batch, hidden_dim)
    assert hidden.shape == (n_layers, batch, hidden_dim)
    # bf16 weights/activations with f32 accumulation & f32 carried hidden
    # state: tolerance loosened vs the pure-f32 reference.
    np.testing.assert_allclose(np.asarray(outputs), np.asarray(ref_out),
                               rtol=3e-2, atol=3e-2)
    np.testing.assert_allclose(np.asarray(hidden), np.asarray(ref_hid),
                               rtol=3e-2, atol=3e-2)

    print("KERNEL_OK")
</pallas_src>

<mosaic_0001>
module attributes {stable_mosaic.version = 11 : i64} {
  func.func @_gru_seq_kernel(%arg0: i32, %arg1: i32, %arg2: memref<8x8x384xbf16, #tpu.memory_space<vmem>>, %arg3: memref<128x384xbf16, #tpu.memory_space<vmem>>, %arg4: memref<1x128xf32, #tpu.memory_space<vmem>>, %arg5: memref<8x8x128xf32, #tpu.memory_space<vmem>>, %arg6: memref<8x128xf32, #tpu.memory_space<vmem>>, %arg7: memref<8x128xf32, #tpu.memory_space<vmem>>) attributes {dimension_semantics = [#tpu.dimension_semantics<parallel>, #tpu.dimension_semantics<arbitrary>], iteration_bounds = array<i64: 1, 1>, scalar_prefetch = 0 : i64, scratch_operands = 1 : i64, tpu.core_type = #tpu.core_type<tc>, window_params = [{transform_indices = @transform_0, window_bounds = array<i64: 8, 8, 384>}, {pipeline_mode = #tpu.pipeline_mode<synchronous>, transform_indices = @transform_1, window_bounds = array<i64: 128, 384>}, {pipeline_mode = #tpu.pipeline_mode<synchronous>, transform_indices = @transform_2, window_bounds = array<i64: 1, 128>}, {transform_indices = @transform_3, window_bounds = array<i64: 8, 8, 128>}, {transform_indices = @transform_4, window_bounds = array<i64: 8, 128>}]} {
    %c0_i32 = arith.constant 0 : i32
    %0 = arith.cmpi eq, %arg1, %c0_i32 : i32
    %1 = arith.extui %0 : i1 to i32
    %c0_i32_0 = arith.constant 0 : i32
    %2 = arith.cmpi ne, %1, %c0_i32_0 : i32
    scf.if %2 {
      %cst_74 = arith.constant 0.000000e+00 : f32
      %314 = vector.broadcast %cst_74 : f32 to vector<8x128xf32>
      %c0_75 = arith.constant 0 : index
      %c0_76 = arith.constant 0 : index
      %315 = vector.load %arg7[%c0_75, %c0_76] : memref<8x128xf32, #tpu.memory_space<vmem>>, vector<8x128xf32>
      tpu.vector_store %arg7[%c0_75, %c0_76], %314 {strides = array<i32>} : memref<8x128xf32, #tpu.memory_space<vmem>>, vector<8x128xf32>,
    } else {
    }
    %c0 = arith.constant 0 : index
    %c0_1 = arith.constant 0 : index
    %3 = vector.load %arg3[%c0, %c0_1] : memref<128x384xbf16, #tpu.memory_space<vmem>>, vector<128x384xbf16>
    %c0_2 = arith.constant 0 : index
    %c0_3 = arith.constant 0 : index
    %4 = vector.load %arg4[%c0_2, %c0_3] : memref<1x128xf32, #tpu.memory_space<vmem>>, vector<1x128xf32>
    %c0_4 = arith.constant 0 : index
    %c0_5 = arith.constant 0 : index
    %5 = vector.load %arg7[%c0_4, %c0_5] : memref<8x128xf32, #tpu.memory_space<vmem>>, vector<8x128xf32>
    %c0_i32_6 = arith.constant 0 : i32
    %6 = arith.index_cast %c0_i32_6 : i32 to index
    %c0_7 = arith.constant 0 : index
    %c0_8 = arith.constant 0 : index
    %7 = vector.load %arg2[%6, %c0_7, %c0_8] : memref<8x8x384xbf16, #tpu.memory_space<vmem>>, vector<1x8x384xbf16>
    %8 = vector.shape_cast %7 : vector<1x8x384xbf16> to vector<8x384xbf16>
    %9 = arith.extf %8 : vector<8x384xbf16> to vector<8x384xf32>
    %10 = arith.truncf %5 : vector<8x128xf32> to vector<8x128xbf16>
    %cst = arith.constant dense<0.000000e+00> : vector<8x384xf32>
    %11 = tpu.matmul %10, %3, %cst {dimension_numbers = #tpu.dot_dimension_numbers<[1], [0], [0], [1], [0, 0, 1, 1], [], []>} : vector<8x128xbf16>, vector<128x384xbf16>, vector<8x384xf32> -> vector<8x384xf32>
    %12 = vector.extract_strided_slice %9 {offsets = [0, 0], sizes = [8, 128], strides = [1, 1]} : vector<8x384xf32> to vector<8x128xf32>
    %13 = vector.extract_strided_slice %11 {offsets = [0, 0], sizes = [8, 128], strides = [1, 1]} : vector<8x384xf32> to vector<8x128xf32>
    %14 = arith.addf %12, %13 : vector<8x128xf32>
    %15 = arith.negf %14 : vector<8x128xf32>
    %16 = math.exp %15 : vector<8x128xf32>
    %cst_9 = arith.constant 1.000000e+00 : f32
    %17 = vector.broadcast %cst_9 : f32 to vector<8x128xf32>
    %18 = arith.addf %17, %16 : vector<8x128xf32>
    %19 = arith.divf %17, %18 : vector<8x128xf32>
    %20 = vector.extract_strided_slice %9 {offsets = [0, 128], sizes = [8, 128], strides = [1, 1]} : vector<8x384xf32> to vector<8x128xf32>
    %21 = vector.extract_strided_slice %11 {offsets = [0, 128], sizes = [8, 128], strides = [1, 1]} : vector<8x384xf32> to vector<8x128xf32>
    %22 = arith.addf %20, %21 : vector<8x128xf32>
    %23 = arith.negf %22 : vector<8x128xf32>
    %24 = math.exp %23 : vector<8x128xf32>
    %cst_10 = arith.constant 1.000000e+00 : f32
    %25 = vector.broadcast %cst_10 : f32 to vector<8x128xf32>
    %26 = arith.addf %25, %24 : vector<8x128xf32>
    %27 = arith.divf %25, %26 : vector<8x128xf32>
    %28 = vector.extract_strided_slice %9 {offsets = [0, 256], sizes = [8, 128], strides = [1, 1]} : vector<8x384xf32> to vector<8x128xf32>
    %29 = vector.extract_strided_slice %11 {offsets = [0, 256], sizes = [8, 128], strides = [1, 1]} : vector<8x384xf32> to vector<8x128xf32>
    %30 = vector.broadcast %4 : vector<1x128xf32> to vector<8x128xf32>
    %31 = arith.addf %29, %30 : vector<8x128xf32>
    %32 = arith.mulf %19, %31 : vector<8x128xf32>
    %33 = arith.addf %28, %32 : vector<8x128xf32>
    %34 = math.tanh %33 : vector<8x128xf32>
    %cst_11 = arith.constant 1.000000e+00 : f32
    %35 = vector.broadcast %cst_11 : f32 to vector<8x128xf32>
    %36 = arith.subf %35, %27 : vector<8x128xf32>
    %37 = arith.mulf %36, %34 : vector<8x128xf32>
    %38 = arith.mulf %27, %5 : vector<8x128xf32>
    %39 = arith.addf %37, %38 : vector<8x128xf32>
    %40 = arith.index_cast %c0_i32_6 : i32 to index
    %c0_12 = arith.constant 0 : index
    %c0_13 = arith.constant 0 : index
    %41 = vector.load %arg5[%40, %c0_12, %c0_13] : memref<8x8x128xf32, #tpu.memory_space<vmem>>, vector<1x8x128xf32>
    %42 = vector.shape_cast %41 : vector<1x8x128xf32> to vector<8x128xf32>
    %43 = vector.shape_cast %39 : vector<8x128xf32> to vector<1x8x128xf32>
    tpu.vector_store %arg5[%40, %c0_12, %c0_13], %43 {strides = array<i32>} : memref<8x8x128xf32, #tpu.memory_space<vmem>>, vector<1x8x128xf32>,
    %c1_i32 = arith.constant 1 : i32
    %44 = arith.index_cast %c1_i32 : i32 to index
    %c0_14 = arith.constant 0 : index
    %c0_15 = arith.constant 0 : index
    %45 = vector.load %arg2[%44, %c0_14, %c0_15] : memref<8x8x384xbf16, #tpu.memory_space<vmem>>, vector<1x8x384xbf16>
    %46 = vector.shape_cast %45 : vector<1x8x384xbf16> to vector<8x384xbf16>
    %47 = arith.extf %46 : vector<8x384xbf16> to vector<8x384xf32>
    %48 = arith.truncf %39 : vector<8x128xf32> to vector<8x128xbf16>
    %cst_16 = arith.constant dense<0.000000e+00> : vector<8x384xf32>
    %49 = tpu.matmul %48, %3, %cst_16 {dimension_numbers = #tpu.dot_dimension_numbers<[1], [0], [0], [1], [0, 0, 1, 1], [], []>} : vector<8x128xbf16>, vector<128x384xbf16>, vector<8x384xf32> -> vector<8x384xf32>
    %50 = vector.extract_strided_slice %47 {offsets = [0, 0], sizes = [8, 128], strides = [1, 1]} : vector<8x384xf32> to vector<8x128xf32>
    %51 = vector.extract_strided_slice %49 {offsets = [0, 0], sizes = [8, 128], strides = [1, 1]} : vector<8x384xf32> to vector<8x128xf32>
    %52 = arith.addf %50, %51 : vector<8x128xf32>
    %53 = arith.negf %52 : vector<8x128xf32>
    %54 = math.exp %53 : vector<8x128xf32>
    %cst_17 = arith.constant 1.000000e+00 : f32
    %55 = vector.broadcast %cst_17 : f32 to vector<8x128xf32>
    %56 = arith.addf %55, %54 : vector<8x128xf32>
    %57 = arith.divf %55, %56 : vector<8x128xf32>
    %58 = vector.extract_strided_slice %47 {offsets = [0, 128], sizes = [8, 128], strides = [1, 1]} : vector<8x384xf32> to vector<8x128xf32>
    %59 = vector.extract_strided_slice %49 {offsets = [0, 128], sizes = [8, 128], strides = [1, 1]} : vector<8x384xf32> to vector<8x128xf32>
    %60 = arith.addf %58, %59 : vector<8x128xf32>
    %61 = arith.negf %60 : vector<8x128xf32>
    %62 = math.exp %61 : vector<8x128xf32>
    %cst_18 = arith.constant 1.000000e+00 : f32
    %63 = vector.broadcast %cst_18 : f32 to vector<8x128xf32>
    %64 = arith.addf %63, %62 : vector<8x128xf32>
    %65 = arith.divf %63, %64 : vector<8x128xf32>
    %66 = vector.extract_strided_slice %47 {offsets = [0, 256], sizes = [8, 128], strides = [1, 1]} : vector<8x384xf32> to vector<8x128xf32>
    %67 = vector.extract_strided_slice %49 {offsets = [0, 256], sizes = [8, 128], strides = [1, 1]} : vector<8x384xf32> to vector<8x128xf32>
    %68 = vector.broadcast %4 : vector<1x128xf32> to vector<8x128xf32>
    %69 = arith.addf %67, %68 : vector<8x128xf32>
    %70 = arith.mulf %57, %69 : vector<8x128xf32>
    %71 = arith.addf %66, %70 : vector<8x128xf32>
    %72 = math.tanh %71 : vector<8x128xf32>
    %cst_19 = arith.constant 1.000000e+00 : f32
    %73 = vector.broadcast %cst_19 : f32 to vector<8x128xf32>
    %74 = arith.subf %73, %65 : vector<8x128xf32>
    %75 = arith.mulf %74, %72 : vector<8x128xf32>
    %76 = arith.mulf %65, %39 : vector<8x128xf32>
    %77 = arith.addf %75, %76 : vector<8x128xf32>
    %78 = arith.index_cast %c1_i32 : i32 to index
    %c0_20 = arith.constant 0 : index
    %c0_21 = arith.constant 0 : index
    %79 = vector.load %arg5[%78, %c0_20, %c0_21] : memref<8x8x128xf32, #tpu.memory_space<vmem>>, vector<1x8x128xf32>
    %80 = vector.shape_cast %79 : vector<1x8x128xf32> to vector<8x128xf32>
    %81 = vector.shape_cast %77 : vector<8x128xf32> to vector<1x8x128xf32>
    tpu.vector_store %arg5[%78, %c0_20, %c0_21], %81 {strides = array<i32>} : memref<8x8x128xf32, #tpu.memory_space<vmem>>, vector<1x8x128xf32>,
    %c2_i32 = arith.constant 2 : i32
    %82 = arith.index_cast %c2_i32 : i32 to index
    %c0_22 = arith.constant 0 : index
    %c0_23 = arith.constant 0 : index
    %83 = vector.load %arg2[%82, %c0_22, %c0_23] : memref<8x8x384xbf16, #tpu.memory_space<vmem>>, vector<1x8x384xbf16>
    %84 = vector.shape_cast %83 : vector<1x8x384xbf16> to vector<8x384xbf16>
    %85 = arith.extf %84 : vector<8x384xbf16> to vector<8x384xf32>
    %86 = arith.truncf %77 : vector<8x128xf32> to vector<8x128xbf16>
    %cst_24 = arith.constant dense<0.000000e+00> : vector<8x384xf32>
    %87 = tpu.matmul %86, %3, %cst_24 {dimension_numbers = #tpu.dot_dimension_numbers<[1], [0], [0], [1], [0, 0, 1, 1], [], []>} : vector<8x128xbf16>, vector<128x384xbf16>, vector<8x384xf32> -> vector<8x384xf32>
    %88 = vector.extract_strided_slice %85 {offsets = [0, 0], sizes = [8, 128], strides = [1, 1]} : vector<8x384xf32> to vector<8x128xf32>
    %89 = vector.extract_strided_slice %87 {offsets = [0, 0], sizes = [8, 128], strides = [1, 1]} : vector<8x384xf32> to vector<8x128xf32>
    %90 = arith.addf %88, %89 : vector<8x128xf32>
    %91 = arith.negf %90 : vector<8x128xf32>
    %92 = math.exp %91 : vector<8x128xf32>
    %cst_25 = arith.constant 1.000000e+00 : f32
    %93 = vector.broadcast %cst_25 : f32 to vector<8x128xf32>
    %94 = arith.addf %93, %92 : vector<8x128xf32>
    %95 = arith.divf %93, %94 : vector<8x128xf32>
    %96 = vector.extract_strided_slice %85 {offsets = [0, 128], sizes = [8, 128], strides = [1, 1]} : vector<8x384xf32> to vector<8x128xf32>
    %97 = vector.extract_strided_slice %87 {offsets = [0, 128], sizes = [8, 128], strides = [1, 1]} : vector<8x384xf32> to vector<8x128xf32>
    %98 = arith.addf %96, %97 : vector<8x128xf32>
    %99 = arith.negf %98 : vector<8x128xf32>
    %100 = math.exp %99 : vector<8x128xf32>
    %cst_26 = arith.constant 1.000000e+00 : f32
    %101 = vector.broadcast %cst_26 : f32 to vector<8x128xf32>
    %102 = arith.addf %101, %100 : vector<8x128xf32>
    %103 = arith.divf %101, %102 : vector<8x128xf32>
    %104 = vector.extract_strided_slice %85 {offsets = [0, 256], sizes = [8, 128], strides = [1, 1]} : vector<8x384xf32> to vector<8x128xf32>
    %105 = vector.extract_strided_slice %87 {offsets = [0, 256], sizes = [8, 128], strides = [1, 1]} : vector<8x384xf32> to vector<8x128xf32>
    %106 = vector.broadcast %4 : vector<1x128xf32> to vector<8x128xf32>
    %107 = arith.addf %105, %106 : vector<8x128xf32>
    %108 = arith.mulf %95, %107 : vector<8x128xf32>
    %109 = arith.addf %104, %108 : vector<8x128xf32>
    %110 = math.tanh %109 : vector<8x128xf32>
    %cst_27 = arith.constant 1.000000e+00 : f32
    %111 = vector.broadcast %cst_27 : f32 to vector<8x128xf32>
    %112 = arith.subf %111, %103 : vector<8x128xf32>
    %113 = arith.mulf %112, %110 : vector<8x128xf32>
    %114 = arith.mulf %103, %77 : vector<8x128xf32>
    %115 = arith.addf %113, %114 : vector<8x128xf32>
    %116 = arith.index_cast %c2_i32 : i32 to index
    %c0_28 = arith.constant 0 : index
    %c0_29 = arith.constant 0 : index
    %117 = vector.load %arg5[%116, %c0_28, %c0_29] : memref<8x8x128xf32, #tpu.memory_space<vmem>>, vector<1x8x128xf32>
    %118 = vector.shape_cast %117 : vector<1x8x128xf32> to vector<8x128xf32>
    %119 = vector.shape_cast %115 : vector<8x128xf32> to vector<1x8x128xf32>
    tpu.vector_store %arg5[%116, %c0_28, %c0_29], %119 {strides = array<i32>} : memref<8x8x128xf32, #tpu.memory_space<vmem>>, vector<1x8x128xf32>,
    %c3_i32 = arith.constant 3 : i32
    %120 = arith.index_cast %c3_i32 : i32 to index
    %c0_30 = arith.constant 0 : index
    %c0_31 = arith.constant 0 : index
    %121 = vector.load %arg2[%120, %c0_30, %c0_31] : memref<8x8x384xbf16, #tpu.memory_space<vmem>>, vector<1x8x384xbf16>
    %122 = vector.shape_cast %121 : vector<1x8x384xbf16> to vector<8x384xbf16>
    %123 = arith.extf %122 : vector<8x384xbf16> to vector<8x384xf32>
    %124 = arith.truncf %115 : vector<8x128xf32> to vector<8x128xbf16>
    %cst_32 = arith.constant dense<0.000000e+00> : vector<8x384xf32>
    %125 = tpu.matmul %124, %3, %cst_32 {dimension_numbers = #tpu.dot_dimension_numbers<[1], [0], [0], [1], [0, 0, 1, 1], [], []>} : vector<8x128xbf16>, vector<128x384xbf16>, vector<8x384xf32> -> vector<8x384xf32>
    %126 = vector.extract_strided_slice %123 {offsets = [0, 0], sizes = [8, 128], strides = [1, 1]} : vector<8x384xf32> to vector<8x128xf32>
    %127 = vector.extract_strided_slice %125 {offsets = [0, 0], sizes = [8, 128], strides = [1, 1]} : vector<8x384xf32> to vector<8x128xf32>
    %128 = arith.addf %126, %127 : vector<8x128xf32>
    %129 = arith.negf %128 : vector<8x128xf32>
    %130 = math.exp %129 : vector<8x128xf32>
    %cst_33 = arith.constant 1.000000e+00 : f32
    %131 = vector.broadcast %cst_33 : f32 to vector<8x128xf32>
    %132 = arith.addf %131, %130 : vector<8x128xf32>
    %133 = arith.divf %131, %132 : vector<8x128xf32>
    %134 = vector.extract_strided_slice %123 {offsets = [0, 128], sizes = [8, 128], strides = [1, 1]} : vector<8x384xf32> to vector<8x128xf32>
    %135 = vector.extract_strided_slice %125 {offsets = [0, 128], sizes = [8, 128], strides = [1, 1]} : vector<8x384xf32> to vector<8x128xf32>
    %136 = arith.addf %134, %135 : vector<8x128xf32>
    %137 = arith.negf %136 : vector<8x128xf32>
    %138 = math.exp %137 : vector<8x128xf32>
    %cst_34 = arith.constant 1.000000e+00 : f32
    %139 = vector.broadcast %cst_34 : f32 to vector<8x128xf32>
    %140 = arith.addf %139, %138 : vector<8x128xf32>
    %141 = arith.divf %139, %140 : vector<8x128xf32>
    %142 = vector.extract_strided_slice %123 {offsets = [0, 256], sizes = [8, 128], strides = [1, 1]} : vector<8x384xf32> to vector<8x128xf32>
    %143 = vector.extract_strided_slice %125 {offsets = [0, 256], sizes = [8, 128], strides = [1, 1]} : vector<8x384xf32> to vector<8x128xf32>
    %144 = vector.broadcast %4 : vector<1x128xf32> to vector<8x128xf32>
    %145 = arith.addf %143, %144 : vector<8x128xf32>
    %146 = arith.mulf %133, %145 : vector<8x128xf32>
    %147 = arith.addf %142, %146 : vector<8x128xf32>
    %148 = math.tanh %147 : vector<8x128xf32>
    %cst_35 = arith.constant 1.000000e+00 : f32
    %149 = vector.broadcast %cst_35 : f32 to vector<8x128xf32>
    %150 = arith.subf %149, %141 : vector<8x128xf32>
    %151 = arith.mulf %150, %148 : vector<8x128xf32>
    %152 = arith.mulf %141, %115 : vector<8x128xf32>
    %153 = arith.addf %151, %152 : vector<8x128xf32>
    %154 = arith.index_cast %c3_i32 : i32 to index
    %c0_36 = arith.constant 0 : index
    %c0_37 = arith.constant 0 : index
    %155 = vector.load %arg5[%154, %c0_36, %c0_37] : memref<8x8x128xf32, #tpu.memory_space<vmem>>, vector<1x8x128xf32>
    %156 = vector.shape_cast %155 : vector<1x8x128xf32> to vector<8x128xf32>
    %157 = vector.shape_cast %153 : vector<8x128xf32> to vector<1x8x128xf32>
    tpu.vector_store %arg5[%154, %c0_36, %c0_37], %157 {strides = array<i32>} : memref<8x8x128xf32, #tpu.memory_space<vmem>>, vector<1x8x128xf32>,
    %c4_i32 = arith.constant 4 : i32
    %158 = arith.index_cast %c4_i32 : i32 to index
    %c0_38 = arith.constant 0 : index
    %c0_39 = arith.constant 0 : index
    %159 = vector.load %arg2[%158, %c0_38, %c0_39] : memref<8x8x384xbf16, #tpu.memory_space<vmem>>, vector<1x8x384xbf16>
    %160 = vector.shape_cast %159 : vector<1x8x384xbf16> to vector<8x384xbf16>
    %161 = arith.extf %160 : vector<8x384xbf16> to vector<8x384xf32>
    %162 = arith.truncf %153 : vector<8x128xf32> to vector<8x128xbf16>
    %cst_40 = arith.constant dense<0.000000e+00> : vector<8x384xf32>
    %163 = tpu.matmul %162, %3, %cst_40 {dimension_numbers = #tpu.dot_dimension_numbers<[1], [0], [0], [1], [0, 0, 1, 1], [], []>} : vector<8x128xbf16>, vector<128x384xbf16>, vector<8x384xf32> -> vector<8x384xf32>
    %164 = vector.extract_strided_slice %161 {offsets = [0, 0], sizes = [8, 128], strides = [1, 1]} : vector<8x384xf32> to vector<8x128xf32>
    %165 = vector.extract_strided_slice %163 {offsets = [0, 0], sizes = [8, 128], strides = [1, 1]} : vector<8x384xf32> to vector<8x128xf32>
    %166 = arith.addf %164, %165 : vector<8x128xf32>
    %167 = arith.negf %166 : vector<8x128xf32>
    %168 = math.exp %167 : vector<8x128xf32>
    %cst_41 = arith.constant 1.000000e+00 : f32
    %169 = vector.broadcast %cst_41 : f32 to vector<8x128xf32>
    %170 = arith.addf %169, %168 : vector<8x128xf32>
    %171 = arith.divf %169, %170 : vector<8x128xf32>
    %172 = vector.extract_strided_slice %161 {offsets = [0, 128], sizes = [8, 128], strides = [1, 1]} : vector<8x384xf32> to vector<8x128xf32>
    %173 = vector.extract_strided_slice %163 {offsets = [0, 128], sizes = [8, 128], strides = [1, 1]} : vector<8x384xf32> to vector<8x128xf32>
    %174 = arith.addf %172, %173 : vector<8x128xf32>
    %175 = arith.negf %174 : vector<8x128xf32>
    %176 = math.exp %175 : vector<8x128xf32>
    %cst_42 = arith.constant 1.000000e+00 : f32
    %177 = vector.broadcast %cst_42 : f32 to vector<8x128xf32>
    %178 = arith.addf %177, %176 : vector<8x128xf32>
    %179 = arith.divf %177, %178 : vector<8x128xf32>
    %180 = vector.extract_strided_slice %161 {offsets = [0, 256], sizes = [8, 128], strides = [1, 1]} : vector<8x384xf32> to vector<8x128xf32>
    %181 = vector.extract_strided_slice %163 {offsets = [0, 256], sizes = [8, 128], strides = [1, 1]} : vector<8x384xf32> to vector<8x128xf32>
    %182 = vector.broadcast %4 : vector<1x128xf32> to vector<8x128xf32>
    %183 = arith.addf %181, %182 : vector<8x128xf32>
    %184 = arith.mulf %171, %183 : vector<8x128xf32>
    %185 = arith.addf %180, %184 : vector<8x128xf32>
    %186 = math.tanh %185 : vector<8x128xf32>
    %cst_43 = arith.constant 1.000000e+00 : f32
    %187 = vector.broadcast %cst_43 : f32 to vector<8x128xf32>
    %188 = arith.subf %187, %179 : vector<8x128xf32>
    %189 = arith.mulf %188, %186 : vector<8x128xf32>
    %190 = arith.mulf %179, %153 : vector<8x128xf32>
    %191 = arith.addf %189, %190 : vector<8x128xf32>
    %192 = arith.index_cast %c4_i32 : i32 to index
    %c0_44 = arith.constant 0 : index
    %c0_45 = arith.constant 0 : index
    %193 = vector.load %arg5[%192, %c0_44, %c0_45] : memref<8x8x128xf32, #tpu.memory_space<vmem>>, vector<1x8x128xf32>
    %194 = vector.shape_cast %193 : vector<1x8x128xf32> to vector<8x128xf32>
    %195 = vector.shape_cast %191 : vector<8x128xf32> to vector<1x8x128xf32>
    tpu.vector_store %arg5[%192, %c0_44, %c0_45], %195 {strides = array<i32>} : memref<8x8x128xf32, #tpu.memory_space<vmem>>, vector<1x8x128xf32>,
    %c5_i32 = arith.constant 5 : i32
    %196 = arith.index_cast %c5_i32 : i32 to index
    %c0_46 = arith.constant 0 : index
    %c0_47 = arith.constant 0 : index
    %197 = vector.load %arg2[%196, %c0_46, %c0_47] : memref<8x8x384xbf16, #tpu.memory_space<vmem>>, vector<1x8x384xbf16>
    %198 = vector.shape_cast %197 : vector<1x8x384xbf16> to vector<8x384xbf16>
    %199 = arith.extf %198 : vector<8x384xbf16> to vector<8x384xf32>
    %200 = arith.truncf %191 : vector<8x128xf32> to vector<8x128xbf16>
    %cst_48 = arith.constant dense<0.000000e+00> : vector<8x384xf32>
    %201 = tpu.matmul %200, %3, %cst_48 {dimension_numbers = #tpu.dot_dimension_numbers<[1], [0], [0], [1], [0, 0, 1, 1], [], []>} : vector<8x128xbf16>, vector<128x384xbf16>, vector<8x384xf32> -> vector<8x384xf32>
    %202 = vector.extract_strided_slice %199 {offsets = [0, 0], sizes = [8, 128], strides = [1, 1]} : vector<8x384xf32> to vector<8x128xf32>
    %203 = vector.extract_strided_slice %201 {offsets = [0, 0], sizes = [8, 128], strides = [1, 1]} : vector<8x384xf32> to vector<8x128xf32>
    %204 = arith.addf %202, %203 : vector<8x128xf32>
    %205 = arith.negf %204 : vector<8x128xf32>
    %206 = math.exp %205 : vector<8x128xf32>
    %cst_49 = arith.constant 1.000000e+00 : f32
    %207 = vector.broadcast %cst_49 : f32 to vector<8x128xf32>
    %208 = arith.addf %207, %206 : vector<8x128xf32>
    %209 = arith.divf %207, %208 : vector<8x128xf32>
    %210 = vector.extract_strided_slice %199 {offsets = [0, 128], sizes = [8, 128], strides = [1, 1]} : vector<8x384xf32> to vector<8x128xf32>
    %211 = vector.extract_strided_slice %201 {offsets = [0, 128], sizes = [8, 128], strides = [1, 1]} : vector<8x384xf32> to vector<8x128xf32>
    %212 = arith.addf %210, %211 : vector<8x128xf32>
    %213 = arith.negf %212 : vector<8x128xf32>
    %214 = math.exp %213 : vector<8x128xf32>
    %cst_50 = arith.constant 1.000000e+00 : f32
    %215 = vector.broadcast %cst_50 : f32 to vector<8x128xf32>
    %216 = arith.addf %215, %214 : vector<8x128xf32>
    %217 = arith.divf %215, %216 : vector<8x128xf32>
    %218 = vector.extract_strided_slice %199 {offsets = [0, 256], sizes = [8, 128], strides = [1, 1]} : vector<8x384xf32> to vector<8x128xf32>
    %219 = vector.extract_strided_slice %201 {offsets = [0, 256], sizes = [8, 128], strides = [1, 1]} : vector<8x384xf32> to vector<8x128xf32>
    %220 = vector.broadcast %4 : vector<1x128xf32> to vector<8x128xf32>
    %221 = arith.addf %219, %220 : vector<8x128xf32>
    %222 = arith.mulf %209, %221 : vector<8x128xf32>
    %223 = arith.addf %218, %222 : vector<8x128xf32>
    %224 = math.tanh %223 : vector<8x128xf32>
    %cst_51 = arith.constant 1.000000e+00 : f32
    %225 = vector.broadcast %cst_51 : f32 to vector<8x128xf32>
    %226 = arith.subf %225, %217 : vector<8x128xf32>
    %227 = arith.mulf %226, %224 : vector<8x128xf32>
    %228 = arith.mulf %217, %191 : vector<8x128xf32>
    %229 = arith.addf %227, %228 : vector<8x128xf32>
    %230 = arith.index_cast %c5_i32 : i32 to index
    %c0_52 = arith.constant 0 : index
    %c0_53 = arith.constant 0 : index
    %231 = vector.load %arg5[%230, %c0_52, %c0_53] : memref<8x8x128xf32, #tpu.memory_space<vmem>>, vector<1x8x128xf32>
    %232 = vector.shape_cast %231 : vector<1x8x128xf32> to vector<8x128xf32>
    %233 = vector.shape_cast %229 : vector<8x128xf32> to vector<1x8x128xf32>
    tpu.vector_store %arg5[%230, %c0_52, %c0_53], %233 {strides = array<i32>} : memref<8x8x128xf32, #tpu.memory_space<vmem>>, vector<1x8x128xf32>,
    %c6_i32 = arith.constant 6 : i32
    %234 = arith.index_cast %c6_i32 : i32 to index
    %c0_54 = arith.constant 0 : index
    %c0_55 = arith.constant 0 : index
    %235 = vector.load %arg2[%234, %c0_54, %c0_55] : memref<8x8x384xbf16, #tpu.memory_space<vmem>>, vector<1x8x384xbf16>
    %236 = vector.shape_cast %235 : vector<1x8x384xbf16> to vector<8x384xbf16>
    %237 = arith.extf %236 : vector<8x384xbf16> to vector<8x384xf32>
    %238 = arith.truncf %229 : vector<8x128xf32> to vector<8x128xbf16>
    %cst_56 = arith.constant dense<0.000000e+00> : vector<8x384xf32>
    %239 = tpu.matmul %238, %3, %cst_56 {dimension_numbers = #tpu.dot_dimension_numbers<[1], [0], [0], [1], [0, 0, 1, 1], [], []>} : vector<8x128xbf16>, vector<128x384xbf16>, vector<8x384xf32> -> vector<8x384xf32>
    %240 = vector.extract_strided_slice %237 {offsets = [0, 0], sizes = [8, 128], strides = [1, 1]} : vector<8x384xf32> to vector<8x128xf32>
    %241 = vector.extract_strided_slice %239 {offsets = [0, 0], sizes = [8, 128], strides = [1, 1]} : vector<8x384xf32> to vector<8x128xf32>
    %242 = arith.addf %240, %241 : vector<8x128xf32>
    %243 = arith.negf %242 : vector<8x128xf32>
    %244 = math.exp %243 : vector<8x128xf32>
    %cst_57 = arith.constant 1.000000e+00 : f32
    %245 = vector.broadcast %cst_57 : f32 to vector<8x128xf32>
    %246 = arith.addf %245, %244 : vector<8x128xf32>
    %247 = arith.divf %245, %246 : vector<8x128xf32>
    %248 = vector.extract_strided_slice %237 {offsets = [0, 128], sizes = [8, 128], strides = [1, 1]} : vector<8x384xf32> to vector<8x128xf32>
    %249 = vector.extract_strided_slice %239 {offsets = [0, 128], sizes = [8, 128], strides = [1, 1]} : vector<8x384xf32> to vector<8x128xf32>
    %250 = arith.addf %248, %249 : vector<8x128xf32>
    %251 = arith.negf %250 : vector<8x128xf32>
    %252 = math.exp %251 : vector<8x128xf32>
    %cst_58 = arith.constant 1.000000e+00 : f32
    %253 = vector.broadcast %cst_58 : f32 to vector<8x128xf32>
    %254 = arith.addf %253, %252 : vector<8x128xf32>
    %255 = arith.divf %253, %254 : vector<8x128xf32>
    %256 = vector.extract_strided_slice %237 {offsets = [0, 256], sizes = [8, 128], strides = [1, 1]} : vector<8x384xf32> to vector<8x128xf32>
    %257 = vector.extract_strided_slice %239 {offsets = [0, 256], sizes = [8, 128], strides = [1, 1]} : vector<8x384xf32> to vector<8x128xf32>
    %258 = vector.broadcast %4 : vector<1x128xf32> to vector<8x128xf32>
    %259 = arith.addf %257, %258 : vector<8x128xf32>
    %260 = arith.mulf %247, %259 : vector<8x128xf32>
    %261 = arith.addf %256, %260 : vector<8x128xf32>
    %262 = math.tanh %261 : vector<8x128xf32>
    %cst_59 = arith.constant 1.000000e+00 : f32
    %263 = vector.broadcast %cst_59 : f32 to vector<8x128xf32>
    %264 = arith.subf %263, %255 : vector<8x128xf32>
    %265 = arith.mulf %264, %262 : vector<8x128xf32>
    %266 = arith.mulf %255, %229 : vector<8x128xf32>
    %267 = arith.addf %265, %266 : vector<8x128xf32>
    %268 = arith.index_cast %c6_i32 : i32 to index
    %c0_60 = arith.constant 0 : index
    %c0_61 = arith.constant 0 : index
    %269 = vector.load %arg5[%268, %c0_60, %c0_61] : memref<8x8x128xf32, #tpu.memory_space<vmem>>, vector<1x8x128xf32>
    %270 = vector.shape_cast %269 : vector<1x8x128xf32> to vector<8x128xf32>
    %271 = vector.shape_cast %267 : vector<8x128xf32> to vector<1x8x128xf32>
    tpu.vector_store %arg5[%268, %c0_60, %c0_61], %271 {strides = array<i32>} : memref<8x8x128xf32, #tpu.memory_space<vmem>>, vector<1x8x128xf32>,
    %c7_i32 = arith.constant 7 : i32
    %272 = arith.index_cast %c7_i32 : i32 to index
    %c0_62 = arith.constant 0 : index
    %c0_63 = arith.constant 0 : index
    %273 = vector.load %arg2[%272, %c0_62, %c0_63] : memref<8x8x384xbf16, #tpu.memory_space<vmem>>, vector<1x8x384xbf16>
    %274 = vector.shape_cast %273 : vector<1x8x384xbf16> to vector<8x384xbf16>
    %275 = arith.extf %274 : vector<8x384xbf16> to vector<8x384xf32>
    %276 = arith.truncf %267 : vector<8x128xf32> to vector<8x128xbf16>
    %cst_64 = arith.constant dense<0.000000e+00> : vector<8x384xf32>
    %277 = tpu.matmul %276, %3, %cst_64 {dimension_numbers = #tpu.dot_dimension_numbers<[1], [0], [0], [1], [0, 0, 1, 1], [], []>} : vector<8x128xbf16>, vector<128x384xbf16>, vector<8x384xf32> -> vector<8x384xf32>
    %278 = vector.extract_strided_slice %275 {offsets = [0, 0], sizes = [8, 128], strides = [1, 1]} : vector<8x384xf32> to vector<8x128xf32>
    %279 = vector.extract_strided_slice %277 {offsets = [0, 0], sizes = [8, 128], strides = [1, 1]} : vector<8x384xf32> to vector<8x128xf32>
    %280 = arith.addf %278, %279 : vector<8x128xf32>
    %281 = arith.negf %280 : vector<8x128xf32>
    %282 = math.exp %281 : vector<8x128xf32>
    %cst_65 = arith.constant 1.000000e+00 : f32
    %283 = vector.broadcast %cst_65 : f32 to vector<8x128xf32>
    %284 = arith.addf %283, %282 : vector<8x128xf32>
    %285 = arith.divf %283, %284 : vector<8x128xf32>
    %286 = vector.extract_strided_slice %275 {offsets = [0, 128], sizes = [8, 128], strides = [1, 1]} : vector<8x384xf32> to vector<8x128xf32>
    %287 = vector.extract_strided_slice %277 {offsets = [0, 128], sizes = [8, 128], strides = [1, 1]} : vector<8x384xf32> to vector<8x128xf32>
    %288 = arith.addf %286, %287 : vector<8x128xf32>
    %289 = arith.negf %288 : vector<8x128xf32>
    %290 = math.exp %289 : vector<8x128xf32>
    %cst_66 = arith.constant 1.000000e+00 : f32
    %291 = vector.broadcast %cst_66 : f32 to vector<8x128xf32>
    %292 = arith.addf %291, %290 : vector<8x128xf32>
    %293 = arith.divf %291, %292 : vector<8x128xf32>
    %294 = vector.extract_strided_slice %275 {offsets = [0, 256], sizes = [8, 128], strides = [1, 1]} : vector<8x384xf32> to vector<8x128xf32>
    %295 = vector.extract_strided_slice %277 {offsets = [0, 256], sizes = [8, 128], strides = [1, 1]} : vector<8x384xf32> to vector<8x128xf32>
    %296 = vector.broadcast %4 : vector<1x128xf32> to vector<8x128xf32>
    %297 = arith.addf %295, %296 : vector<8x128xf32>
    %298 = arith.mulf %285, %297 : vector<8x128xf32>
    %299 = arith.addf %294, %298 : vector<8x128xf32>
    %300 = math.tanh %299 : vector<8x128xf32>
    %cst_67 = arith.constant 1.000000e+00 : f32
    %301 = vector.broadcast %cst_67 : f32 to vector<8x128xf32>
    %302 = arith.subf %301, %293 : vector<8x128xf32>
    %303 = arith.mulf %302, %300 : vector<8x128xf32>
    %304 = arith.mulf %293, %267 : vector<8x128xf32>
    %305 = arith.addf %303, %304 : vector<8x128xf32>
    %306 = arith.index_cast %c7_i32 : i32 to index
    %c0_68 = arith.constant 0 : index
    %c0_69 = arith.constant 0 : index
    %307 = vector.load %arg5[%306, %c0_68, %c0_69] : memref<8x8x128xf32, #tpu.memory_space<vmem>>, vector<1x8x128xf32>
    %308 = vector.shape_cast %307 : vector<1x8x128xf32> to vector<8x128xf32>
    %309 = vector.shape_cast %305 : vector<8x128xf32> to vector<1x8x128xf32>
    tpu.vector_store %arg5[%306, %c0_68, %c0_69], %309 {strides = array<i32>} : memref<8x8x128xf32, #tpu.memory_space<vmem>>, vector<1x8x128xf32>,
    %c8_i32 = arith.constant 8 : i32
    %c0_70 = arith.constant 0 : index
    %c0_71 = arith.constant 0 : index
    %310 = vector.load %arg7[%c0_70, %c0_71] : memref<8x128xf32, #tpu.memory_space<vmem>>, vector<8x128xf32>
    tpu.vector_store %arg7[%c0_70, %c0_71], %305 {strides = array<i32>} : memref<8x128xf32, #tpu.memory_space<vmem>>, vector<8x128xf32>,
    %c0_i32_72 = arith.constant 0 : i32
    %311 = arith.cmpi eq, %arg1, %c0_i32_72 : i32
    %312 = arith.extui %311 : i1 to i32
    %c0_i32_73 = arith.constant 0 : i32
    %313 = arith.cmpi ne, %312, %c0_i32_73 : i32
    scf.if %313 {
      %c0_74 = arith.constant 0 : index
      %c0_75 = arith.constant 0 : index
      %314 = vector.load %arg6[%c0_74, %c0_75] : memref<8x128xf32, #tpu.memory_space<vmem>>, vector<8x128xf32>
      tpu.vector_store %arg6[%c0_74, %c0_75], %305 {strides = array<i32>} : memref<8x128xf32, #tpu.memory_space<vmem>>, vector<8x128xf32>,
    } else {
    }
    return
  }
  func.func @transform_0(%arg0: i32, %arg1: i32) -> (i32, i32, i32) {
    %c0_i32 = arith.constant 0 : i32
    %c0_i32_0 = arith.constant 0 : i32
    return %arg1, %arg0, %c0_i32 : i32, i32, i32
  }
  func.func @transform_1(%arg0: i32, %arg1: i32) -> (i32, i32) {
    %c0_i32 = arith.constant 0 : i32
    %c0_i32_0 = arith.constant 0 : i32
    %c0_i32_1 = arith.constant 0 : i32
    return %c0_i32, %c0_i32_0 : i32, i32
  }
  func.func @transform_2(%arg0: i32, %arg1: i32) -> (i32, i32) {
    %c0_i32 = arith.constant 0 : i32
    %c0_i32_0 = arith.constant 0 : i32
    %c0_i32_1 = arith.constant 0 : i32
    return %c0_i32, %c0_i32_0 : i32, i32
  }
  func.func @transform_3(%arg0: i32, %arg1: i32) -> (i32, i32, i32) {
    %c0_i32 = arith.constant 0 : i32
    %c0_i32_0 = arith.constant 0 : i32
    return %arg1, %arg0, %c0_i32 : i32, i32, i32
  }
  func.func @transform_4(%arg0: i32, %arg1: i32) -> (i32, i32) {
    %c0_i32 = arith.constant 0 : i32
    %c0_i32_0 = arith.constant 0 : i32
    return %arg0, %c0_i32 : i32, i32
  }
}

module attributes {stable_mosaic.version = 11 : i64} {
  func.func @_gru_seq_kernel(%arg0: i32, %arg1: i32, %arg2: memref<8x8x384xbf16, #tpu.memory_space<vmem>>, %arg3: memref<128x384xbf16, #tpu.memory_space<vmem>>, %arg4: memref<1x128xf32, #tpu.memory_space<vmem>>, %arg5: memref<8x8x128xbf16, #tpu.memory_space<vmem>>, %arg6: memref<8x128xf32, #tpu.memory_space<vmem>>, %arg7: memref<8x128xf32, #tpu.memory_space<vmem>>) attributes {dimension_semantics = [#tpu.dimension_semantics<parallel>, #tpu.dimension_semantics<arbitrary>], iteration_bounds = array<i64: 1, 1>, scalar_prefetch = 0 : i64, scratch_operands = 1 : i64, tpu.core_type = #tpu.core_type<tc>, window_params = [{transform_indices = @transform_0, window_bounds = array<i64: 8, 8, 384>}, {pipeline_mode = #tpu.pipeline_mode<synchronous>, transform_indices = @transform_1, window_bounds = array<i64: 128, 384>}, {pipeline_mode = #tpu.pipeline_mode<synchronous>, transform_indices = @transform_2, window_bounds = array<i64: 1, 128>}, {transform_indices = @transform_3, window_bounds = array<i64: 8, 8, 128>}, {transform_indices = @transform_4, window_bounds = array<i64: 8, 128>}]} {
    %c0_i32 = arith.constant 0 : i32
    %0 = arith.cmpi eq, %arg1, %c0_i32 : i32
    %1 = arith.extui %0 : i1 to i32
    %c0_i32_0 = arith.constant 0 : i32
    %2 = arith.cmpi ne, %1, %c0_i32_0 : i32
    scf.if %2 {
      %cst_74 = arith.constant 0.000000e+00 : f32
      %322 = vector.broadcast %cst_74 : f32 to vector<8x128xf32>
      %c0_75 = arith.constant 0 : index
      %c0_76 = arith.constant 0 : index
      %323 = vector.load %arg7[%c0_75, %c0_76] : memref<8x128xf32, #tpu.memory_space<vmem>>, vector<8x128xf32>
      tpu.vector_store %arg7[%c0_75, %c0_76], %322 {strides = array<i32>} : memref<8x128xf32, #tpu.memory_space<vmem>>, vector<8x128xf32>,
    } else {
    }
    %c0 = arith.constant 0 : index
    %c0_1 = arith.constant 0 : index
    %3 = vector.load %arg3[%c0, %c0_1] : memref<128x384xbf16, #tpu.memory_space<vmem>>, vector<128x384xbf16>
    %c0_2 = arith.constant 0 : index
    %c0_3 = arith.constant 0 : index
    %4 = vector.load %arg4[%c0_2, %c0_3] : memref<1x128xf32, #tpu.memory_space<vmem>>, vector<1x128xf32>
    %c0_4 = arith.constant 0 : index
    %c0_5 = arith.constant 0 : index
    %5 = vector.load %arg7[%c0_4, %c0_5] : memref<8x128xf32, #tpu.memory_space<vmem>>, vector<8x128xf32>
    %c0_i32_6 = arith.constant 0 : i32
    %6 = arith.index_cast %c0_i32_6 : i32 to index
    %c0_7 = arith.constant 0 : index
    %c0_8 = arith.constant 0 : index
    %7 = vector.load %arg2[%6, %c0_7, %c0_8] : memref<8x8x384xbf16, #tpu.memory_space<vmem>>, vector<1x8x384xbf16>
    %8 = vector.shape_cast %7 : vector<1x8x384xbf16> to vector<8x384xbf16>
    %9 = arith.extf %8 : vector<8x384xbf16> to vector<8x384xf32>
    %10 = arith.truncf %5 : vector<8x128xf32> to vector<8x128xbf16>
    %cst = arith.constant dense<0.000000e+00> : vector<8x384xf32>
    %11 = tpu.matmul %10, %3, %cst {dimension_numbers = #tpu.dot_dimension_numbers<[1], [0], [0], [1], [0, 0, 1, 1], [], []>} : vector<8x128xbf16>, vector<128x384xbf16>, vector<8x384xf32> -> vector<8x384xf32>
    %12 = vector.extract_strided_slice %9 {offsets = [0, 0], sizes = [8, 128], strides = [1, 1]} : vector<8x384xf32> to vector<8x128xf32>
    %13 = vector.extract_strided_slice %11 {offsets = [0, 0], sizes = [8, 128], strides = [1, 1]} : vector<8x384xf32> to vector<8x128xf32>
    %14 = arith.addf %12, %13 : vector<8x128xf32>
    %15 = arith.negf %14 : vector<8x128xf32>
    %16 = math.exp %15 : vector<8x128xf32>
    %cst_9 = arith.constant 1.000000e+00 : f32
    %17 = vector.broadcast %cst_9 : f32 to vector<8x128xf32>
    %18 = arith.addf %17, %16 : vector<8x128xf32>
    %19 = arith.divf %17, %18 : vector<8x128xf32>
    %20 = vector.extract_strided_slice %9 {offsets = [0, 128], sizes = [8, 128], strides = [1, 1]} : vector<8x384xf32> to vector<8x128xf32>
    %21 = vector.extract_strided_slice %11 {offsets = [0, 128], sizes = [8, 128], strides = [1, 1]} : vector<8x384xf32> to vector<8x128xf32>
    %22 = arith.addf %20, %21 : vector<8x128xf32>
    %23 = arith.negf %22 : vector<8x128xf32>
    %24 = math.exp %23 : vector<8x128xf32>
    %cst_10 = arith.constant 1.000000e+00 : f32
    %25 = vector.broadcast %cst_10 : f32 to vector<8x128xf32>
    %26 = arith.addf %25, %24 : vector<8x128xf32>
    %27 = arith.divf %25, %26 : vector<8x128xf32>
    %28 = vector.extract_strided_slice %9 {offsets = [0, 256], sizes = [8, 128], strides = [1, 1]} : vector<8x384xf32> to vector<8x128xf32>
    %29 = vector.extract_strided_slice %11 {offsets = [0, 256], sizes = [8, 128], strides = [1, 1]} : vector<8x384xf32> to vector<8x128xf32>
    %30 = vector.broadcast %4 : vector<1x128xf32> to vector<8x128xf32>
    %31 = arith.addf %29, %30 : vector<8x128xf32>
    %32 = arith.mulf %19, %31 : vector<8x128xf32>
    %33 = arith.addf %28, %32 : vector<8x128xf32>
    %34 = math.tanh %33 : vector<8x128xf32>
    %cst_11 = arith.constant 1.000000e+00 : f32
    %35 = vector.broadcast %cst_11 : f32 to vector<8x128xf32>
    %36 = arith.subf %35, %27 : vector<8x128xf32>
    %37 = arith.mulf %36, %34 : vector<8x128xf32>
    %38 = arith.mulf %27, %5 : vector<8x128xf32>
    %39 = arith.addf %37, %38 : vector<8x128xf32>
    %40 = arith.truncf %39 : vector<8x128xf32> to vector<8x128xbf16>
    %41 = arith.index_cast %c0_i32_6 : i32 to index
    %c0_12 = arith.constant 0 : index
    %c0_13 = arith.constant 0 : index
    %42 = vector.load %arg5[%41, %c0_12, %c0_13] : memref<8x8x128xbf16, #tpu.memory_space<vmem>>, vector<1x8x128xbf16>
    %43 = vector.shape_cast %42 : vector<1x8x128xbf16> to vector<8x128xbf16>
    %44 = vector.shape_cast %40 : vector<8x128xbf16> to vector<1x8x128xbf16>
    tpu.vector_store %arg5[%41, %c0_12, %c0_13], %44 {strides = array<i32>} : memref<8x8x128xbf16, #tpu.memory_space<vmem>>, vector<1x8x128xbf16>,
    %c1_i32 = arith.constant 1 : i32
    %45 = arith.index_cast %c1_i32 : i32 to index
    %c0_14 = arith.constant 0 : index
    %c0_15 = arith.constant 0 : index
    %46 = vector.load %arg2[%45, %c0_14, %c0_15] : memref<8x8x384xbf16, #tpu.memory_space<vmem>>, vector<1x8x384xbf16>
    %47 = vector.shape_cast %46 : vector<1x8x384xbf16> to vector<8x384xbf16>
    %48 = arith.extf %47 : vector<8x384xbf16> to vector<8x384xf32>
    %49 = arith.truncf %39 : vector<8x128xf32> to vector<8x128xbf16>
    %cst_16 = arith.constant dense<0.000000e+00> : vector<8x384xf32>
    %50 = tpu.matmul %49, %3, %cst_16 {dimension_numbers = #tpu.dot_dimension_numbers<[1], [0], [0], [1], [0, 0, 1, 1], [], []>} : vector<8x128xbf16>, vector<128x384xbf16>, vector<8x384xf32> -> vector<8x384xf32>
    %51 = vector.extract_strided_slice %48 {offsets = [0, 0], sizes = [8, 128], strides = [1, 1]} : vector<8x384xf32> to vector<8x128xf32>
    %52 = vector.extract_strided_slice %50 {offsets = [0, 0], sizes = [8, 128], strides = [1, 1]} : vector<8x384xf32> to vector<8x128xf32>
    %53 = arith.addf %51, %52 : vector<8x128xf32>
    %54 = arith.negf %53 : vector<8x128xf32>
    %55 = math.exp %54 : vector<8x128xf32>
    %cst_17 = arith.constant 1.000000e+00 : f32
    %56 = vector.broadcast %cst_17 : f32 to vector<8x128xf32>
    %57 = arith.addf %56, %55 : vector<8x128xf32>
    %58 = arith.divf %56, %57 : vector<8x128xf32>
    %59 = vector.extract_strided_slice %48 {offsets = [0, 128], sizes = [8, 128], strides = [1, 1]} : vector<8x384xf32> to vector<8x128xf32>
    %60 = vector.extract_strided_slice %50 {offsets = [0, 128], sizes = [8, 128], strides = [1, 1]} : vector<8x384xf32> to vector<8x128xf32>
    %61 = arith.addf %59, %60 : vector<8x128xf32>
    %62 = arith.negf %61 : vector<8x128xf32>
    %63 = math.exp %62 : vector<8x128xf32>
    %cst_18 = arith.constant 1.000000e+00 : f32
    %64 = vector.broadcast %cst_18 : f32 to vector<8x128xf32>
    %65 = arith.addf %64, %63 : vector<8x128xf32>
    %66 = arith.divf %64, %65 : vector<8x128xf32>
    %67 = vector.extract_strided_slice %48 {offsets = [0, 256], sizes = [8, 128], strides = [1, 1]} : vector<8x384xf32> to vector<8x128xf32>
    %68 = vector.extract_strided_slice %50 {offsets = [0, 256], sizes = [8, 128], strides = [1, 1]} : vector<8x384xf32> to vector<8x128xf32>
    %69 = vector.broadcast %4 : vector<1x128xf32> to vector<8x128xf32>
    %70 = arith.addf %68, %69 : vector<8x128xf32>
    %71 = arith.mulf %58, %70 : vector<8x128xf32>
    %72 = arith.addf %67, %71 : vector<8x128xf32>
    %73 = math.tanh %72 : vector<8x128xf32>
    %cst_19 = arith.constant 1.000000e+00 : f32
    %74 = vector.broadcast %cst_19 : f32 to vector<8x128xf32>
    %75 = arith.subf %74, %66 : vector<8x128xf32>
    %76 = arith.mulf %75, %73 : vector<8x128xf32>
    %77 = arith.mulf %66, %39 : vector<8x128xf32>
    %78 = arith.addf %76, %77 : vector<8x128xf32>
    %79 = arith.truncf %78 : vector<8x128xf32> to vector<8x128xbf16>
    %80 = arith.index_cast %c1_i32 : i32 to index
    %c0_20 = arith.constant 0 : index
    %c0_21 = arith.constant 0 : index
    %81 = vector.load %arg5[%80, %c0_20, %c0_21] : memref<8x8x128xbf16, #tpu.memory_space<vmem>>, vector<1x8x128xbf16>
    %82 = vector.shape_cast %81 : vector<1x8x128xbf16> to vector<8x128xbf16>
    %83 = vector.shape_cast %79 : vector<8x128xbf16> to vector<1x8x128xbf16>
    tpu.vector_store %arg5[%80, %c0_20, %c0_21], %83 {strides = array<i32>} : memref<8x8x128xbf16, #tpu.memory_space<vmem>>, vector<1x8x128xbf16>,
    %c2_i32 = arith.constant 2 : i32
    %84 = arith.index_cast %c2_i32 : i32 to index
    %c0_22 = arith.constant 0 : index
    %c0_23 = arith.constant 0 : index
    %85 = vector.load %arg2[%84, %c0_22, %c0_23] : memref<8x8x384xbf16, #tpu.memory_space<vmem>>, vector<1x8x384xbf16>
    %86 = vector.shape_cast %85 : vector<1x8x384xbf16> to vector<8x384xbf16>
    %87 = arith.extf %86 : vector<8x384xbf16> to vector<8x384xf32>
    %88 = arith.truncf %78 : vector<8x128xf32> to vector<8x128xbf16>
    %cst_24 = arith.constant dense<0.000000e+00> : vector<8x384xf32>
    %89 = tpu.matmul %88, %3, %cst_24 {dimension_numbers = #tpu.dot_dimension_numbers<[1], [0], [0], [1], [0, 0, 1, 1], [], []>} : vector<8x128xbf16>, vector<128x384xbf16>, vector<8x384xf32> -> vector<8x384xf32>
    %90 = vector.extract_strided_slice %87 {offsets = [0, 0], sizes = [8, 128], strides = [1, 1]} : vector<8x384xf32> to vector<8x128xf32>
    %91 = vector.extract_strided_slice %89 {offsets = [0, 0], sizes = [8, 128], strides = [1, 1]} : vector<8x384xf32> to vector<8x128xf32>
    %92 = arith.addf %90, %91 : vector<8x128xf32>
    %93 = arith.negf %92 : vector<8x128xf32>
    %94 = math.exp %93 : vector<8x128xf32>
    %cst_25 = arith.constant 1.000000e+00 : f32
    %95 = vector.broadcast %cst_25 : f32 to vector<8x128xf32>
    %96 = arith.addf %95, %94 : vector<8x128xf32>
    %97 = arith.divf %95, %96 : vector<8x128xf32>
    %98 = vector.extract_strided_slice %87 {offsets = [0, 128], sizes = [8, 128], strides = [1, 1]} : vector<8x384xf32> to vector<8x128xf32>
    %99 = vector.extract_strided_slice %89 {offsets = [0, 128], sizes = [8, 128], strides = [1, 1]} : vector<8x384xf32> to vector<8x128xf32>
    %100 = arith.addf %98, %99 : vector<8x128xf32>
    %101 = arith.negf %100 : vector<8x128xf32>
    %102 = math.exp %101 : vector<8x128xf32>
    %cst_26 = arith.constant 1.000000e+00 : f32
    %103 = vector.broadcast %cst_26 : f32 to vector<8x128xf32>
    %104 = arith.addf %103, %102 : vector<8x128xf32>
    %105 = arith.divf %103, %104 : vector<8x128xf32>
    %106 = vector.extract_strided_slice %87 {offsets = [0, 256], sizes = [8, 128], strides = [1, 1]} : vector<8x384xf32> to vector<8x128xf32>
    %107 = vector.extract_strided_slice %89 {offsets = [0, 256], sizes = [8, 128], strides = [1, 1]} : vector<8x384xf32> to vector<8x128xf32>
    %108 = vector.broadcast %4 : vector<1x128xf32> to vector<8x128xf32>
    %109 = arith.addf %107, %108 : vector<8x128xf32>
    %110 = arith.mulf %97, %109 : vector<8x128xf32>
    %111 = arith.addf %106, %110 : vector<8x128xf32>
    %112 = math.tanh %111 : vector<8x128xf32>
    %cst_27 = arith.constant 1.000000e+00 : f32
    %113 = vector.broadcast %cst_27 : f32 to vector<8x128xf32>
    %114 = arith.subf %113, %105 : vector<8x128xf32>
    %115 = arith.mulf %114, %112 : vector<8x128xf32>
    %116 = arith.mulf %105, %78 : vector<8x128xf32>
    %117 = arith.addf %115, %116 : vector<8x128xf32>
    %118 = arith.truncf %117 : vector<8x128xf32> to vector<8x128xbf16>
    %119 = arith.index_cast %c2_i32 : i32 to index
    %c0_28 = arith.constant 0 : index
    %c0_29 = arith.constant 0 : index
    %120 = vector.load %arg5[%119, %c0_28, %c0_29] : memref<8x8x128xbf16, #tpu.memory_space<vmem>>, vector<1x8x128xbf16>
    %121 = vector.shape_cast %120 : vector<1x8x128xbf16> to vector<8x128xbf16>
    %122 = vector.shape_cast %118 : vector<8x128xbf16> to vector<1x8x128xbf16>
    tpu.vector_store %arg5[%119, %c0_28, %c0_29], %122 {strides = array<i32>} : memref<8x8x128xbf16, #tpu.memory_space<vmem>>, vector<1x8x128xbf16>,
    %c3_i32 = arith.constant 3 : i32
    %123 = arith.index_cast %c3_i32 : i32 to index
    %c0_30 = arith.constant 0 : index
    %c0_31 = arith.constant 0 : index
    %124 = vector.load %arg2[%123, %c0_30, %c0_31] : memref<8x8x384xbf16, #tpu.memory_space<vmem>>, vector<1x8x384xbf16>
    %125 = vector.shape_cast %124 : vector<1x8x384xbf16> to vector<8x384xbf16>
    %126 = arith.extf %125 : vector<8x384xbf16> to vector<8x384xf32>
    %127 = arith.truncf %117 : vector<8x128xf32> to vector<8x128xbf16>
    %cst_32 = arith.constant dense<0.000000e+00> : vector<8x384xf32>
    %128 = tpu.matmul %127, %3, %cst_32 {dimension_numbers = #tpu.dot_dimension_numbers<[1], [0], [0], [1], [0, 0, 1, 1], [], []>} : vector<8x128xbf16>, vector<128x384xbf16>, vector<8x384xf32> -> vector<8x384xf32>
    %129 = vector.extract_strided_slice %126 {offsets = [0, 0], sizes = [8, 128], strides = [1, 1]} : vector<8x384xf32> to vector<8x128xf32>
    %130 = vector.extract_strided_slice %128 {offsets = [0, 0], sizes = [8, 128], strides = [1, 1]} : vector<8x384xf32> to vector<8x128xf32>
    %131 = arith.addf %129, %130 : vector<8x128xf32>
    %132 = arith.negf %131 : vector<8x128xf32>
    %133 = math.exp %132 : vector<8x128xf32>
    %cst_33 = arith.constant 1.000000e+00 : f32
    %134 = vector.broadcast %cst_33 : f32 to vector<8x128xf32>
    %135 = arith.addf %134, %133 : vector<8x128xf32>
    %136 = arith.divf %134, %135 : vector<8x128xf32>
    %137 = vector.extract_strided_slice %126 {offsets = [0, 128], sizes = [8, 128], strides = [1, 1]} : vector<8x384xf32> to vector<8x128xf32>
    %138 = vector.extract_strided_slice %128 {offsets = [0, 128], sizes = [8, 128], strides = [1, 1]} : vector<8x384xf32> to vector<8x128xf32>
    %139 = arith.addf %137, %138 : vector<8x128xf32>
    %140 = arith.negf %139 : vector<8x128xf32>
    %141 = math.exp %140 : vector<8x128xf32>
    %cst_34 = arith.constant 1.000000e+00 : f32
    %142 = vector.broadcast %cst_34 : f32 to vector<8x128xf32>
    %143 = arith.addf %142, %141 : vector<8x128xf32>
    %144 = arith.divf %142, %143 : vector<8x128xf32>
    %145 = vector.extract_strided_slice %126 {offsets = [0, 256], sizes = [8, 128], strides = [1, 1]} : vector<8x384xf32> to vector<8x128xf32>
    %146 = vector.extract_strided_slice %128 {offsets = [0, 256], sizes = [8, 128], strides = [1, 1]} : vector<8x384xf32> to vector<8x128xf32>
    %147 = vector.broadcast %4 : vector<1x128xf32> to vector<8x128xf32>
    %148 = arith.addf %146, %147 : vector<8x128xf32>
    %149 = arith.mulf %136, %148 : vector<8x128xf32>
    %150 = arith.addf %145, %149 : vector<8x128xf32>
    %151 = math.tanh %150 : vector<8x128xf32>
    %cst_35 = arith.constant 1.000000e+00 : f32
    %152 = vector.broadcast %cst_35 : f32 to vector<8x128xf32>
    %153 = arith.subf %152, %144 : vector<8x128xf32>
    %154 = arith.mulf %153, %151 : vector<8x128xf32>
    %155 = arith.mulf %144, %117 : vector<8x128xf32>
    %156 = arith.addf %154, %155 : vector<8x128xf32>
    %157 = arith.truncf %156 : vector<8x128xf32> to vector<8x128xbf16>
    %158 = arith.index_cast %c3_i32 : i32 to index
    %c0_36 = arith.constant 0 : index
    %c0_37 = arith.constant 0 : index
    %159 = vector.load %arg5[%158, %c0_36, %c0_37] : memref<8x8x128xbf16, #tpu.memory_space<vmem>>, vector<1x8x128xbf16>
    %160 = vector.shape_cast %159 : vector<1x8x128xbf16> to vector<8x128xbf16>
    %161 = vector.shape_cast %157 : vector<8x128xbf16> to vector<1x8x128xbf16>
    tpu.vector_store %arg5[%158, %c0_36, %c0_37], %161 {strides = array<i32>} : memref<8x8x128xbf16, #tpu.memory_space<vmem>>, vector<1x8x128xbf16>,
    %c4_i32 = arith.constant 4 : i32
    %162 = arith.index_cast %c4_i32 : i32 to index
    %c0_38 = arith.constant 0 : index
    %c0_39 = arith.constant 0 : index
    %163 = vector.load %arg2[%162, %c0_38, %c0_39] : memref<8x8x384xbf16, #tpu.memory_space<vmem>>, vector<1x8x384xbf16>
    %164 = vector.shape_cast %163 : vector<1x8x384xbf16> to vector<8x384xbf16>
    %165 = arith.extf %164 : vector<8x384xbf16> to vector<8x384xf32>
    %166 = arith.truncf %156 : vector<8x128xf32> to vector<8x128xbf16>
    %cst_40 = arith.constant dense<0.000000e+00> : vector<8x384xf32>
    %167 = tpu.matmul %166, %3, %cst_40 {dimension_numbers = #tpu.dot_dimension_numbers<[1], [0], [0], [1], [0, 0, 1, 1], [], []>} : vector<8x128xbf16>, vector<128x384xbf16>, vector<8x384xf32> -> vector<8x384xf32>
    %168 = vector.extract_strided_slice %165 {offsets = [0, 0], sizes = [8, 128], strides = [1, 1]} : vector<8x384xf32> to vector<8x128xf32>
    %169 = vector.extract_strided_slice %167 {offsets = [0, 0], sizes = [8, 128], strides = [1, 1]} : vector<8x384xf32> to vector<8x128xf32>
    %170 = arith.addf %168, %169 : vector<8x128xf32>
    %171 = arith.negf %170 : vector<8x128xf32>
    %172 = math.exp %171 : vector<8x128xf32>
    %cst_41 = arith.constant 1.000000e+00 : f32
    %173 = vector.broadcast %cst_41 : f32 to vector<8x128xf32>
    %174 = arith.addf %173, %172 : vector<8x128xf32>
    %175 = arith.divf %173, %174 : vector<8x128xf32>
    %176 = vector.extract_strided_slice %165 {offsets = [0, 128], sizes = [8, 128], strides = [1, 1]} : vector<8x384xf32> to vector<8x128xf32>
    %177 = vector.extract_strided_slice %167 {offsets = [0, 128], sizes = [8, 128], strides = [1, 1]} : vector<8x384xf32> to vector<8x128xf32>
    %178 = arith.addf %176, %177 : vector<8x128xf32>
    %179 = arith.negf %178 : vector<8x128xf32>
    %180 = math.exp %179 : vector<8x128xf32>
    %cst_42 = arith.constant 1.000000e+00 : f32
    %181 = vector.broadcast %cst_42 : f32 to vector<8x128xf32>
    %182 = arith.addf %181, %180 : vector<8x128xf32>
    %183 = arith.divf %181, %182 : vector<8x128xf32>
    %184 = vector.extract_strided_slice %165 {offsets = [0, 256], sizes = [8, 128], strides = [1, 1]} : vector<8x384xf32> to vector<8x128xf32>
    %185 = vector.extract_strided_slice %167 {offsets = [0, 256], sizes = [8, 128], strides = [1, 1]} : vector<8x384xf32> to vector<8x128xf32>
    %186 = vector.broadcast %4 : vector<1x128xf32> to vector<8x128xf32>
    %187 = arith.addf %185, %186 : vector<8x128xf32>
    %188 = arith.mulf %175, %187 : vector<8x128xf32>
    %189 = arith.addf %184, %188 : vector<8x128xf32>
    %190 = math.tanh %189 : vector<8x128xf32>
    %cst_43 = arith.constant 1.000000e+00 : f32
    %191 = vector.broadcast %cst_43 : f32 to vector<8x128xf32>
    %192 = arith.subf %191, %183 : vector<8x128xf32>
    %193 = arith.mulf %192, %190 : vector<8x128xf32>
    %194 = arith.mulf %183, %156 : vector<8x128xf32>
    %195 = arith.addf %193, %194 : vector<8x128xf32>
    %196 = arith.truncf %195 : vector<8x128xf32> to vector<8x128xbf16>
    %197 = arith.index_cast %c4_i32 : i32 to index
    %c0_44 = arith.constant 0 : index
    %c0_45 = arith.constant 0 : index
    %198 = vector.load %arg5[%197, %c0_44, %c0_45] : memref<8x8x128xbf16, #tpu.memory_space<vmem>>, vector<1x8x128xbf16>
    %199 = vector.shape_cast %198 : vector<1x8x128xbf16> to vector<8x128xbf16>
    %200 = vector.shape_cast %196 : vector<8x128xbf16> to vector<1x8x128xbf16>
    tpu.vector_store %arg5[%197, %c0_44, %c0_45], %200 {strides = array<i32>} : memref<8x8x128xbf16, #tpu.memory_space<vmem>>, vector<1x8x128xbf16>,
    %c5_i32 = arith.constant 5 : i32
    %201 = arith.index_cast %c5_i32 : i32 to index
    %c0_46 = arith.constant 0 : index
    %c0_47 = arith.constant 0 : index
    %202 = vector.load %arg2[%201, %c0_46, %c0_47] : memref<8x8x384xbf16, #tpu.memory_space<vmem>>, vector<1x8x384xbf16>
    %203 = vector.shape_cast %202 : vector<1x8x384xbf16> to vector<8x384xbf16>
    %204 = arith.extf %203 : vector<8x384xbf16> to vector<8x384xf32>
    %205 = arith.truncf %195 : vector<8x128xf32> to vector<8x128xbf16>
    %cst_48 = arith.constant dense<0.000000e+00> : vector<8x384xf32>
    %206 = tpu.matmul %205, %3, %cst_48 {dimension_numbers = #tpu.dot_dimension_numbers<[1], [0], [0], [1], [0, 0, 1, 1], [], []>} : vector<8x128xbf16>, vector<128x384xbf16>, vector<8x384xf32> -> vector<8x384xf32>
    %207 = vector.extract_strided_slice %204 {offsets = [0, 0], sizes = [8, 128], strides = [1, 1]} : vector<8x384xf32> to vector<8x128xf32>
    %208 = vector.extract_strided_slice %206 {offsets = [0, 0], sizes = [8, 128], strides = [1, 1]} : vector<8x384xf32> to vector<8x128xf32>
    %209 = arith.addf %207, %208 : vector<8x128xf32>
    %210 = arith.negf %209 : vector<8x128xf32>
    %211 = math.exp %210 : vector<8x128xf32>
    %cst_49 = arith.constant 1.000000e+00 : f32
    %212 = vector.broadcast %cst_49 : f32 to vector<8x128xf32>
    %213 = arith.addf %212, %211 : vector<8x128xf32>
    %214 = arith.divf %212, %213 : vector<8x128xf32>
    %215 = vector.extract_strided_slice %204 {offsets = [0, 128], sizes = [8, 128], strides = [1, 1]} : vector<8x384xf32> to vector<8x128xf32>
    %216 = vector.extract_strided_slice %206 {offsets = [0, 128], sizes = [8, 128], strides = [1, 1]} : vector<8x384xf32> to vector<8x128xf32>
    %217 = arith.addf %215, %216 : vector<8x128xf32>
    %218 = arith.negf %217 : vector<8x128xf32>
    %219 = math.exp %218 : vector<8x128xf32>
    %cst_50 = arith.constant 1.000000e+00 : f32
    %220 = vector.broadcast %cst_50 : f32 to vector<8x128xf32>
    %221 = arith.addf %220, %219 : vector<8x128xf32>
    %222 = arith.divf %220, %221 : vector<8x128xf32>
    %223 = vector.extract_strided_slice %204 {offsets = [0, 256], sizes = [8, 128], strides = [1, 1]} : vector<8x384xf32> to vector<8x128xf32>
    %224 = vector.extract_strided_slice %206 {offsets = [0, 256], sizes = [8, 128], strides = [1, 1]} : vector<8x384xf32> to vector<8x128xf32>
    %225 = vector.broadcast %4 : vector<1x128xf32> to vector<8x128xf32>
    %226 = arith.addf %224, %225 : vector<8x128xf32>
    %227 = arith.mulf %214, %226 : vector<8x128xf32>
    %228 = arith.addf %223, %227 : vector<8x128xf32>
    %229 = math.tanh %228 : vector<8x128xf32>
    %cst_51 = arith.constant 1.000000e+00 : f32
    %230 = vector.broadcast %cst_51 : f32 to vector<8x128xf32>
    %231 = arith.subf %230, %222 : vector<8x128xf32>
    %232 = arith.mulf %231, %229 : vector<8x128xf32>
    %233 = arith.mulf %222, %195 : vector<8x128xf32>
    %234 = arith.addf %232, %233 : vector<8x128xf32>
    %235 = arith.truncf %234 : vector<8x128xf32> to vector<8x128xbf16>
    %236 = arith.index_cast %c5_i32 : i32 to index
    %c0_52 = arith.constant 0 : index
    %c0_53 = arith.constant 0 : index
    %237 = vector.load %arg5[%236, %c0_52, %c0_53] : memref<8x8x128xbf16, #tpu.memory_space<vmem>>, vector<1x8x128xbf16>
    %238 = vector.shape_cast %237 : vector<1x8x128xbf16> to vector<8x128xbf16>
    %239 = vector.shape_cast %235 : vector<8x128xbf16> to vector<1x8x128xbf16>
    tpu.vector_store %arg5[%236, %c0_52, %c0_53], %239 {strides = array<i32>} : memref<8x8x128xbf16, #tpu.memory_space<vmem>>, vector<1x8x128xbf16>,
    %c6_i32 = arith.constant 6 : i32
    %240 = arith.index_cast %c6_i32 : i32 to index
    %c0_54 = arith.constant 0 : index
    %c0_55 = arith.constant 0 : index
    %241 = vector.load %arg2[%240, %c0_54, %c0_55] : memref<8x8x384xbf16, #tpu.memory_space<vmem>>, vector<1x8x384xbf16>
    %242 = vector.shape_cast %241 : vector<1x8x384xbf16> to vector<8x384xbf16>
    %243 = arith.extf %242 : vector<8x384xbf16> to vector<8x384xf32>
    %244 = arith.truncf %234 : vector<8x128xf32> to vector<8x128xbf16>
    %cst_56 = arith.constant dense<0.000000e+00> : vector<8x384xf32>
    %245 = tpu.matmul %244, %3, %cst_56 {dimension_numbers = #tpu.dot_dimension_numbers<[1], [0], [0], [1], [0, 0, 1, 1], [], []>} : vector<8x128xbf16>, vector<128x384xbf16>, vector<8x384xf32> -> vector<8x384xf32>
    %246 = vector.extract_strided_slice %243 {offsets = [0, 0], sizes = [8, 128], strides = [1, 1]} : vector<8x384xf32> to vector<8x128xf32>
    %247 = vector.extract_strided_slice %245 {offsets = [0, 0], sizes = [8, 128], strides = [1, 1]} : vector<8x384xf32> to vector<8x128xf32>
    %248 = arith.addf %246, %247 : vector<8x128xf32>
    %249 = arith.negf %248 : vector<8x128xf32>
    %250 = math.exp %249 : vector<8x128xf32>
    %cst_57 = arith.constant 1.000000e+00 : f32
    %251 = vector.broadcast %cst_57 : f32 to vector<8x128xf32>
    %252 = arith.addf %251, %250 : vector<8x128xf32>
    %253 = arith.divf %251, %252 : vector<8x128xf32>
    %254 = vector.extract_strided_slice %243 {offsets = [0, 128], sizes = [8, 128], strides = [1, 1]} : vector<8x384xf32> to vector<8x128xf32>
    %255 = vector.extract_strided_slice %245 {offsets = [0, 128], sizes = [8, 128], strides = [1, 1]} : vector<8x384xf32> to vector<8x128xf32>
    %256 = arith.addf %254, %255 : vector<8x128xf32>
    %257 = arith.negf %256 : vector<8x128xf32>
    %258 = math.exp %257 : vector<8x128xf32>
    %cst_58 = arith.constant 1.000000e+00 : f32
    %259 = vector.broadcast %cst_58 : f32 to vector<8x128xf32>
    %260 = arith.addf %259, %258 : vector<8x128xf32>
    %261 = arith.divf %259, %260 : vector<8x128xf32>
    %262 = vector.extract_strided_slice %243 {offsets = [0, 256], sizes = [8, 128], strides = [1, 1]} : vector<8x384xf32> to vector<8x128xf32>
    %263 = vector.extract_strided_slice %245 {offsets = [0, 256], sizes = [8, 128], strides = [1, 1]} : vector<8x384xf32> to vector<8x128xf32>
    %264 = vector.broadcast %4 : vector<1x128xf32> to vector<8x128xf32>
    %265 = arith.addf %263, %264 : vector<8x128xf32>
    %266 = arith.mulf %253, %265 : vector<8x128xf32>
    %267 = arith.addf %262, %266 : vector<8x128xf32>
    %268 = math.tanh %267 : vector<8x128xf32>
    %cst_59 = arith.constant 1.000000e+00 : f32
    %269 = vector.broadcast %cst_59 : f32 to vector<8x128xf32>
    %270 = arith.subf %269, %261 : vector<8x128xf32>
    %271 = arith.mulf %270, %268 : vector<8x128xf32>
    %272 = arith.mulf %261, %234 : vector<8x128xf32>
    %273 = arith.addf %271, %272 : vector<8x128xf32>
    %274 = arith.truncf %273 : vector<8x128xf32> to vector<8x128xbf16>
    %275 = arith.index_cast %c6_i32 : i32 to index
    %c0_60 = arith.constant 0 : index
    %c0_61 = arith.constant 0 : index
    %276 = vector.load %arg5[%275, %c0_60, %c0_61] : memref<8x8x128xbf16, #tpu.memory_space<vmem>>, vector<1x8x128xbf16>
    %277 = vector.shape_cast %276 : vector<1x8x128xbf16> to vector<8x128xbf16>
    %278 = vector.shape_cast %274 : vector<8x128xbf16> to vector<1x8x128xbf16>
    tpu.vector_store %arg5[%275, %c0_60, %c0_61], %278 {strides = array<i32>} : memref<8x8x128xbf16, #tpu.memory_space<vmem>>, vector<1x8x128xbf16>,
    %c7_i32 = arith.constant 7 : i32
    %279 = arith.index_cast %c7_i32 : i32 to index
    %c0_62 = arith.constant 0 : index
    %c0_63 = arith.constant 0 : index
    %280 = vector.load %arg2[%279, %c0_62, %c0_63] : memref<8x8x384xbf16, #tpu.memory_space<vmem>>, vector<1x8x384xbf16>
    %281 = vector.shape_cast %280 : vector<1x8x384xbf16> to vector<8x384xbf16>
    %282 = arith.extf %281 : vector<8x384xbf16> to vector<8x384xf32>
    %283 = arith.truncf %273 : vector<8x128xf32> to vector<8x128xbf16>
    %cst_64 = arith.constant dense<0.000000e+00> : vector<8x384xf32>
    %284 = tpu.matmul %283, %3, %cst_64 {dimension_numbers = #tpu.dot_dimension_numbers<[1], [0], [0], [1], [0, 0, 1, 1], [], []>} : vector<8x128xbf16>, vector<128x384xbf16>, vector<8x384xf32> -> vector<8x384xf32>
    %285 = vector.extract_strided_slice %282 {offsets = [0, 0], sizes = [8, 128], strides = [1, 1]} : vector<8x384xf32> to vector<8x128xf32>
    %286 = vector.extract_strided_slice %284 {offsets = [0, 0], sizes = [8, 128], strides = [1, 1]} : vector<8x384xf32> to vector<8x128xf32>
    %287 = arith.addf %285, %286 : vector<8x128xf32>
    %288 = arith.negf %287 : vector<8x128xf32>
    %289 = math.exp %288 : vector<8x128xf32>
    %cst_65 = arith.constant 1.000000e+00 : f32
    %290 = vector.broadcast %cst_65 : f32 to vector<8x128xf32>
    %291 = arith.addf %290, %289 : vector<8x128xf32>
    %292 = arith.divf %290, %291 : vector<8x128xf32>
    %293 = vector.extract_strided_slice %282 {offsets = [0, 128], sizes = [8, 128], strides = [1, 1]} : vector<8x384xf32> to vector<8x128xf32>
    %294 = vector.extract_strided_slice %284 {offsets = [0, 128], sizes = [8, 128], strides = [1, 1]} : vector<8x384xf32> to vector<8x128xf32>
    %295 = arith.addf %293, %294 : vector<8x128xf32>
    %296 = arith.negf %295 : vector<8x128xf32>
    %297 = math.exp %296 : vector<8x128xf32>
    %cst_66 = arith.constant 1.000000e+00 : f32
    %298 = vector.broadcast %cst_66 : f32 to vector<8x128xf32>
    %299 = arith.addf %298, %297 : vector<8x128xf32>
    %300 = arith.divf %298, %299 : vector<8x128xf32>
    %301 = vector.extract_strided_slice %282 {offsets = [0, 256], sizes = [8, 128], strides = [1, 1]} : vector<8x384xf32> to vector<8x128xf32>
    %302 = vector.extract_strided_slice %284 {offsets = [0, 256], sizes = [8, 128], strides = [1, 1]} : vector<8x384xf32> to vector<8x128xf32>
    %303 = vector.broadcast %4 : vector<1x128xf32> to vector<8x128xf32>
    %304 = arith.addf %302, %303 : vector<8x128xf32>
    %305 = arith.mulf %292, %304 : vector<8x128xf32>
    %306 = arith.addf %301, %305 : vector<8x128xf32>
    %307 = math.tanh %306 : vector<8x128xf32>
    %cst_67 = arith.constant 1.000000e+00 : f32
    %308 = vector.broadcast %cst_67 : f32 to vector<8x128xf32>
    %309 = arith.subf %308, %300 : vector<8x128xf32>
    %310 = arith.mulf %309, %307 : vector<8x128xf32>
    %311 = arith.mulf %300, %273 : vector<8x128xf32>
    %312 = arith.addf %310, %311 : vector<8x128xf32>
    %313 = arith.truncf %312 : vector<8x128xf32> to vector<8x128xbf16>
    %314 = arith.index_cast %c7_i32 : i32 to index
    %c0_68 = arith.constant 0 : index
    %c0_69 = arith.constant 0 : index
    %315 = vector.load %arg5[%314, %c0_68, %c0_69] : memref<8x8x128xbf16, #tpu.memory_space<vmem>>, vector<1x8x128xbf16>
    %316 = vector.shape_cast %315 : vector<1x8x128xbf16> to vector<8x128xbf16>
    %317 = vector.shape_cast %313 : vector<8x128xbf16> to vector<1x8x128xbf16>
    tpu.vector_store %arg5[%314, %c0_68, %c0_69], %317 {strides = array<i32>} : memref<8x8x128xbf16, #tpu.memory_space<vmem>>, vector<1x8x128xbf16>,
    %c8_i32 = arith.constant 8 : i32
    %c0_70 = arith.constant 0 : index
    %c0_71 = arith.constant 0 : index
    %318 = vector.load %arg7[%c0_70, %c0_71] : memref<8x128xf32, #tpu.memory_space<vmem>>, vector<8x128xf32>
    tpu.vector_store %arg7[%c0_70, %c0_71], %312 {strides = array<i32>} : memref<8x128xf32, #tpu.memory_space<vmem>>, vector<8x128xf32>,
    %c0_i32_72 = arith.constant 0 : i32
    %319 = arith.cmpi eq, %arg1, %c0_i32_72 : i32
    %320 = arith.extui %319 : i1 to i32
    %c0_i32_73 = arith.constant 0 : i32
    %321 = arith.cmpi ne, %320, %c0_i32_73 : i32
    scf.if %321 {
      %c0_74 = arith.constant 0 : index
      %c0_75 = arith.constant 0 : index
      %322 = vector.load %arg6[%c0_74, %c0_75] : memref<8x128xf32, #tpu.memory_space<vmem>>, vector<8x128xf32>
      tpu.vector_store %arg6[%c0_74, %c0_75], %312 {strides = array<i32>} : memref<8x128xf32, #tpu.memory_space<vmem>>, vector<8x128xf32>,
    } else {
    }
    return
  }
  func.func @transform_0(%arg0: i32, %arg1: i32) -> (i32, i32, i32) {
    %c0_i32 = arith.constant 0 : i32
    %c0_i32_0 = arith.constant 0 : i32
    return %arg1, %arg0, %c0_i32 : i32, i32, i32
  }
  func.func @transform_1(%arg0: i32, %arg1: i32) -> (i32, i32) {
    %c0_i32 = arith.constant 0 : i32
    %c0_i32_0 = arith.constant 0 : i32
    %c0_i32_1 = arith.constant 0 : i32
    return %c0_i32, %c0_i32_0 : i32, i32
  }
  func.func @transform_2(%arg0: i32, %arg1: i32) -> (i32, i32) {
    %c0_i32 = arith.constant 0 : i32
    %c0_i32_0 = arith.constant 0 : i32
    %c0_i32_1 = arith.constant 0 : i32
    return %c0_i32, %c0_i32_0 : i32, i32
  }
  func.func @transform_3(%arg0: i32, %arg1: i32) -> (i32, i32, i32) {
    %c0_i32 = arith.constant 0 : i32
    %c0_i32_0 = arith.constant 0 : i32
    return %arg1, %arg0, %c0_i32 : i32, i32, i32
  }
  func.func @transform_4(%arg0: i32, %arg1: i32) -> (i32, i32) {
    %c0_i32 = arith.constant 0 : i32
    %c0_i32_0 = arith.constant 0 : i32
    return %arg0, %c0_i32 : i32, i32
  }
}

</mosaic_0001>

<llo_original>
// kernel: encoder_forward.2
$region0: #{encoder_forward.2}
  #allocation0 [shape = 'u32[]', space=smem, size = 0x4, offset = 0x4, fixed_abs, tag = 'smem constant byte address 0x4 - core index']
  #allocation1 [shape = 'u32[144,128]{1,0:T(1,128)}', space=vmem, size = 0x12000, scoped, tag = 'internal scratch']
  #allocation2 [shape = 'f32[8,128]{1,0:T(8,128)}', space=vmem, size = 0x1000, scoped, tag = 'scratch operand']
  %s0 = inlined_call_operand.vmem [shape: bf16[8,8,384], index: 0, kind: input, shape index: {}]
  %s1 = inlined_call_operand.vmem [shape: bf16[128,384], index: 1, kind: input, shape index: {}]
  %s2 = inlined_call_operand.vmem [shape: f32[1,128], index: 2, kind: input, shape index: {}]
  %s3 = inlined_call_operand.vmem [shape: bf16[8,8,128], index: 3, kind: output, shape index: {0}]
  %s4 = inlined_call_operand.vmem [shape: f32[8,128], index: 4, kind: output, shape index: {1}]
  %5 = xla_tuple %s3, %s4
  %s6 = sld [smem:[#allocation0]]
  $region38: #{encoder_forward.2} parent=0
    _
  %s8 = ssub.s32 1, %s6
  %s9 = scalar_select 0, %s8, %s6
  // Predicated region
  $region2: #{encoder_forward.2} parent=0 // pred_check
    _
  $region3: #{encoder_forward.2} parent=0 // pred_check_branch
    %11 = sbr.rel (0) target = $region5
  $region4: #{encoder_forward.2} parent=0 // pred_region
    _
  $region5: #{encoder_forward.2} parent=0 // pred_fallthru
    _
  // Predicated region
  $region6: #{encoder_forward.2} parent=0 // pred_check
    _
  $region7: #{encoder_forward.2} parent=0 // pred_check_branch
    %13 = sbr.rel (0) target = $region9
  $region8: #{encoder_forward.2} parent=0 // pred_region
    _
  $region9: #{encoder_forward.2} parent=0 // pred_fallthru
    _
  // Predicated region
  $region10: #{encoder_forward.2} parent=0 // pred_check
    _
  $region11: #{encoder_forward.2} parent=0 // pred_check_branch
    %15 = sbr.rel (0) target = $region13
  $region12: #{encoder_forward.2} parent=0 // pred_region
    _
  $region13: #{encoder_forward.2} parent=0 // pred_fallthru
    _
  %p17 = scmp.eq.s32.totalorder 0, 0
  // Predicated region
  $region14: #{encoder_forward.2} parent=0 // pred_check
    %p18 = pneg %p17
  $region15: #{encoder_forward.2} parent=0 // pred_check_branch
    %20 = sbr.rel (%p18) target = $region17
  $region16: #{encoder_forward.2} parent=0 // pred_region
    %21 = vst [vmem:[#allocation2] sm:$0xff] 0.0
  $region17: #{encoder_forward.2} parent=0 // pred_fallthru
    _
  %v22 = vld [vmem:[%s1] sm:$0xff]
  %v23 = vld [vmem:[%s1 + $0x8] sm:$0xf]
  %v24 = vld [vmem:[%s1 + $0xc] sm:$0xff]
  %v25 = vld [vmem:[%s1 + $0x14] sm:$0xf]
  %v26 = vld [vmem:[%s1 + $0x18] sm:$0xff]
  %v27 = vld [vmem:[%s1 + $0x20] sm:$0xf]
  %v28 = vld [vmem:[%s1 + $0x24] sm:$0xff]
  %v29 = vld [vmem:[%s1 + $0x2c] sm:$0xf]
  %v30 = vld [vmem:[%s1 + $0x30] sm:$0xff]
  %v31 = vld [vmem:[%s1 + $0x38] sm:$0xf]
  %v32 = vld [vmem:[%s1 + $0x3c] sm:$0xff]
  %v33 = vld [vmem:[%s1 + $0x44] sm:$0xf]
  %v34 = vld [vmem:[%s1 + $0x48] sm:$0xff]
  %v35 = vld [vmem:[%s1 + $0x50] sm:$0xf]
  %v36 = vld [vmem:[%s1 + $0x54] sm:$0xff]
  %v37 = vld [vmem:[%s1 + $0x5c] sm:$0xf]
  %v38 = vld [vmem:[%s1 + $0x60] sm:$0xff]
  %v39 = vld [vmem:[%s1 + $0x68] sm:$0xf]
  %v40 = vld [vmem:[%s1 + $0x6c] sm:$0xff]
  %v41 = vld [vmem:[%s1 + $0x74] sm:$0xf]
  %v42 = vld [vmem:[%s1 + $0x78] sm:$0xff]
  %v43 = vld [vmem:[%s1 + $0x80] sm:$0xf]
  %v44 = vld [vmem:[%s1 + $0x84] sm:$0xff]
  %v45 = vld [vmem:[%s1 + $0x8c] sm:$0xf]
  %v46 = vld [vmem:[%s1 + $0x90] sm:$0xff]
  %v47 = vld [vmem:[%s1 + $0x98] sm:$0xf]
  %v48 = vld [vmem:[%s1 + $0x9c] sm:$0xff]
  %v49 = vld [vmem:[%s1 + $0xa4] sm:$0xf]
  %v50 = vld [vmem:[%s1 + $0xa8] sm:$0xff]
  %v51 = vld [vmem:[%s1 + $0xb0] sm:$0xf]
  %v52 = vld [vmem:[%s1 + $0xb4] sm:$0xff]
  %v53 = vld [vmem:[%s1 + $0xbc] sm:$0xf]
  %v54 = vld [vmem:[%s2] sm:$0x1]
  %v55 = vld [vmem:[#allocation2] sm:$0xff]
  %v56 = vld [vmem:[%s0] sm:$0xff]
  %v57 = vld [vmem:[%s0 + $0x8] sm:$0xf]
  %v58 = vunpack.c.l.bf16 %v56
  %v59 = vunpack.c.h.bf16 %v56
  %v60 = vunpack.c.l.bf16 %v57
  %v61 = vpack.c.bf16 %v55, %v55
  %v94 = vunpack.c.l.b16 %v22
  %v95 = vunpack.c.h.b16 %v22
  %v96 = vunpack.c.l.b16 %v23
  %v97 = vunpack.c.l.b16 %v24
  %v98 = vunpack.c.h.b16 %v24
  %v99 = vunpack.c.l.b16 %v25
  %v100 = vunpack.c.l.b16 %v26
  %v101 = vunpack.c.h.b16 %v26
  %v102 = vunpack.c.l.b16 %v27
  %v103 = vunpack.c.l.b16 %v28
  %v104 = vunpack.c.h.b16 %v28
  %v105 = vunpack.c.l.b16 %v29
  %v106 = vunpack.c.l.b16 %v30
  %v107 = vunpack.c.h.b16 %v30
  %v108 = vunpack.c.l.b16 %v31
  %v109 = vunpack.c.l.b16 %v32
  %v110 = vunpack.c.h.b16 %v32
  %v111 = vunpack.c.l.b16 %v33
  %v112 = vunpack.c.l.b16 %v34
  %v113 = vunpack.c.h.b16 %v34
  %v114 = vunpack.c.l.b16 %v35
  %v115 = vunpack.c.l.b16 %v36
  %v116 = vunpack.c.h.b16 %v36
  %v117 = vunpack.c.l.b16 %v37
  %v118 = vunpack.c.l.b16 %v38
  %v119 = vunpack.c.h.b16 %v38
  %v120 = vunpack.c.l.b16 %v39
  %v121 = vunpack.c.l.b16 %v40
  %v122 = vunpack.c.h.b16 %v40
  %v123 = vunpack.c.l.b16 %v41
  %v124 = vunpack.c.l.b16 %v42
  %v125 = vunpack.c.h.b16 %v42
  %v126 = vunpack.c.l.b16 %v43
  %v127 = vunpack.c.l.b16 %v44
  %v128 = vunpack.c.h.b16 %v44
  %v129 = vunpack.c.l.b16 %v45
  %v130 = vunpack.c.l.b16 %v46
  %v131 = vunpack.c.h.b16 %v46
  %v132 = vunpack.c.l.b16 %v47
  %v133 = vunpack.c.l.b16 %v48
  %v134 = vunpack.c.h.b16 %v48
  %v135 = vunpack.c.l.b16 %v49
  %v136 = vunpack.c.l.b16 %v50
  %v137 = vunpack.c.h.b16 %v50
  %v138 = vunpack.c.l.b16 %v51
  %v139 = vunpack.c.l.b16 %v52
  %v140 = vunpack.c.h.b16 %v52
  %v141 = vunpack.c.l.b16 %v53
  %v142 = vpack.c.b16 %v97, %v94
  %v143 = vpack.c.b16 %v98, %v95
  %v144 = vpack.c.b16 %v99, %v96
  %v145 = vpack.c.b16 %v103, %v100
  %v146 = vpack.c.b16 %v104, %v101
  %v147 = vpack.c.b16 %v105, %v102
  %v148 = vpack.c.b16 %v109, %v106
  %v149 = vpack.c.b16 %v110, %v107
  %v150 = vpack.c.b16 %v111, %v108
  %v151 = vpack.c.b16 %v115, %v112
  %v152 = vpack.c.b16 %v116, %v113
  %v153 = vpack.c.b16 %v117, %v114
  %v154 = vpack.c.b16 %v121, %v118
  %v155 = vpack.c.b16 %v122, %v119
  %v156 = vpack.c.b16 %v123, %v120
  %v157 = vpack.c.b16 %v127, %v124
  %v158 = vpack.c.b16 %v128, %v125
  %v159 = vpack.c.b16 %v129, %v126
  %v160 = vpack.c.b16 %v133, %v130
  %v161 = vpack.c.b16 %v134, %v131
  %v162 = vpack.c.b16 %v135, %v132
  %v163 = vpack.c.b16 %v139, %v136
  %v164 = vpack.c.b16 %v140, %v137
  %v165 = vpack.c.b16 %v141, %v138
  %190 = vmatprep.subr.bf16.mxu0 %v143
  %191 = vmatpush1.bf16.msra.mxu0 %v142
  %192 = vmatprep.subr.bf16.mxu0 %v146
  %193 = vmatpush1.bf16.msra.mxu0 %v145
  %194 = vmatprep.subr.bf16.mxu0 %v149
  %195 = vmatpush1.bf16.msra.mxu0 %v148
  %196 = vmatprep.subr.bf16.mxu0 %v152
  %197 = vmatpush1.bf16.msra.mxu0 %v151
  %198 = vmatprep.subr.bf16.mxu0 %v155
  %199 = vmatpush1.bf16.msra.mxu0 %v154
  %200 = vmatprep.subr.bf16.mxu0 %v158
  %201 = vmatpush1.bf16.msra.mxu0 %v157
  %202 = vmatprep.subr.bf16.mxu0 %v161
  %203 = vmatpush1.bf16.msra.mxu0 %v160
  %204 = vmatprep.subr.bf16.mxu0 %v164
  %205 = vmatpush1.bf16.msra.mxu0 %v163
  %206 = vmatprep.subr.bf16.mxu0 0
  %207 = vmatpush1.bf16.msra.mxu0 0
  %208 = vmatprep.subr.bf16.mxu0 0
  %209 = vmatpush1.bf16.msra.mxu0 0
  %210 = vmatprep.subr.bf16.mxu0 0
  %211 = vmatpush1.bf16.msra.mxu0 0
  %212 = vmatprep.subr.bf16.mxu0 0
  %213 = vmatpush1.bf16.msra.mxu0 0
  %214 = vmatprep.subr.bf16.mxu0 0
  %215 = vmatpush1.bf16.msra.mxu0 0
  %216 = vmatprep.subr.bf16.mxu0 0
  %217 = vmatpush1.bf16.msra.mxu0 0
  %218 = vmatprep.subr.bf16.mxu0 0
  %219 = vmatpush1.bf16.msra.mxu0 0
  %220 = vmatprep.subr.bf16.mxu0 0
  %221 = vmatpush1.bf16.msra.mxu0 0
  %222 = vmatprep.mubr.bf16.mxu0 0
  %223 = vmatmul.mubr.bf16.gmra.mrb[0].mxu0 %v61
  %v224 = vpop.f32.mrb[0].mxu0
  %v225 = vadd.f32 0.0, %v224
  %v226 = vpop.f32.mrb[0].mxu0
  %v227 = vadd.f32 0.0, %v226
  %v228 = vpop.f32.mrb[0].mxu0
  %v229 = vpop.f32.mrb[0].mxu0
  %230 = vdwg.mxu0
  %231 = vmatprep.subr.bf16.mxu0 0
  %232 = vmatpush1.bf16.msra.mxu0 %v144
  %233 = vmatprep.subr.bf16.mxu0 0
  %234 = vmatpush1.bf16.msra.mxu0 %v147
  %235 = vmatprep.subr.bf16.mxu0 0
  %236 = vmatpush1.bf16.msra.mxu0 %v150
  %237 = vmatprep.subr.bf16.mxu0 0
  %238 = vmatpush1.bf16.msra.mxu0 %v153
  %239 = vmatprep.subr.bf16.mxu0 0
  %240 = vmatpush1.bf16.msra.mxu0 %v156
  %241 = vmatprep.subr.bf16.mxu0 0
  %242 = vmatpush1.bf16.msra.mxu0 %v159
  %243 = vmatprep.subr.bf16.mxu0 0
  %244 = vmatpush1.bf16.msra.mxu0 %v162
  %245 = vmatprep.subr.bf16.mxu0 0
  %246 = vmatpush1.bf16.msra.mxu0 %v165
  %247 = vmatprep.subr.bf16.mxu0 0
  %248 = vmatpush1.bf16.msra.mxu0 0
  %249 = vmatprep.subr.bf16.mxu0 0
  %250 = vmatpush1.bf16.msra.mxu0 0
  %251 = vmatprep.subr.bf16.mxu0 0
  %252 = vmatpush1.bf16.msra.mxu0 0
  %253 = vmatprep.subr.bf16.mxu0 0
  %254 = vmatpush1.bf16.msra.mxu0 0
  %255 = vmatprep.subr.bf16.mxu0 0
  %256 = vmatpush1.bf16.msra.mxu0 0
  %257 = vmatprep.subr.bf16.mxu0 0
  %258 = vmatpush1.bf16.msra.mxu0 0
  %259 = vmatprep.subr.bf16.mxu0 0
  %260 = vmatpush1.bf16.msra.mxu0 0
  %261 = vmatprep.subr.bf16.mxu0 0
  %262 = vmatpush1.bf16.msra.mxu0 0
  %263 = vmatprep.mubr.bf16.mxu0 0
  %264 = vmatmul.mubr.bf16.gmra.mrb[0].mxu0 %v61
  %v265 = vpop.f32.mrb[0].mxu0
  %v266 = vadd.f32 0.0, %v265
  %v267 = vpop.f32.mrb[0].mxu0
  %v268 = vpop.f32.mrb[0].mxu0
  %v269 = vpop.f32.mrb[0].mxu0
  %270 = vdwg.mxu0
  %v271 = vadd.f32 %v58, %v225
  %v272 = vxor.u32 %v271, 2147483648
  %v273 = vmul.f32 %v272, 1.442695
  %v274 = vpow.pop %v273
  %v275 = vadd.f32 %v274, 1.0
  %v276 = vrcp.pop %v275
  %v277 = vmul.f32 1.0, %v276
  %v278 = vadd.f32 %v59, %v227
  %v279 = vxor.u32 %v278, 2147483648
  %v280 = vmul.f32 %v279, 1.442695
  %v281 = vpow.pop %v280
  %v282 = vadd.f32 %v281, 1.0
  %v283 = vrcp.pop %v282
  %v284 = vmul.f32 1.0, %v283
  %v286 = vlaneseq
  %v287 = vshrl.u32 %v286, 7
  %v288 = vsub.s32 0, %v287
  %v289 = vrot.slane %v54, %v288
  %v291 = vadd.f32 %v266, %v289
  %v292 = vmul.f32 %v277, %v291
  %v293 = vadd.f32 %v60, %v292
  %v294 = vtanh.pop %v293
  %v295 = vsub.f32 1.0, %v284
  %v296 = vmul.f32 %v295, %v294
  %v297 = vmul.f32 %v284, %v55
  %v298 = vadd.f32 %v296, %v297
  %v299 = vpack.c.bf16 %v298, %v298
  %300 = vst [vmem:[%s3] sm:$0xf] %v299
  %s301 = scalar_lea.vmem %s0, 12
  %v302 = vld [vmem:[%s301] sm:$0xff]
  %v303 = vld [vmem:[%s301 + $0x8] sm:$0xf]
  %v304 = vunpack.c.l.bf16 %v302
  %v305 = vunpack.c.h.bf16 %v302
  %v306 = vunpack.c.l.bf16 %v303
  %307 = vmatprep.subr.bf16.mxu0 %v143
  %308 = vmatpush1.bf16.msra.mxu0 %v142
  %309 = vmatprep.subr.bf16.mxu0 %v146
  %310 = vmatpush1.bf16.msra.mxu0 %v145
  %311 = vmatprep.subr.bf16.mxu0 %v149
  %312 = vmatpush1.bf16.msra.mxu0 %v148
  %313 = vmatprep.subr.bf16.mxu0 %v152
  %314 = vmatpush1.bf16.msra.mxu0 %v151
  %315 = vmatprep.subr.bf16.mxu0 %v155
  %316 = vmatpush1.bf16.msra.mxu0 %v154
  %317 = vmatprep.subr.bf16.mxu0 %v158
  %318 = vmatpush1.bf16.msra.mxu0 %v157
  %319 = vmatprep.subr.bf16.mxu0 %v161
  %320 = vmatpush1.bf16.msra.mxu0 %v160
  %321 = vmatprep.subr.bf16.mxu0 %v164
  %322 = vmatpush1.bf16.msra.mxu0 %v163
  %323 = vmatprep.subr.bf16.mxu0 0
  %324 = vmatpush1.bf16.msra.mxu0 0
  %325 = vmatprep.subr.bf16.mxu0 0
  %326 = vmatpush1.bf16.msra.mxu0 0
  %327 = vmatprep.subr.bf16.mxu0 0
  %328 = vmatpush1.bf16.msra.mxu0 0
  %329 = vmatprep.subr.bf16.mxu0 0
  %330 = vmatpush1.bf16.msra.mxu0 0
  %331 = vmatprep.subr.bf16.mxu0 0
  %332 = vmatpush1.bf16.msra.mxu0 0
  %333 = vmatprep.subr.bf16.mxu0 0
  %334 = vmatpush1.bf16.msra.mxu0 0
  %335 = vmatprep.subr.bf16.mxu0 0
  %336 = vmatpush1.bf16.msra.mxu0 0
  %337 = vmatprep.subr.bf16.mxu0 0
  %338 = vmatpush1.bf16.msra.mxu0 0
  %339 = vmatprep.mubr.bf16.mxu0 0
  %340 = vmatmul.mubr.bf16.gmra.mrb[0].mxu0 %v299
  %v341 = vpop.f32.mrb[0].mxu0
  %v342 = vadd.f32 0.0, %v341
  %v343 = vpop.f32.mrb[0].mxu0
  %v344 = vadd.f32 0.0, %v343
  %v345 = vpop.f32.mrb[0].mxu0
  %v346 = vpop.f32.mrb[0].mxu0
  %347 = vdwg.mxu0
  %348 = vmatprep.subr.bf16.mxu0 0
  %349 = vmatpush1.bf16.msra.mxu0 %v144
  %350 = vmatprep.subr.bf16.mxu0 0
  %351 = vmatpush1.bf16.msra.mxu0 %v147
  %352 = vmatprep.subr.bf16.mxu0 0
  %353 = vmatpush1.bf16.msra.mxu0 %v150
  %354 = vmatprep.subr.bf16.mxu0 0
  %355 = vmatpush1.bf16.msra.mxu0 %v153
  %356 = vmatprep.subr.bf16.mxu0 0
  %357 = vmatpush1.bf16.msra.mxu0 %v156
  %358 = vmatprep.subr.bf16.mxu0 0
  %359 = vmatpush1.bf16.msra.mxu0 %v159
  %360 = vmatprep.subr.bf16.mxu0 0
  %361 = vmatpush1.bf16.msra.mxu0 %v162
  %362 = vmatprep.subr.bf16.mxu0 0
  %363 = vmatpush1.bf16.msra.mxu0 %v165
  %364 = vmatprep.subr.bf16.mxu0 0
  %365 = vmatpush1.bf16.msra.mxu0 0
  %366 = vmatprep.subr.bf16.mxu0 0
  %367 = vmatpush1.bf16.msra.mxu0 0
  %368 = vmatprep.subr.bf16.mxu0 0
  %369 = vmatpush1.bf16.msra.mxu0 0
  %370 = vmatprep.subr.bf16.mxu0 0
  %371 = vmatpush1.bf16.msra.mxu0 0
  %372 = vmatprep.subr.bf16.mxu0 0
  %373 = vmatpush1.bf16.msra.mxu0 0
  %374 = vmatprep.subr.bf16.mxu0 0
  %375 = vmatpush1.bf16.msra.mxu0 0
  %376 = vmatprep.subr.bf16.mxu0 0
  %377 = vmatpush1.bf16.msra.mxu0 0
  %378 = vmatprep.subr.bf16.mxu0 0
  %379 = vmatpush1.bf16.msra.mxu0 0
  %380 = vmatprep.mubr.bf16.mxu0 0
  %381 = vmatmul.mubr.bf16.gmra.mrb[0].mxu0 %v299
  %v382 = vpop.f32.mrb[0].mxu0
  %v383 = vadd.f32 0.0, %v382
  %v384 = vpop.f32.mrb[0].mxu0
  %v385 = vpop.f32.mrb[0].mxu0
  %v386 = vpop.f32.mrb[0].mxu0
  %387 = vdwg.mxu0
  %v388 = vadd.f32 %v304, %v342
  %v389 = vxor.u32 %v388, 2147483648
  %v390 = vmul.f32 %v389, 1.442695
  %v391 = vpow.pop %v390
  %v392 = vadd.f32 %v391, 1.0
  %v393 = vrcp.pop %v392
  %v394 = vmul.f32 1.0, %v393
  %v395 = vadd.f32 %v305, %v344
  %v396 = vxor.u32 %v395, 2147483648
  %v397 = vmul.f32 %v396, 1.442695
  %v398 = vpow.pop %v397
  %v399 = vadd.f32 %v398, 1.0
  %v400 = vrcp.pop %v399
  %v401 = vmul.f32 1.0, %v400
  %v402 = vadd.f32 %v383, %v289
  %v403 = vmul.f32 %v394, %v402
  %v404 = vadd.f32 %v306, %v403
  %v405 = vtanh.pop %v404
  %v406 = vsub.f32 1.0, %v401
  %v407 = vmul.f32 %v406, %v405
  %v408 = vmul.f32 %v401, %v298
  %v409 = vadd.f32 %v407, %v408
  %v410 = vpack.c.bf16 %v409, %v409
  %s411 = scalar_lea.vmem %s3, 4
  %412 = vst [vmem:[%s411] sm:$0xf] %v410
  %s413 = scalar_lea.vmem %s0, 24
  %v414 = vld [vmem:[%s413] sm:$0xff]
  %v415 = vld [vmem:[%s413 + $0x8] sm:$0xf]
  %v416 = vunpack.c.l.bf16 %v414
  %v417 = vunpack.c.h.bf16 %v414
  %v418 = vunpack.c.l.bf16 %v415
  %419 = vmatprep.subr.bf16.mxu0 %v143
  %420 = vmatpush1.bf16.msra.mxu0 %v142
  %421 = vmatprep.subr.bf16.mxu0 %v146
  %422 = vmatpush1.bf16.msra.mxu0 %v145
  %423 = vmatprep.subr.bf16.mxu0 %v149
  %424 = vmatpush1.bf16.msra.mxu0 %v148
  %425 = vmatprep.subr.bf16.mxu0 %v152
  %426 = vmatpush1.bf16.msra.mxu0 %v151
  %427 = vmatprep.subr.bf16.mxu0 %v155
  %428 = vmatpush1.bf16.msra.mxu0 %v154
  %429 = vmatprep.subr.bf16.mxu0 %v158
  %430 = vmatpush1.bf16.msra.mxu0 %v157
  %431 = vmatprep.subr.bf16.mxu0 %v161
  %432 = vmatpush1.bf16.msra.mxu0 %v160
  %433 = vmatprep.subr.bf16.mxu0 %v164
  %434 = vmatpush1.bf16.msra.mxu0 %v163
  %435 = vmatprep.subr.bf16.mxu0 0
  %436 = vmatpush1.bf16.msra.mxu0 0
  %437 = vmatprep.subr.bf16.mxu0 0
  %438 = vmatpush1.bf16.msra.mxu0 0
  %439 = vmatprep.subr.bf16.mxu0 0
  %440 = vmatpush1.bf16.msra.mxu0 0
  %441 = vmatprep.subr.bf16.mxu0 0
  %442 = vmatpush1.bf16.msra.mxu0 0
  %443 = vmatprep.subr.bf16.mxu0 0
  %444 = vmatpush1.bf16.msra.mxu0 0
  %445 = vmatprep.subr.bf16.mxu0 0
  %446 = vmatpush1.bf16.msra.mxu0 0
  %447 = vmatprep.subr.bf16.mxu0 0
  %448 = vmatpush1.bf16.msra.mxu0 0
  %449 = vmatprep.subr.bf16.mxu0 0
  %450 = vmatpush1.bf16.msra.mxu0 0
  %451 = vmatprep.mubr.bf16.mxu0 0
  %452 = vmatmul.mubr.bf16.gmra.mrb[0].mxu0 %v410
  %v453 = vpop.f32.mrb[0].mxu0
  %v454 = vadd.f32 0.0, %v453
  %v455 = vpop.f32.mrb[0].mxu0
  %v456 = vadd.f32 0.0, %v455
  %v457 = vpop.f32.mrb[0].mxu0
  %v458 = vpop.f32.mrb[0].mxu0
  %459 = vdwg.mxu0
  %460 = vmatprep.subr.bf16.mxu0 0
  %461 = vmatpush1.bf16.msra.mxu0 %v144
  %462 = vmatprep.subr.bf16.mxu0 0
  %463 = vmatpush1.bf16.msra.mxu0 %v147
  %464 = vmatprep.subr.bf16.mxu0 0
  %465 = vmatpush1.bf16.msra.mxu0 %v150
  %466 = vmatprep.subr.bf16.mxu0 0
  %467 = vmatpush1.bf16.msra.mxu0 %v153
  %468 = vmatprep.subr.bf16.mxu0 0
  %469 = vmatpush1.bf16.msra.mxu0 %v156
  %470 = vmatprep.subr.bf16.mxu0 0
  %471 = vmatpush1.bf16.msra.mxu0 %v159
  %472 = vmatprep.subr.bf16.mxu0 0
  %473 = vmatpush1.bf16.msra.mxu0 %v162
  %474 = vmatprep.subr.bf16.mxu0 0
  %475 = vmatpush1.bf16.msra.mxu0 %v165
  %476 = vmatprep.subr.bf16.mxu0 0
  %477 = vmatpush1.bf16.msra.mxu0 0
  %478 = vmatprep.subr.bf16.mxu0 0
  %479 = vmatpush1.bf16.msra.mxu0 0
  %480 = vmatprep.subr.bf16.mxu0 0
  %481 = vmatpush1.bf16.msra.mxu0 0
  %482 = vmatprep.subr.bf16.mxu0 0
  %483 = vmatpush1.bf16.msra.mxu0 0
  %484 = vmatprep.subr.bf16.mxu0 0
  %485 = vmatpush1.bf16.msra.mxu0 0
  %486 = vmatprep.subr.bf16.mxu0 0
  %487 = vmatpush1.bf16.msra.mxu0 0
  %488 = vmatprep.subr.bf16.mxu0 0
  %489 = vmatpush1.bf16.msra.mxu0 0
  %490 = vmatprep.subr.bf16.mxu0 0
  %491 = vmatpush1.bf16.msra.mxu0 0
  %492 = vmatprep.mubr.bf16.mxu0 0
  %493 = vmatmul.mubr.bf16.gmra.mrb[0].mxu0 %v410
  %v494 = vpop.f32.mrb[0].mxu0
  %v495 = vadd.f32 0.0, %v494
  %v496 = vpop.f32.mrb[0].mxu0
  %v497 = vpop.f32.mrb[0].mxu0
  %v498 = vpop.f32.mrb[0].mxu0
  %499 = vdwg.mxu0
  %v500 = vadd.f32 %v416, %v454
  %v501 = vxor.u32 %v500, 2147483648
  %v502 = vmul.f32 %v501, 1.442695
  %v503 = vpow.pop %v502
  %v504 = vadd.f32 %v503, 1.0
  %v505 = vrcp.pop %v504
  %v506 = vmul.f32 1.0, %v505
  %v507 = vadd.f32 %v417, %v456
  %v508 = vxor.u32 %v507, 2147483648
  %v509 = vmul.f32 %v508, 1.442695
  %v510 = vpow.pop %v509
  %v511 = vadd.f32 %v510, 1.0
  %v512 = vrcp.pop %v511
  %v513 = vmul.f32 1.0, %v512
  %v514 = vadd.f32 %v495, %v289
  %v515 = vmul.f32 %v506, %v514
  %v516 = vadd.f32 %v418, %v515
  %v517 = vtanh.pop %v516
  %v518 = vsub.f32 1.0, %v513
  %v519 = vmul.f32 %v518, %v517
  %v520 = vmul.f32 %v513, %v409
  %v521 = vadd.f32 %v519, %v520
  %v522 = vpack.c.bf16 %v521, %v521
  %s523 = scalar_lea.vmem %s3, 8
  %524 = vst [vmem:[%s523] sm:$0xf] %v522
  %s525 = scalar_lea.vmem %s0, 36
  %v526 = vld [vmem:[%s525] sm:$0xff]
  %v527 = vld [vmem:[%s525 + $0x8] sm:$0xf]
  %v528 = vunpack.c.l.bf16 %v526
  %v529 = vunpack.c.h.bf16 %v526
  %v530 = vunpack.c.l.bf16 %v527
  %531 = vmatprep.subr.bf16.mxu0 %v143
  %532 = vmatpush1.bf16.msra.mxu0 %v142
  %533 = vmatprep.subr.bf16.mxu0 %v146
  %534 = vmatpush1.bf16.msra.mxu0 %v145
  %535 = vmatprep.subr.bf16.mxu0 %v149
  %536 = vmatpush1.bf16.msra.mxu0 %v148
  %537 = vmatprep.subr.bf16.mxu0 %v152
  %538 = vmatpush1.bf16.msra.mxu0 %v151
  %539 = vmatprep.subr.bf16.mxu0 %v155
  %540 = vmatpush1.bf16.msra.mxu0 %v154
  %541 = vmatprep.subr.bf16.mxu0 %v158
  %542 = vmatpush1.bf16.msra.mxu0 %v157
  %543 = vmatprep.subr.bf16.mxu0 %v161
  %544 = vmatpush1.bf16.msra.mxu0 %v160
  %545 = vmatprep.subr.bf16.mxu0 %v164
  %546 = vmatpush1.bf16.msra.mxu0 %v163
  %547 = vmatprep.subr.bf16.mxu0 0
  %548 = vmatpush1.bf16.msra.mxu0 0
  %549 = vmatprep.subr.bf16.mxu0 0
  %550 = vmatpush1.bf16.msra.mxu0 0
  %551 = vmatprep.subr.bf16.mxu0 0
  %552 = vmatpush1.bf16.msra.mxu0 0
  %553 = vmatprep.subr.bf16.mxu0 0
  %554 = vmatpush1.bf16.msra.mxu0 0
  %555 = vmatprep.subr.bf16.mxu0 0
  %556 = vmatpush1.bf16.msra.mxu0 0
  %557 = vmatprep.subr.bf16.mxu0 0
  %558 = vmatpush1.bf16.msra.mxu0 0
  %559 = vmatprep.subr.bf16.mxu0 0
  %560 = vmatpush1.bf16.msra.mxu0 0
  %561 = vmatprep.subr.bf16.mxu0 0
  %562 = vmatpush1.bf16.msra.mxu0 0
  %563 = vmatprep.mubr.bf16.mxu0 0
  %564 = vmatmul.mubr.bf16.gmra.mrb[0].mxu0 %v522
  %v565 = vpop.f32.mrb[0].mxu0
  %v566 = vadd.f32 0.0, %v565
  %v567 = vpop.f32.mrb[0].mxu0
  %v568 = vadd.f32 0.0, %v567
  %v569 = vpop.f32.mrb[0].mxu0
  %v570 = vpop.f32.mrb[0].mxu0
  %571 = vdwg.mxu0
  %572 = vmatprep.subr.bf16.mxu0 0
  %573 = vmatpush1.bf16.msra.mxu0 %v144
  %574 = vmatprep.subr.bf16.mxu0 0
  %575 = vmatpush1.bf16.msra.mxu0 %v147
  %576 = vmatprep.subr.bf16.mxu0 0
  %577 = vmatpush1.bf16.msra.mxu0 %v150
  %578 = vmatprep.subr.bf16.mxu0 0
  %579 = vmatpush1.bf16.msra.mxu0 %v153
  %580 = vmatprep.subr.bf16.mxu0 0
  %581 = vmatpush1.bf16.msra.mxu0 %v156
  %582 = vmatprep.subr.bf16.mxu0 0
  %583 = vmatpush1.bf16.msra.mxu0 %v159
  %584 = vmatprep.subr.bf16.mxu0 0
  %585 = vmatpush1.bf16.msra.mxu0 %v162
  %586 = vmatprep.subr.bf16.mxu0 0
  %587 = vmatpush1.bf16.msra.mxu0 %v165
  %588 = vmatprep.subr.bf16.mxu0 0
  %589 = vmatpush1.bf16.msra.mxu0 0
  %590 = vmatprep.subr.bf16.mxu0 0
  %591 = vmatpush1.bf16.msra.mxu0 0
  %592 = vmatprep.subr.bf16.mxu0 0
  %593 = vmatpush1.bf16.msra.mxu0 0
  %594 = vmatprep.subr.bf16.mxu0 0
  %595 = vmatpush1.bf16.msra.mxu0 0
  %596 = vmatprep.subr.bf16.mxu0 0
  %597 = vmatpush1.bf16.msra.mxu0 0
  %598 = vmatprep.subr.bf16.mxu0 0
  %599 = vmatpush1.bf16.msra.mxu0 0
  %600 = vmatprep.subr.bf16.mxu0 0
  %601 = vmatpush1.bf16.msra.mxu0 0
  %602 = vmatprep.subr.bf16.mxu0 0
  %603 = vmatpush1.bf16.msra.mxu0 0
  %604 = vmatprep.mubr.bf16.mxu0 0
  %605 = vmatmul.mubr.bf16.gmra.mrb[0].mxu0 %v522
  %v606 = vpop.f32.mrb[0].mxu0
  %v607 = vadd.f32 0.0, %v606
  %v608 = vpop.f32.mrb[0].mxu0
  %v609 = vpop.f32.mrb[0].mxu0
  %v610 = vpop.f32.mrb[0].mxu0
  %611 = vdwg.mxu0
  %v612 = vadd.f32 %v528, %v566
  %v613 = vxor.u32 %v612, 2147483648
  %v614 = vmul.f32 %v613, 1.442695
  %v615 = vpow.pop %v614
  %v616 = vadd.f32 %v615, 1.0
  %v617 = vrcp.pop %v616
  %v618 = vmul.f32 1.0, %v617
  %v619 = vadd.f32 %v529, %v568
  %v620 = vxor.u32 %v619, 2147483648
  %v621 = vmul.f32 %v620, 1.442695
  %v622 = vpow.pop %v621
  %v623 = vadd.f32 %v622, 1.0
  %v624 = vrcp.pop %v623
  %v625 = vmul.f32 1.0, %v624
  %v626 = vadd.f32 %v607, %v289
  %v627 = vmul.f32 %v618, %v626
  %v628 = vadd.f32 %v530, %v627
  %v629 = vtanh.pop %v628
  %v630 = vsub.f32 1.0, %v625
  %v631 = vmul.f32 %v630, %v629
  %v632 = vmul.f32 %v625, %v521
  %v633 = vadd.f32 %v631, %v632
  %v634 = vpack.c.bf16 %v633, %v633
  %s635 = scalar_lea.vmem %s3, 12
  %636 = vst [vmem:[%s635] sm:$0xf] %v634
  %s637 = scalar_lea.vmem %s0, 48
  %v638 = vld [vmem:[%s637] sm:$0xff]
  %v639 = vld [vmem:[%s637 + $0x8] sm:$0xf]
  %v640 = vunpack.c.l.bf16 %v638
  %v641 = vunpack.c.h.bf16 %v638
  %v642 = vunpack.c.l.bf16 %v639
  %643 = vmatprep.subr.bf16.mxu0 %v143
  %644 = vmatpush1.bf16.msra.mxu0 %v142
  %645 = vmatprep.subr.bf16.mxu0 %v146
  %646 = vmatpush1.bf16.msra.mxu0 %v145
  %647 = vmatprep.subr.bf16.mxu0 %v149
  %648 = vmatpush1.bf16.msra.mxu0 %v148
  %649 = vmatprep.subr.bf16.mxu0 %v152
  %650 = vmatpush1.bf16.msra.mxu0 %v151
  %651 = vmatprep.subr.bf16.mxu0 %v155
  %652 = vmatpush1.bf16.msra.mxu0 %v154
  %653 = vmatprep.subr.bf16.mxu0 %v158
  %654 = vmatpush1.bf16.msra.mxu0 %v157
  %655 = vmatprep.subr.bf16.mxu0 %v161
  %656 = vmatpush1.bf16.msra.mxu0 %v160
  %657 = vmatprep.subr.bf16.mxu0 %v164
  %658 = vmatpush1.bf16.msra.mxu0 %v163
  %659 = vmatprep.subr.bf16.mxu0 0
  %660 = vmatpush1.bf16.msra.mxu0 0
  %661 = vmatprep.subr.bf16.mxu0 0
  %662 = vmatpush1.bf16.msra.mxu0 0
  %663 = vmatprep.subr.bf16.mxu0 0
  %664 = vmatpush1.bf16.msra.mxu0 0
  %665 = vmatprep.subr.bf16.mxu0 0
  %666 = vmatpush1.bf16.msra.mxu0 0
  %667 = vmatprep.subr.bf16.mxu0 0
  %668 = vmatpush1.bf16.msra.mxu0 0
  %669 = vmatprep.subr.bf16.mxu0 0
  %670 = vmatpush1.bf16.msra.mxu0 0
  %671 = vmatprep.subr.bf16.mxu0 0
  %672 = vmatpush1.bf16.msra.mxu0 0
  %673 = vmatprep.subr.bf16.mxu0 0
  %674 = vmatpush1.bf16.msra.mxu0 0
  %675 = vmatprep.mubr.bf16.mxu0 0
  %676 = vmatmul.mubr.bf16.gmra.mrb[0].mxu0 %v634
  %v677 = vpop.f32.mrb[0].mxu0
  %v678 = vadd.f32 0.0, %v677
  %v679 = vpop.f32.mrb[0].mxu0
  %v680 = vadd.f32 0.0, %v679
  %v681 = vpop.f32.mrb[0].mxu0
  %v682 = vpop.f32.mrb[0].mxu0
  %683 = vdwg.mxu0
  %684 = vmatprep.subr.bf16.mxu0 0
  %685 = vmatpush1.bf16.msra.mxu0 %v144
  %686 = vmatprep.subr.bf16.mxu0 0
  %687 = vmatpush1.bf16.msra.mxu0 %v147
  %688 = vmatprep.subr.bf16.mxu0 0
  %689 = vmatpush1.bf16.msra.mxu0 %v150
  %690 = vmatprep.subr.bf16.mxu0 0
  %691 = vmatpush1.bf16.msra.mxu0 %v153
  %692 = vmatprep.subr.bf16.mxu0 0
  %693 = vmatpush1.bf16.msra.mxu0 %v156
  %694 = vmatprep.subr.bf16.mxu0 0
  %695 = vmatpush1.bf16.msra.mxu0 %v159
  %696 = vmatprep.subr.bf16.mxu0 0
  %697 = vmatpush1.bf16.msra.mxu0 %v162
  %698 = vmatprep.subr.bf16.mxu0 0
  %699 = vmatpush1.bf16.msra.mxu0 %v165
  %700 = vmatprep.subr.bf16.mxu0 0
  %701 = vmatpush1.bf16.msra.mxu0 0
  %702 = vmatprep.subr.bf16.mxu0 0
  %703 = vmatpush1.bf16.msra.mxu0 0
  %704 = vmatprep.subr.bf16.mxu0 0
  %705 = vmatpush1.bf16.msra.mxu0 0
  %706 = vmatprep.subr.bf16.mxu0 0
  %707 = vmatpush1.bf16.msra.mxu0 0
  %708 = vmatprep.subr.bf16.mxu0 0
  %709 = vmatpush1.bf16.msra.mxu0 0
  %710 = vmatprep.subr.bf16.mxu0 0
  %711 = vmatpush1.bf16.msra.mxu0 0
  %712 = vmatprep.subr.bf16.mxu0 0
  %713 = vmatpush1.bf16.msra.mxu0 0
  %714 = vmatprep.subr.bf16.mxu0 0
  %715 = vmatpush1.bf16.msra.mxu0 0
  %716 = vmatprep.mubr.bf16.mxu0 0
  %717 = vmatmul.mubr.bf16.gmra.mrb[0].mxu0 %v634
  %v718 = vpop.f32.mrb[0].mxu0
  %v719 = vadd.f32 0.0, %v718
  %v720 = vpop.f32.mrb[0].mxu0
  %v721 = vpop.f32.mrb[0].mxu0
  %v722 = vpop.f32.mrb[0].mxu0
  %723 = vdwg.mxu0
  %v724 = vadd.f32 %v640, %v678
  %v725 = vxor.u32 %v724, 2147483648
  %v726 = vmul.f32 %v725, 1.442695
  %v727 = vpow.pop %v726
  %v728 = vadd.f32 %v727, 1.0
  %v729 = vrcp.pop %v728
  %v730 = vmul.f32 1.0, %v729
  %v731 = vadd.f32 %v641, %v680
  %v732 = vxor.u32 %v731, 2147483648
  %v733 = vmul.f32 %v732, 1.442695
  %v734 = vpow.pop %v733
  %v735 = vadd.f32 %v734, 1.0
  %v736 = vrcp.pop %v735
  %v737 = vmul.f32 1.0, %v736
  %v738 = vadd.f32 %v719, %v289
  %v739 = vmul.f32 %v730, %v738
  %v740 = vadd.f32 %v642, %v739
  %v741 = vtanh.pop %v740
  %v742 = vsub.f32 1.0, %v737
  %v743 = vmul.f32 %v742, %v741
  %v744 = vmul.f32 %v737, %v633
  %v745 = vadd.f32 %v743, %v744
  %v746 = vpack.c.bf16 %v745, %v745
  %s747 = scalar_lea.vmem %s3, 16
  %748 = vst [vmem:[%s747] sm:$0xf] %v746
  %s749 = scalar_lea.vmem %s0, 60
  %v750 = vld [vmem:[%s749] sm:$0xff]
  %v751 = vld [vmem:[%s749 + $0x8] sm:$0xf]
  %v752 = vunpack.c.l.bf16 %v750
  %v753 = vunpack.c.h.bf16 %v750
  %v754 = vunpack.c.l.bf16 %v751
  %755 = vmatprep.subr.bf16.mxu0 %v143
  %756 = vmatpush1.bf16.msra.mxu0 %v142
  %757 = vmatprep.subr.bf16.mxu0 %v146
  %758 = vmatpush1.bf16.msra.mxu0 %v145
  %759 = vmatprep.subr.bf16.mxu0 %v149
  %760 = vmatpush1.bf16.msra.mxu0 %v148
  %761 = vmatprep.subr.bf16.mxu0 %v152
  %762 = vmatpush1.bf16.msra.mxu0 %v151
  %763 = vmatprep.subr.bf16.mxu0 %v155
  %764 = vmatpush1.bf16.msra.mxu0 %v154
  %765 = vmatprep.subr.bf16.mxu0 %v158
  %766 = vmatpush1.bf16.msra.mxu0 %v157
  %767 = vmatprep.subr.bf16.mxu0 %v161
  %768 = vmatpush1.bf16.msra.mxu0 %v160
  %769 = vmatprep.subr.bf16.mxu0 %v164
  %770 = vmatpush1.bf16.msra.mxu0 %v163
  %771 = vmatprep.subr.bf16.mxu0 0
  %772 = vmatpush1.bf16.msra.mxu0 0
  %773 = vmatprep.subr.bf16.mxu0 0
  %774 = vmatpush1.bf16.msra.mxu0 0
  %775 = vmatprep.subr.bf16.mxu0 0
  %776 = vmatpush1.bf16.msra.mxu0 0
  %777 = vmatprep.subr.bf16.mxu0 0
  %778 = vmatpush1.bf16.msra.mxu0 0
  %779 = vmatprep.subr.bf16.mxu0 0
  %780 = vmatpush1.bf16.msra.mxu0 0
  %781 = vmatprep.subr.bf16.mxu0 0
  %782 = vmatpush1.bf16.msra.mxu0 0
  %783 = vmatprep.subr.bf16.mxu0 0
  %784 = vmatpush1.bf16.msra.mxu0 0
  %785 = vmatprep.subr.bf16.mxu0 0
  %786 = vmatpush1.bf16.msra.mxu0 0
  %787 = vmatprep.mubr.bf16.mxu0 0
  %788 = vmatmul.mubr.bf16.gmra.mrb[0].mxu0 %v746
  %v789 = vpop.f32.mrb[0].mxu0
  %v790 = vadd.f32 0.0, %v789
  %v791 = vpop.f32.mrb[0].mxu0
  %v792 = vadd.f32 0.0, %v791
  %v793 = vpop.f32.mrb[0].mxu0
  %v794 = vpop.f32.mrb[0].mxu0
  %795 = vdwg.mxu0
  %796 = vmatprep.subr.bf16.mxu0 0
  %797 = vmatpush1.bf16.msra.mxu0 %v144
  %798 = vmatprep.subr.bf16.mxu0 0
  %799 = vmatpush1.bf16.msra.mxu0 %v147
  %800 = vmatprep.subr.bf16.mxu0 0
  %801 = vmatpush1.bf16.msra.mxu0 %v150
  %802 = vmatprep.subr.bf16.mxu0 0
  %803 = vmatpush1.bf16.msra.mxu0 %v153
  %804 = vmatprep.subr.bf16.mxu0 0
  %805 = vmatpush1.bf16.msra.mxu0 %v156
  %806 = vmatprep.subr.bf16.mxu0 0
  %807 = vmatpush1.bf16.msra.mxu0 %v159
  %808 = vmatprep.subr.bf16.mxu0 0
  %809 = vmatpush1.bf16.msra.mxu0 %v162
  %810 = vmatprep.subr.bf16.mxu0 0
  %811 = vmatpush1.bf16.msra.mxu0 %v165
  %812 = vmatprep.subr.bf16.mxu0 0
  %813 = vmatpush1.bf16.msra.mxu0 0
  %814 = vmatprep.subr.bf16.mxu0 0
  %815 = vmatpush1.bf16.msra.mxu0 0
  %816 = vmatprep.subr.bf16.mxu0 0
  %817 = vmatpush1.bf16.msra.mxu0 0
  %818 = vmatprep.subr.bf16.mxu0 0
  %819 = vmatpush1.bf16.msra.mxu0 0
  %820 = vmatprep.subr.bf16.mxu0 0
  %821 = vmatpush1.bf16.msra.mxu0 0
  %822 = vmatprep.subr.bf16.mxu0 0
  %823 = vmatpush1.bf16.msra.mxu0 0
  %824 = vmatprep.subr.bf16.mxu0 0
  %825 = vmatpush1.bf16.msra.mxu0 0
  %826 = vmatprep.subr.bf16.mxu0 0
  %827 = vmatpush1.bf16.msra.mxu0 0
  %828 = vmatprep.mubr.bf16.mxu0 0
  %829 = vmatmul.mubr.bf16.gmra.mrb[0].mxu0 %v746
  %v830 = vpop.f32.mrb[0].mxu0
  %v831 = vadd.f32 0.0, %v830
  %v832 = vpop.f32.mrb[0].mxu0
  %v833 = vpop.f32.mrb[0].mxu0
  %v834 = vpop.f32.mrb[0].mxu0
  %835 = vdwg.mxu0
  %v836 = vadd.f32 %v752, %v790
  %v837 = vxor.u32 %v836, 2147483648
  %v838 = vmul.f32 %v837, 1.442695
  %v839 = vpow.pop %v838
  %v840 = vadd.f32 %v839, 1.0
  %v841 = vrcp.pop %v840
  %v842 = vmul.f32 1.0, %v841
  %v843 = vadd.f32 %v753, %v792
  %v844 = vxor.u32 %v843, 2147483648
  %v845 = vmul.f32 %v844, 1.442695
  %v846 = vpow.pop %v845
  %v847 = vadd.f32 %v846, 1.0
  %v848 = vrcp.pop %v847
  %v849 = vmul.f32 1.0, %v848
  %v850 = vadd.f32 %v831, %v289
  %v851 = vmul.f32 %v842, %v850
  %v852 = vadd.f32 %v754, %v851
  %v853 = vtanh.pop %v852
  %v854 = vsub.f32 1.0, %v849
  %v855 = vmul.f32 %v854, %v853
  %v856 = vmul.f32 %v849, %v745
  %v857 = vadd.f32 %v855, %v856
  %v858 = vpack.c.bf16 %v857, %v857
  %s859 = scalar_lea.vmem %s3, 20
  %860 = vst [vmem:[%s859] sm:$0xf] %v858
  %s861 = scalar_lea.vmem %s0, 72
  %v862 = vld [vmem:[%s861] sm:$0xff]
  %v863 = vld [vmem:[%s861 + $0x8] sm:$0xf]
  %v864 = vunpack.c.l.bf16 %v862
  %v865 = vunpack.c.h.bf16 %v862
  %v866 = vunpack.c.l.bf16 %v863
  %867 = vmatprep.subr.bf16.mxu0 %v143
  %868 = vmatpush1.bf16.msra.mxu0 %v142
  %869 = vmatprep.subr.bf16.mxu0 %v146
  %870 = vmatpush1.bf16.msra.mxu0 %v145
  %871 = vmatprep.subr.bf16.mxu0 %v149
  %872 = vmatpush1.bf16.msra.mxu0 %v148
  %873 = vmatprep.subr.bf16.mxu0 %v152
  %874 = vmatpush1.bf16.msra.mxu0 %v151
  %875 = vmatprep.subr.bf16.mxu0 %v155
  %876 = vmatpush1.bf16.msra.mxu0 %v154
  %877 = vmatprep.subr.bf16.mxu0 %v158
  %878 = vmatpush1.bf16.msra.mxu0 %v157
  %879 = vmatprep.subr.bf16.mxu0 %v161
  %880 = vmatpush1.bf16.msra.mxu0 %v160
  %881 = vmatprep.subr.bf16.mxu0 %v164
  %882 = vmatpush1.bf16.msra.mxu0 %v163
  %883 = vmatprep.subr.bf16.mxu0 0
  %884 = vmatpush1.bf16.msra.mxu0 0
  %885 = vmatprep.subr.bf16.mxu0 0
  %886 = vmatpush1.bf16.msra.mxu0 0
  %887 = vmatprep.subr.bf16.mxu0 0
  %888 = vmatpush1.bf16.msra.mxu0 0
  %889 = vmatprep.subr.bf16.mxu0 0
  %890 = vmatpush1.bf16.msra.mxu0 0
  %891 = vmatprep.subr.bf16.mxu0 0
  %892 = vmatpush1.bf16.msra.mxu0 0
  %893 = vmatprep.subr.bf16.mxu0 0
  %894 = vmatpush1.bf16.msra.mxu0 0
  %895 = vmatprep.subr.bf16.mxu0 0
  %896 = vmatpush1.bf16.msra.mxu0 0
  %897 = vmatprep.subr.bf16.mxu0 0
  %898 = vmatpush1.bf16.msra.mxu0 0
  %899 = vmatprep.mubr.bf16.mxu0 0
  %900 = vmatmul.mubr.bf16.gmra.mrb[0].mxu0 %v858
  %v901 = vpop.f32.mrb[0].mxu0
  %v902 = vadd.f32 0.0, %v901
  %v903 = vpop.f32.mrb[0].mxu0
  %v904 = vadd.f32 0.0, %v903
  %v905 = vpop.f32.mrb[0].mxu0
  %v906 = vpop.f32.mrb[0].mxu0
  %907 = vdwg.mxu0
  %908 = vmatprep.subr.bf16.mxu0 0
  %909 = vmatpush1.bf16.msra.mxu0 %v144
  %910 = vmatprep.subr.bf16.mxu0 0
  %911 = vmatpush1.bf16.msra.mxu0 %v147
  %912 = vmatprep.subr.bf16.mxu0 0
  %913 = vmatpush1.bf16.msra.mxu0 %v150
  %914 = vmatprep.subr.bf16.mxu0 0
  %915 = vmatpush1.bf16.msra.mxu0 %v153
  %916 = vmatprep.subr.bf16.mxu0 0
  %917 = vmatpush1.bf16.msra.mxu0 %v156
  %918 = vmatprep.subr.bf16.mxu0 0
  %919 = vmatpush1.bf16.msra.mxu0 %v159
  %920 = vmatprep.subr.bf16.mxu0 0
  %921 = vmatpush1.bf16.msra.mxu0 %v162
  %922 = vmatprep.subr.bf16.mxu0 0
  %923 = vmatpush1.bf16.msra.mxu0 %v165
  %924 = vmatprep.subr.bf16.mxu0 0
  %925 = vmatpush1.bf16.msra.mxu0 0
  %926 = vmatprep.subr.bf16.mxu0 0
  %927 = vmatpush1.bf16.msra.mxu0 0
  %928 = vmatprep.subr.bf16.mxu0 0
  %929 = vmatpush1.bf16.msra.mxu0 0
  %930 = vmatprep.subr.bf16.mxu0 0
  %931 = vmatpush1.bf16.msra.mxu0 0
  %932 = vmatprep.subr.bf16.mxu0 0
  %933 = vmatpush1.bf16.msra.mxu0 0
  %934 = vmatprep.subr.bf16.mxu0 0
  %935 = vmatpush1.bf16.msra.mxu0 0
  %936 = vmatprep.subr.bf16.mxu0 0
  %937 = vmatpush1.bf16.msra.mxu0 0
  %938 = vmatprep.subr.bf16.mxu0 0
  %939 = vmatpush1.bf16.msra.mxu0 0
  %940 = vmatprep.mubr.bf16.mxu0 0
  %941 = vmatmul.mubr.bf16.gmra.mrb[0].mxu0 %v858
  %v942 = vpop.f32.mrb[0].mxu0
  %v943 = vadd.f32 0.0, %v942
  %v944 = vpop.f32.mrb[0].mxu0
  %v945 = vpop.f32.mrb[0].mxu0
  %v946 = vpop.f32.mrb[0].mxu0
  %947 = vdwg.mxu0
  %v948 = vadd.f32 %v864, %v902
  %v949 = vxor.u32 %v948, 2147483648
  %v950 = vmul.f32 %v949, 1.442695
  %v951 = vpow.pop %v950
  %v952 = vadd.f32 %v951, 1.0
  %v953 = vrcp.pop %v952
  %v954 = vmul.f32 1.0, %v953
  %v955 = vadd.f32 %v865, %v904
  %v956 = vxor.u32 %v955, 2147483648
  %v957 = vmul.f32 %v956, 1.442695
  %v958 = vpow.pop %v957
  %v959 = vadd.f32 %v958, 1.0
  %v960 = vrcp.pop %v959
  %v961 = vmul.f32 1.0, %v960
  %v962 = vadd.f32 %v943, %v289
  %v963 = vmul.f32 %v954, %v962
  %v964 = vadd.f32 %v866, %v963
  %v965 = vtanh.pop %v964
  %v966 = vsub.f32 1.0, %v961
  %v967 = vmul.f32 %v966, %v965
  %v968 = vmul.f32 %v961, %v857
  %v969 = vadd.f32 %v967, %v968
  %v970 = vpack.c.bf16 %v969, %v969
  %s971 = scalar_lea.vmem %s3, 24
  %972 = vst [vmem:[%s971] sm:$0xf] %v970
  %s973 = scalar_lea.vmem %s0, 84
  %v974 = vld [vmem:[%s973] sm:$0xff]
  %v975 = vld [vmem:[%s973 + $0x8] sm:$0xf]
  %v976 = vunpack.c.l.bf16 %v974
  %v977 = vunpack.c.h.bf16 %v974
  %v978 = vunpack.c.l.bf16 %v975
  %979 = vmatprep.subr.bf16.mxu0 %v143
  %980 = vmatpush1.bf16.msra.mxu0 %v142
  %981 = vmatprep.subr.bf16.mxu0 %v146
  %982 = vmatpush1.bf16.msra.mxu0 %v145
  %983 = vmatprep.subr.bf16.mxu0 %v149
  %984 = vmatpush1.bf16.msra.mxu0 %v148
  %985 = vmatprep.subr.bf16.mxu0 %v152
  %986 = vmatpush1.bf16.msra.mxu0 %v151
  %987 = vmatprep.subr.bf16.mxu0 %v155
  %988 = vmatpush1.bf16.msra.mxu0 %v154
  %989 = vmatprep.subr.bf16.mxu0 %v158
  %990 = vmatpush1.bf16.msra.mxu0 %v157
  %991 = vmatprep.subr.bf16.mxu0 %v161
  %992 = vmatpush1.bf16.msra.mxu0 %v160
  %993 = vmatprep.subr.bf16.mxu0 %v164
  %994 = vmatpush1.bf16.msra.mxu0 %v163
  %995 = vmatprep.subr.bf16.mxu0 0
  %996 = vmatpush1.bf16.msra.mxu0 0
  %997 = vmatprep.subr.bf16.mxu0 0
  %998 = vmatpush1.bf16.msra.mxu0 0
  %999 = vmatprep.subr.bf16.mxu0 0
  %1000 = vmatpush1.bf16.msra.mxu0 0
  %1001 = vmatprep.subr.bf16.mxu0 0
  %1002 = vmatpush1.bf16.msra.mxu0 0
  %1003 = vmatprep.subr.bf16.mxu0 0
  %1004 = vmatpush1.bf16.msra.mxu0 0
  %1005 = vmatprep.subr.bf16.mxu0 0
  %1006 = vmatpush1.bf16.msra.mxu0 0
  %1007 = vmatprep.subr.bf16.mxu0 0
  %1008 = vmatpush1.bf16.msra.mxu0 0
  %1009 = vmatprep.subr.bf16.mxu0 0
  %1010 = vmatpush1.bf16.msra.mxu0 0
  %1011 = vmatprep.mubr.bf16.mxu0 0
  %1012 = vmatmul.mubr.bf16.gmra.mrb[0].mxu0 %v970
  %v1013 = vpop.f32.mrb[0].mxu0
  %v1014 = vadd.f32 0.0, %v1013
  %v1015 = vpop.f32.mrb[0].mxu0
  %v1016 = vadd.f32 0.0, %v1015
  %v1017 = vpop.f32.mrb[0].mxu0
  %v1018 = vpop.f32.mrb[0].mxu0
  %1019 = vdwg.mxu0
  %1020 = vmatprep.subr.bf16.mxu0 0
  %1021 = vmatpush1.bf16.msra.mxu0 %v144
  %1022 = vmatprep.subr.bf16.mxu0 0
  %1023 = vmatpush1.bf16.msra.mxu0 %v147
  %1024 = vmatprep.subr.bf16.mxu0 0
  %1025 = vmatpush1.bf16.msra.mxu0 %v150
  %1026 = vmatprep.subr.bf16.mxu0 0
  %1027 = vmatpush1.bf16.msra.mxu0 %v153
  %1028 = vmatprep.subr.bf16.mxu0 0
  %1029 = vmatpush1.bf16.msra.mxu0 %v156
  %1030 = vmatprep.subr.bf16.mxu0 0
  %1031 = vmatpush1.bf16.msra.mxu0 %v159
  %1032 = vmatprep.subr.bf16.mxu0 0
  %1033 = vmatpush1.bf16.msra.mxu0 %v162
  %1034 = vmatprep.subr.bf16.mxu0 0
  %1035 = vmatpush1.bf16.msra.mxu0 %v165
  %1036 = vmatprep.subr.bf16.mxu0 0
  %1037 = vmatpush1.bf16.msra.mxu0 0
  %1038 = vmatprep.subr.bf16.mxu0 0
  %1039 = vmatpush1.bf16.msra.mxu0 0
  %1040 = vmatprep.subr.bf16.mxu0 0
  %1041 = vmatpush1.bf16.msra.mxu0 0
  %1042 = vmatprep.subr.bf16.mxu0 0
  %1043 = vmatpush1.bf16.msra.mxu0 0
  %1044 = vmatprep.subr.bf16.mxu0 0
  %1045 = vmatpush1.bf16.msra.mxu0 0
  %1046 = vmatprep.subr.bf16.mxu0 0
  %1047 = vmatpush1.bf16.msra.mxu0 0
  %1048 = vmatprep.subr.bf16.mxu0 0
  %1049 = vmatpush1.bf16.msra.mxu0 0
  %1050 = vmatprep.subr.bf16.mxu0 0
  %1051 = vmatpush1.bf16.msra.mxu0 0
  %1052 = vmatprep.mubr.bf16.mxu0 0
  %1053 = vmatmul.mubr.bf16.gmra.mrb[0].mxu0 %v970
  %v1054 = vpop.f32.mrb[0].mxu0
  %v1055 = vadd.f32 0.0, %v1054
  %v1056 = vpop.f32.mrb[0].mxu0
  %v1057 = vpop.f32.mrb[0].mxu0
  %v1058 = vpop.f32.mrb[0].mxu0
  %1059 = vdwg.mxu0
  %v1060 = vadd.f32 %v976, %v1014
  %v1061 = vxor.u32 %v1060, 2147483648
  %v1062 = vmul.f32 %v1061, 1.442695
  %v1063 = vpow.pop %v1062
  %v1064 = vadd.f32 %v1063, 1.0
  %v1065 = vrcp.pop %v1064
  %v1066 = vmul.f32 1.0, %v1065
  %v1067 = vadd.f32 %v977, %v1016
  %v1068 = vxor.u32 %v1067, 2147483648
  %v1069 = vmul.f32 %v1068, 1.442695
  %v1070 = vpow.pop %v1069
  %v1071 = vadd.f32 %v1070, 1.0
  %v1072 = vrcp.pop %v1071
  %v1073 = vmul.f32 1.0, %v1072
  %v1074 = vadd.f32 %v1055, %v289
  %v1075 = vmul.f32 %v1066, %v1074
  %v1076 = vadd.f32 %v978, %v1075
  %v1077 = vtanh.pop %v1076
  %v1078 = vsub.f32 1.0, %v1073
  %v1079 = vmul.f32 %v1078, %v1077
  %v1080 = vmul.f32 %v1073, %v969
  %v1081 = vadd.f32 %v1079, %v1080
  %v1082 = vpack.c.bf16 %v1081, %v1081
  %s1083 = scalar_lea.vmem %s3, 28
  %1084 = vst [vmem:[%s1083] sm:$0xf] %v1082
  %1085 = vst [vmem:[#allocation2] sm:$0xff] %v1081
  // Predicated region
  $region18: #{encoder_forward.2} parent=0 // pred_check
    %p1086 = pneg %p17
  $region19: #{encoder_forward.2} parent=0 // pred_check_branch
    %1088 = sbr.rel (%p1086) target = $region21
  $region20: #{encoder_forward.2} parent=0 // pred_region
    %1089 = vst [vmem:[%s4] sm:$0xff] %v1081
  $region21: #{encoder_forward.2} parent=0 // pred_fallthru
    _
  // Predicated region
  $region22: #{encoder_forward.2} parent=0 // pred_check
    _
  $region23: #{encoder_forward.2} parent=0 // pred_check_branch
    %1091 = sbr.rel (0) target = $region25
  $region24: #{encoder_forward.2} parent=0 // pred_region
    _
  $region25: #{encoder_forward.2} parent=0 // pred_fallthru
    _
  // Predicated region
  $region26: #{encoder_forward.2} parent=0 // pred_check
    _
  $region27: #{encoder_forward.2} parent=0 // pred_check_branch
    %1093 = sbr.rel (0) target = $region29
  $region28: #{encoder_forward.2} parent=0 // pred_region
    _
  $region29: #{encoder_forward.2} parent=0 // pred_fallthru
    _
  // Predicated region
  $region30: #{encoder_forward.2} parent=0 // pred_check
    _
  $region31: #{encoder_forward.2} parent=0 // pred_check_branch
    %1095 = sbr.rel (0) target = $region33
  $region32: #{encoder_forward.2} parent=0 // pred_region
    _
  $region33: #{encoder_forward.2} parent=0 // pred_fallthru
    _
  // Predicated region
  $region34: #{encoder_forward.2} parent=0 // pred_check
    _
  $region35: #{encoder_forward.2} parent=0 // pred_check_branch
    %1097 = sbr.rel (0) target = $region37
  $region36: #{encoder_forward.2} parent=0 // pred_region
    _
  $region37: #{encoder_forward.2} parent=0 // pred_fallthru
    _

// kernel: encoder_forward.3
$region0: #{encoder_forward.3}
  #allocation0 [shape = 'u32[]', space=smem, size = 0x4, offset = 0x4, fixed_abs, tag = 'smem constant byte address 0x4 - core index']
  #allocation1 [shape = 'u32[144,128]{1,0:T(1,128)}', space=vmem, size = 0x12000, scoped, tag = 'internal scratch']
  #allocation2 [shape = 'f32[8,128]{1,0:T(8,128)}', space=vmem, size = 0x1000, scoped, tag = 'scratch operand']
  %s0 = inlined_call_operand.vmem [shape: bf16[8,8,384], index: 0, kind: input, shape index: {}]
  %s1 = inlined_call_operand.vmem [shape: bf16[128,384], index: 1, kind: input, shape index: {}]
  %s2 = inlined_call_operand.vmem [shape: f32[1,128], index: 2, kind: input, shape index: {}]
  %s3 = inlined_call_operand.vmem [shape: f32[8,8,128], index: 3, kind: output, shape index: {0}]
  %s4 = inlined_call_operand.vmem [shape: f32[8,128], index: 4, kind: output, shape index: {1}]
  %5 = xla_tuple %s3, %s4
  %s6 = sld [smem:[#allocation0]]
  $region38: #{encoder_forward.3} parent=0
    _
  %s8 = ssub.s32 1, %s6
  %s9 = scalar_select 0, %s8, %s6
  // Predicated region
  $region2: #{encoder_forward.3} parent=0 // pred_check
    _
  $region3: #{encoder_forward.3} parent=0 // pred_check_branch
    %11 = sbr.rel (0) target = $region5
  $region4: #{encoder_forward.3} parent=0 // pred_region
    _
  $region5: #{encoder_forward.3} parent=0 // pred_fallthru
    _
  // Predicated region
  $region6: #{encoder_forward.3} parent=0 // pred_check
    _
  $region7: #{encoder_forward.3} parent=0 // pred_check_branch
    %13 = sbr.rel (0) target = $region9
  $region8: #{encoder_forward.3} parent=0 // pred_region
    _
  $region9: #{encoder_forward.3} parent=0 // pred_fallthru
    _
  // Predicated region
  $region10: #{encoder_forward.3} parent=0 // pred_check
    _
  $region11: #{encoder_forward.3} parent=0 // pred_check_branch
    %15 = sbr.rel (0) target = $region13
  $region12: #{encoder_forward.3} parent=0 // pred_region
    _
  $region13: #{encoder_forward.3} parent=0 // pred_fallthru
    _
  %p17 = scmp.eq.s32.totalorder 0, 0
  // Predicated region
  $region14: #{encoder_forward.3} parent=0 // pred_check
    %p18 = pneg %p17
  $region15: #{encoder_forward.3} parent=0 // pred_check_branch
    %20 = sbr.rel (%p18) target = $region17
  $region16: #{encoder_forward.3} parent=0 // pred_region
    %21 = vst [vmem:[#allocation2] sm:$0xff] 0.0
  $region17: #{encoder_forward.3} parent=0 // pred_fallthru
    _
  %v22 = vld [vmem:[%s1] sm:$0xff]
  %v23 = vld [vmem:[%s1 + $0x8] sm:$0xf]
  %v24 = vld [vmem:[%s1 + $0xc] sm:$0xff]
  %v25 = vld [vmem:[%s1 + $0x14] sm:$0xf]
  %v26 = vld [vmem:[%s1 + $0x18] sm:$0xff]
  %v27 = vld [vmem:[%s1 + $0x20] sm:$0xf]
  %v28 = vld [vmem:[%s1 + $0x24] sm:$0xff]
  %v29 = vld [vmem:[%s1 + $0x2c] sm:$0xf]
  %v30 = vld [vmem:[%s1 + $0x30] sm:$0xff]
  %v31 = vld [vmem:[%s1 + $0x38] sm:$0xf]
  %v32 = vld [vmem:[%s1 + $0x3c] sm:$0xff]
  %v33 = vld [vmem:[%s1 + $0x44] sm:$0xf]
  %v34 = vld [vmem:[%s1 + $0x48] sm:$0xff]
  %v35 = vld [vmem:[%s1 + $0x50] sm:$0xf]
  %v36 = vld [vmem:[%s1 + $0x54] sm:$0xff]
  %v37 = vld [vmem:[%s1 + $0x5c] sm:$0xf]
  %v38 = vld [vmem:[%s1 + $0x60] sm:$0xff]
  %v39 = vld [vmem:[%s1 + $0x68] sm:$0xf]
  %v40 = vld [vmem:[%s1 + $0x6c] sm:$0xff]
  %v41 = vld [vmem:[%s1 + $0x74] sm:$0xf]
  %v42 = vld [vmem:[%s1 + $0x78] sm:$0xff]
  %v43 = vld [vmem:[%s1 + $0x80] sm:$0xf]
  %v44 = vld [vmem:[%s1 + $0x84] sm:$0xff]
  %v45 = vld [vmem:[%s1 + $0x8c] sm:$0xf]
  %v46 = vld [vmem:[%s1 + $0x90] sm:$0xff]
  %v47 = vld [vmem:[%s1 + $0x98] sm:$0xf]
  %v48 = vld [vmem:[%s1 + $0x9c] sm:$0xff]
  %v49 = vld [vmem:[%s1 + $0xa4] sm:$0xf]
  %v50 = vld [vmem:[%s1 + $0xa8] sm:$0xff]
  %v51 = vld [vmem:[%s1 + $0xb0] sm:$0xf]
  %v52 = vld [vmem:[%s1 + $0xb4] sm:$0xff]
  %v53 = vld [vmem:[%s1 + $0xbc] sm:$0xf]
  %v54 = vld [vmem:[%s2] sm:$0x1]
  %v55 = vld [vmem:[#allocation2] sm:$0xff]
  %v56 = vld [vmem:[%s0] sm:$0xff]
  %v57 = vld [vmem:[%s0 + $0x8] sm:$0xf]
  %v58 = vunpack.c.l.bf16 %v56
  %v59 = vunpack.c.h.bf16 %v56
  %v60 = vunpack.c.l.bf16 %v57
  %v61 = vpack.c.bf16 %v55, %v55
  %v94 = vunpack.c.l.b16 %v22
  %v95 = vunpack.c.h.b16 %v22
  %v96 = vunpack.c.l.b16 %v23
  %v97 = vunpack.c.l.b16 %v24
  %v98 = vunpack.c.h.b16 %v24
  %v99 = vunpack.c.l.b16 %v25
  %v100 = vunpack.c.l.b16 %v26
  %v101 = vunpack.c.h.b16 %v26
  %v102 = vunpack.c.l.b16 %v27
  %v103 = vunpack.c.l.b16 %v28
  %v104 = vunpack.c.h.b16 %v28
  %v105 = vunpack.c.l.b16 %v29
  %v106 = vunpack.c.l.b16 %v30
  %v107 = vunpack.c.h.b16 %v30
  %v108 = vunpack.c.l.b16 %v31
  %v109 = vunpack.c.l.b16 %v32
  %v110 = vunpack.c.h.b16 %v32
  %v111 = vunpack.c.l.b16 %v33
  %v112 = vunpack.c.l.b16 %v34
  %v113 = vunpack.c.h.b16 %v34
  %v114 = vunpack.c.l.b16 %v35
  %v115 = vunpack.c.l.b16 %v36
  %v116 = vunpack.c.h.b16 %v36
  %v117 = vunpack.c.l.b16 %v37
  %v118 = vunpack.c.l.b16 %v38
  %v119 = vunpack.c.h.b16 %v38
  %v120 = vunpack.c.l.b16 %v39
  %v121 = vunpack.c.l.b16 %v40
  %v122 = vunpack.c.h.b16 %v40
  %v123 = vunpack.c.l.b16 %v41
  %v124 = vunpack.c.l.b16 %v42
  %v125 = vunpack.c.h.b16 %v42
  %v126 = vunpack.c.l.b16 %v43
  %v127 = vunpack.c.l.b16 %v44
  %v128 = vunpack.c.h.b16 %v44
  %v129 = vunpack.c.l.b16 %v45
  %v130 = vunpack.c.l.b16 %v46
  %v131 = vunpack.c.h.b16 %v46
  %v132 = vunpack.c.l.b16 %v47
  %v133 = vunpack.c.l.b16 %v48
  %v134 = vunpack.c.h.b16 %v48
  %v135 = vunpack.c.l.b16 %v49
  %v136 = vunpack.c.l.b16 %v50
  %v137 = vunpack.c.h.b16 %v50
  %v138 = vunpack.c.l.b16 %v51
  %v139 = vunpack.c.l.b16 %v52
  %v140 = vunpack.c.h.b16 %v52
  %v141 = vunpack.c.l.b16 %v53
  %v142 = vpack.c.b16 %v97, %v94
  %v143 = vpack.c.b16 %v98, %v95
  %v144 = vpack.c.b16 %v99, %v96
  %v145 = vpack.c.b16 %v103, %v100
  %v146 = vpack.c.b16 %v104, %v101
  %v147 = vpack.c.b16 %v105, %v102
  %v148 = vpack.c.b16 %v109, %v106
  %v149 = vpack.c.b16 %v110, %v107
  %v150 = vpack.c.b16 %v111, %v108
  %v151 = vpack.c.b16 %v115, %v112
  %v152 = vpack.c.b16 %v116, %v113
  %v153 = vpack.c.b16 %v117, %v114
  %v154 = vpack.c.b16 %v121, %v118
  %v155 = vpack.c.b16 %v122, %v119
  %v156 = vpack.c.b16 %v123, %v120
  %v157 = vpack.c.b16 %v127, %v124
  %v158 = vpack.c.b16 %v128, %v125
  %v159 = vpack.c.b16 %v129, %v126
  %v160 = vpack.c.b16 %v133, %v130
  %v161 = vpack.c.b16 %v134, %v131
  %v162 = vpack.c.b16 %v135, %v132
  %v163 = vpack.c.b16 %v139, %v136
  %v164 = vpack.c.b16 %v140, %v137
  %v165 = vpack.c.b16 %v141, %v138
  %190 = vmatprep.subr.bf16.mxu0 %v143
  %191 = vmatpush1.bf16.msra.mxu0 %v142
  %192 = vmatprep.subr.bf16.mxu0 %v146
  %193 = vmatpush1.bf16.msra.mxu0 %v145
  %194 = vmatprep.subr.bf16.mxu0 %v149
  %195 = vmatpush1.bf16.msra.mxu0 %v148
  %196 = vmatprep.subr.bf16.mxu0 %v152
  %197 = vmatpush1.bf16.msra.mxu0 %v151
  %198 = vmatprep.subr.bf16.mxu0 %v155
  %199 = vmatpush1.bf16.msra.mxu0 %v154
  %200 = vmatprep.subr.bf16.mxu0 %v158
  %201 = vmatpush1.bf16.msra.mxu0 %v157
  %202 = vmatprep.subr.bf16.mxu0 %v161
  %203 = vmatpush1.bf16.msra.mxu0 %v160
  %204 = vmatprep.subr.bf16.mxu0 %v164
  %205 = vmatpush1.bf16.msra.mxu0 %v163
  %206 = vmatprep.subr.bf16.mxu0 0
  %207 = vmatpush1.bf16.msra.mxu0 0
  %208 = vmatprep.subr.bf16.mxu0 0
  %209 = vmatpush1.bf16.msra.mxu0 0
  %210 = vmatprep.subr.bf16.mxu0 0
  %211 = vmatpush1.bf16.msra.mxu0 0
  %212 = vmatprep.subr.bf16.mxu0 0
  %213 = vmatpush1.bf16.msra.mxu0 0
  %214 = vmatprep.subr.bf16.mxu0 0
  %215 = vmatpush1.bf16.msra.mxu0 0
  %216 = vmatprep.subr.bf16.mxu0 0
  %217 = vmatpush1.bf16.msra.mxu0 0
  %218 = vmatprep.subr.bf16.mxu0 0
  %219 = vmatpush1.bf16.msra.mxu0 0
  %220 = vmatprep.subr.bf16.mxu0 0
  %221 = vmatpush1.bf16.msra.mxu0 0
  %222 = vmatprep.mubr.bf16.mxu0 0
  %223 = vmatmul.mubr.bf16.gmra.mrb[0].mxu0 %v61
  %v224 = vpop.f32.mrb[0].mxu0
  %v225 = vadd.f32 0.0, %v224
  %v226 = vpop.f32.mrb[0].mxu0
  %v227 = vadd.f32 0.0, %v226
  %v228 = vpop.f32.mrb[0].mxu0
  %v229 = vpop.f32.mrb[0].mxu0
  %230 = vdwg.mxu0
  %231 = vmatprep.subr.bf16.mxu0 0
  %232 = vmatpush1.bf16.msra.mxu0 %v144
  %233 = vmatprep.subr.bf16.mxu0 0
  %234 = vmatpush1.bf16.msra.mxu0 %v147
  %235 = vmatprep.subr.bf16.mxu0 0
  %236 = vmatpush1.bf16.msra.mxu0 %v150
  %237 = vmatprep.subr.bf16.mxu0 0
  %238 = vmatpush1.bf16.msra.mxu0 %v153
  %239 = vmatprep.subr.bf16.mxu0 0
  %240 = vmatpush1.bf16.msra.mxu0 %v156
  %241 = vmatprep.subr.bf16.mxu0 0
  %242 = vmatpush1.bf16.msra.mxu0 %v159
  %243 = vmatprep.subr.bf16.mxu0 0
  %244 = vmatpush1.bf16.msra.mxu0 %v162
  %245 = vmatprep.subr.bf16.mxu0 0
  %246 = vmatpush1.bf16.msra.mxu0 %v165
  %247 = vmatprep.subr.bf16.mxu0 0
  %248 = vmatpush1.bf16.msra.mxu0 0
  %249 = vmatprep.subr.bf16.mxu0 0
  %250 = vmatpush1.bf16.msra.mxu0 0
  %251 = vmatprep.subr.bf16.mxu0 0
  %252 = vmatpush1.bf16.msra.mxu0 0
  %253 = vmatprep.subr.bf16.mxu0 0
  %254 = vmatpush1.bf16.msra.mxu0 0
  %255 = vmatprep.subr.bf16.mxu0 0
  %256 = vmatpush1.bf16.msra.mxu0 0
  %257 = vmatprep.subr.bf16.mxu0 0
  %258 = vmatpush1.bf16.msra.mxu0 0
  %259 = vmatprep.subr.bf16.mxu0 0
  %260 = vmatpush1.bf16.msra.mxu0 0
  %261 = vmatprep.subr.bf16.mxu0 0
  %262 = vmatpush1.bf16.msra.mxu0 0
  %263 = vmatprep.mubr.bf16.mxu0 0
  %264 = vmatmul.mubr.bf16.gmra.mrb[0].mxu0 %v61
  %v265 = vpop.f32.mrb[0].mxu0
  %v266 = vadd.f32 0.0, %v265
  %v267 = vpop.f32.mrb[0].mxu0
  %v268 = vpop.f32.mrb[0].mxu0
  %v269 = vpop.f32.mrb[0].mxu0
  %270 = vdwg.mxu0
  %v271 = vadd.f32 %v58, %v225
  %v272 = vxor.u32 %v271, 2147483648
  %v273 = vmul.f32 %v272, 1.442695
  %v274 = vpow.pop %v273
  %v275 = vadd.f32 %v274, 1.0
  %v276 = vrcp.pop %v275
  %v277 = vmul.f32 1.0, %v276
  %v278 = vadd.f32 %v59, %v227
  %v279 = vxor.u32 %v278, 2147483648
  %v280 = vmul.f32 %v279, 1.442695
  %v281 = vpow.pop %v280
  %v282 = vadd.f32 %v281, 1.0
  %v283 = vrcp.pop %v282
  %v284 = vmul.f32 1.0, %v283
  %v286 = vlaneseq
  %v287 = vshrl.u32 %v286, 7
  %v288 = vsub.s32 0, %v287
  %v289 = vrot.slane %v54, %v288
  %v291 = vadd.f32 %v266, %v289
  %v292 = vmul.f32 %v277, %v291
  %v293 = vadd.f32 %v60, %v292
  %v294 = vtanh.pop %v293
  %v295 = vsub.f32 1.0, %v284
  %v296 = vmul.f32 %v295, %v294
  %v297 = vmul.f32 %v284, %v55
  %v298 = vadd.f32 %v296, %v297
  %299 = vst [vmem:[%s3] sm:$0xff] %v298
  %s300 = scalar_lea.vmem %s0, 12
  %v301 = vld [vmem:[%s300] sm:$0xff]
  %v302 = vld [vmem:[%s300 + $0x8] sm:$0xf]
  %v303 = vunpack.c.l.bf16 %v301
  %v304 = vunpack.c.h.bf16 %v301
  %v305 = vunpack.c.l.bf16 %v302
  %v306 = vpack.c.bf16 %v298, %v298
  %307 = vmatprep.subr.bf16.mxu0 %v143
  %308 = vmatpush1.bf16.msra.mxu0 %v142
  %309 = vmatprep.subr.bf16.mxu0 %v146
  %310 = vmatpush1.bf16.msra.mxu0 %v145
  %311 = vmatprep.subr.bf16.mxu0 %v149
  %312 = vmatpush1.bf16.msra.mxu0 %v148
  %313 = vmatprep.subr.bf16.mxu0 %v152
  %314 = vmatpush1.bf16.msra.mxu0 %v151
  %315 = vmatprep.subr.bf16.mxu0 %v155
  %316 = vmatpush1.bf16.msra.mxu0 %v154
  %317 = vmatprep.subr.bf16.mxu0 %v158
  %318 = vmatpush1.bf16.msra.mxu0 %v157
  %319 = vmatprep.subr.bf16.mxu0 %v161
  %320 = vmatpush1.bf16.msra.mxu0 %v160
  %321 = vmatprep.subr.bf16.mxu0 %v164
  %322 = vmatpush1.bf16.msra.mxu0 %v163
  %323 = vmatprep.subr.bf16.mxu0 0
  %324 = vmatpush1.bf16.msra.mxu0 0
  %325 = vmatprep.subr.bf16.mxu0 0
  %326 = vmatpush1.bf16.msra.mxu0 0
  %327 = vmatprep.subr.bf16.mxu0 0
  %328 = vmatpush1.bf16.msra.mxu0 0
  %329 = vmatprep.subr.bf16.mxu0 0
  %330 = vmatpush1.bf16.msra.mxu0 0
  %331 = vmatprep.subr.bf16.mxu0 0
  %332 = vmatpush1.bf16.msra.mxu0 0
  %333 = vmatprep.subr.bf16.mxu0 0
  %334 = vmatpush1.bf16.msra.mxu0 0
  %335 = vmatprep.subr.bf16.mxu0 0
  %336 = vmatpush1.bf16.msra.mxu0 0
  %337 = vmatprep.subr.bf16.mxu0 0
  %338 = vmatpush1.bf16.msra.mxu0 0
  %339 = vmatprep.mubr.bf16.mxu0 0
  %340 = vmatmul.mubr.bf16.gmra.mrb[0].mxu0 %v306
  %v341 = vpop.f32.mrb[0].mxu0
  %v342 = vadd.f32 0.0, %v341
  %v343 = vpop.f32.mrb[0].mxu0
  %v344 = vadd.f32 0.0, %v343
  %v345 = vpop.f32.mrb[0].mxu0
  %v346 = vpop.f32.mrb[0].mxu0
  %347 = vdwg.mxu0
  %348 = vmatprep.subr.bf16.mxu0 0
  %349 = vmatpush1.bf16.msra.mxu0 %v144
  %350 = vmatprep.subr.bf16.mxu0 0
  %351 = vmatpush1.bf16.msra.mxu0 %v147
  %352 = vmatprep.subr.bf16.mxu0 0
  %353 = vmatpush1.bf16.msra.mxu0 %v150
  %354 = vmatprep.subr.bf16.mxu0 0
  %355 = vmatpush1.bf16.msra.mxu0 %v153
  %356 = vmatprep.subr.bf16.mxu0 0
  %357 = vmatpush1.bf16.msra.mxu0 %v156
  %358 = vmatprep.subr.bf16.mxu0 0
  %359 = vmatpush1.bf16.msra.mxu0 %v159
  %360 = vmatprep.subr.bf16.mxu0 0
  %361 = vmatpush1.bf16.msra.mxu0 %v162
  %362 = vmatprep.subr.bf16.mxu0 0
  %363 = vmatpush1.bf16.msra.mxu0 %v165
  %364 = vmatprep.subr.bf16.mxu0 0
  %365 = vmatpush1.bf16.msra.mxu0 0
  %366 = vmatprep.subr.bf16.mxu0 0
  %367 = vmatpush1.bf16.msra.mxu0 0
  %368 = vmatprep.subr.bf16.mxu0 0
  %369 = vmatpush1.bf16.msra.mxu0 0
  %370 = vmatprep.subr.bf16.mxu0 0
  %371 = vmatpush1.bf16.msra.mxu0 0
  %372 = vmatprep.subr.bf16.mxu0 0
  %373 = vmatpush1.bf16.msra.mxu0 0
  %374 = vmatprep.subr.bf16.mxu0 0
  %375 = vmatpush1.bf16.msra.mxu0 0
  %376 = vmatprep.subr.bf16.mxu0 0
  %377 = vmatpush1.bf16.msra.mxu0 0
  %378 = vmatprep.subr.bf16.mxu0 0
  %379 = vmatpush1.bf16.msra.mxu0 0
  %380 = vmatprep.mubr.bf16.mxu0 0
  %381 = vmatmul.mubr.bf16.gmra.mrb[0].mxu0 %v306
  %v382 = vpop.f32.mrb[0].mxu0
  %v383 = vadd.f32 0.0, %v382
  %v384 = vpop.f32.mrb[0].mxu0
  %v385 = vpop.f32.mrb[0].mxu0
  %v386 = vpop.f32.mrb[0].mxu0
  %387 = vdwg.mxu0
  %v388 = vadd.f32 %v303, %v342
  %v389 = vxor.u32 %v388, 2147483648
  %v390 = vmul.f32 %v389, 1.442695
  %v391 = vpow.pop %v390
  %v392 = vadd.f32 %v391, 1.0
  %v393 = vrcp.pop %v392
  %v394 = vmul.f32 1.0, %v393
  %v395 = vadd.f32 %v304, %v344
  %v396 = vxor.u32 %v395, 2147483648
  %v397 = vmul.f32 %v396, 1.442695
  %v398 = vpow.pop %v397
  %v399 = vadd.f32 %v398, 1.0
  %v400 = vrcp.pop %v399
  %v401 = vmul.f32 1.0, %v400
  %v402 = vadd.f32 %v383, %v289
  %v403 = vmul.f32 %v394, %v402
  %v404 = vadd.f32 %v305, %v403
  %v405 = vtanh.pop %v404
  %v406 = vsub.f32 1.0, %v401
  %v407 = vmul.f32 %v406, %v405
  %v408 = vmul.f32 %v401, %v298
  %v409 = vadd.f32 %v407, %v408
  %s410 = scalar_lea.vmem %s3, 8
  %411 = vst [vmem:[%s410] sm:$0xff] %v409
  %s412 = scalar_lea.vmem %s0, 24
  %v413 = vld [vmem:[%s412] sm:$0xff]
  %v414 = vld [vmem:[%s412 + $0x8] sm:$0xf]
  %v415 = vunpack.c.l.bf16 %v413
  %v416 = vunpack.c.h.bf16 %v413
  %v417 = vunpack.c.l.bf16 %v414
  %v418 = vpack.c.bf16 %v409, %v409
  %419 = vmatprep.subr.bf16.mxu0 %v143
  %420 = vmatpush1.bf16.msra.mxu0 %v142
  %421 = vmatprep.subr.bf16.mxu0 %v146
  %422 = vmatpush1.bf16.msra.mxu0 %v145
  %423 = vmatprep.subr.bf16.mxu0 %v149
  %424 = vmatpush1.bf16.msra.mxu0 %v148
  %425 = vmatprep.subr.bf16.mxu0 %v152
  %426 = vmatpush1.bf16.msra.mxu0 %v151
  %427 = vmatprep.subr.bf16.mxu0 %v155
  %428 = vmatpush1.bf16.msra.mxu0 %v154
  %429 = vmatprep.subr.bf16.mxu0 %v158
  %430 = vmatpush1.bf16.msra.mxu0 %v157
  %431 = vmatprep.subr.bf16.mxu0 %v161
  %432 = vmatpush1.bf16.msra.mxu0 %v160
  %433 = vmatprep.subr.bf16.mxu0 %v164
  %434 = vmatpush1.bf16.msra.mxu0 %v163
  %435 = vmatprep.subr.bf16.mxu0 0
  %436 = vmatpush1.bf16.msra.mxu0 0
  %437 = vmatprep.subr.bf16.mxu0 0
  %438 = vmatpush1.bf16.msra.mxu0 0
  %439 = vmatprep.subr.bf16.mxu0 0
  %440 = vmatpush1.bf16.msra.mxu0 0
  %441 = vmatprep.subr.bf16.mxu0 0
  %442 = vmatpush1.bf16.msra.mxu0 0
  %443 = vmatprep.subr.bf16.mxu0 0
  %444 = vmatpush1.bf16.msra.mxu0 0
  %445 = vmatprep.subr.bf16.mxu0 0
  %446 = vmatpush1.bf16.msra.mxu0 0
  %447 = vmatprep.subr.bf16.mxu0 0
  %448 = vmatpush1.bf16.msra.mxu0 0
  %449 = vmatprep.subr.bf16.mxu0 0
  %450 = vmatpush1.bf16.msra.mxu0 0
  %451 = vmatprep.mubr.bf16.mxu0 0
  %452 = vmatmul.mubr.bf16.gmra.mrb[0].mxu0 %v418
  %v453 = vpop.f32.mrb[0].mxu0
  %v454 = vadd.f32 0.0, %v453
  %v455 = vpop.f32.mrb[0].mxu0
  %v456 = vadd.f32 0.0, %v455
  %v457 = vpop.f32.mrb[0].mxu0
  %v458 = vpop.f32.mrb[0].mxu0
  %459 = vdwg.mxu0
  %460 = vmatprep.subr.bf16.mxu0 0
  %461 = vmatpush1.bf16.msra.mxu0 %v144
  %462 = vmatprep.subr.bf16.mxu0 0
  %463 = vmatpush1.bf16.msra.mxu0 %v147
  %464 = vmatprep.subr.bf16.mxu0 0
  %465 = vmatpush1.bf16.msra.mxu0 %v150
  %466 = vmatprep.subr.bf16.mxu0 0
  %467 = vmatpush1.bf16.msra.mxu0 %v153
  %468 = vmatprep.subr.bf16.mxu0 0
  %469 = vmatpush1.bf16.msra.mxu0 %v156
  %470 = vmatprep.subr.bf16.mxu0 0
  %471 = vmatpush1.bf16.msra.mxu0 %v159
  %472 = vmatprep.subr.bf16.mxu0 0
  %473 = vmatpush1.bf16.msra.mxu0 %v162
  %474 = vmatprep.subr.bf16.mxu0 0
  %475 = vmatpush1.bf16.msra.mxu0 %v165
  %476 = vmatprep.subr.bf16.mxu0 0
  %477 = vmatpush1.bf16.msra.mxu0 0
  %478 = vmatprep.subr.bf16.mxu0 0
  %479 = vmatpush1.bf16.msra.mxu0 0
  %480 = vmatprep.subr.bf16.mxu0 0
  %481 = vmatpush1.bf16.msra.mxu0 0
  %482 = vmatprep.subr.bf16.mxu0 0
  %483 = vmatpush1.bf16.msra.mxu0 0
  %484 = vmatprep.subr.bf16.mxu0 0
  %485 = vmatpush1.bf16.msra.mxu0 0
  %486 = vmatprep.subr.bf16.mxu0 0
  %487 = vmatpush1.bf16.msra.mxu0 0
  %488 = vmatprep.subr.bf16.mxu0 0
  %489 = vmatpush1.bf16.msra.mxu0 0
  %490 = vmatprep.subr.bf16.mxu0 0
  %491 = vmatpush1.bf16.msra.mxu0 0
  %492 = vmatprep.mubr.bf16.mxu0 0
  %493 = vmatmul.mubr.bf16.gmra.mrb[0].mxu0 %v418
  %v494 = vpop.f32.mrb[0].mxu0
  %v495 = vadd.f32 0.0, %v494
  %v496 = vpop.f32.mrb[0].mxu0
  %v497 = vpop.f32.mrb[0].mxu0
  %v498 = vpop.f32.mrb[0].mxu0
  %499 = vdwg.mxu0
  %v500 = vadd.f32 %v415, %v454
  %v501 = vxor.u32 %v500, 2147483648
  %v502 = vmul.f32 %v501, 1.442695
  %v503 = vpow.pop %v502
  %v504 = vadd.f32 %v503, 1.0
  %v505 = vrcp.pop %v504
  %v506 = vmul.f32 1.0, %v505
  %v507 = vadd.f32 %v416, %v456
  %v508 = vxor.u32 %v507, 2147483648
  %v509 = vmul.f32 %v508, 1.442695
  %v510 = vpow.pop %v509
  %v511 = vadd.f32 %v510, 1.0
  %v512 = vrcp.pop %v511
  %v513 = vmul.f32 1.0, %v512
  %v514 = vadd.f32 %v495, %v289
  %v515 = vmul.f32 %v506, %v514
  %v516 = vadd.f32 %v417, %v515
  %v517 = vtanh.pop %v516
  %v518 = vsub.f32 1.0, %v513
  %v519 = vmul.f32 %v518, %v517
  %v520 = vmul.f32 %v513, %v409
  %v521 = vadd.f32 %v519, %v520
  %s522 = scalar_lea.vmem %s3, 16
  %523 = vst [vmem:[%s522] sm:$0xff] %v521
  %s524 = scalar_lea.vmem %s0, 36
  %v525 = vld [vmem:[%s524] sm:$0xff]
  %v526 = vld [vmem:[%s524 + $0x8] sm:$0xf]
  %v527 = vunpack.c.l.bf16 %v525
  %v528 = vunpack.c.h.bf16 %v525
  %v529 = vunpack.c.l.bf16 %v526
  %v530 = vpack.c.bf16 %v521, %v521
  %531 = vmatprep.subr.bf16.mxu0 %v143
  %532 = vmatpush1.bf16.msra.mxu0 %v142
  %533 = vmatprep.subr.bf16.mxu0 %v146
  %534 = vmatpush1.bf16.msra.mxu0 %v145
  %535 = vmatprep.subr.bf16.mxu0 %v149
  %536 = vmatpush1.bf16.msra.mxu0 %v148
  %537 = vmatprep.subr.bf16.mxu0 %v152
  %538 = vmatpush1.bf16.msra.mxu0 %v151
  %539 = vmatprep.subr.bf16.mxu0 %v155
  %540 = vmatpush1.bf16.msra.mxu0 %v154
  %541 = vmatprep.subr.bf16.mxu0 %v158
  %542 = vmatpush1.bf16.msra.mxu0 %v157
  %543 = vmatprep.subr.bf16.mxu0 %v161
  %544 = vmatpush1.bf16.msra.mxu0 %v160
  %545 = vmatprep.subr.bf16.mxu0 %v164
  %546 = vmatpush1.bf16.msra.mxu0 %v163
  %547 = vmatprep.subr.bf16.mxu0 0
  %548 = vmatpush1.bf16.msra.mxu0 0
  %549 = vmatprep.subr.bf16.mxu0 0
  %550 = vmatpush1.bf16.msra.mxu0 0
  %551 = vmatprep.subr.bf16.mxu0 0
  %552 = vmatpush1.bf16.msra.mxu0 0
  %553 = vmatprep.subr.bf16.mxu0 0
  %554 = vmatpush1.bf16.msra.mxu0 0
  %555 = vmatprep.subr.bf16.mxu0 0
  %556 = vmatpush1.bf16.msra.mxu0 0
  %557 = vmatprep.subr.bf16.mxu0 0
  %558 = vmatpush1.bf16.msra.mxu0 0
  %559 = vmatprep.subr.bf16.mxu0 0
  %560 = vmatpush1.bf16.msra.mxu0 0
  %561 = vmatprep.subr.bf16.mxu0 0
  %562 = vmatpush1.bf16.msra.mxu0 0
  %563 = vmatprep.mubr.bf16.mxu0 0
  %564 = vmatmul.mubr.bf16.gmra.mrb[0].mxu0 %v530
  %v565 = vpop.f32.mrb[0].mxu0
  %v566 = vadd.f32 0.0, %v565
  %v567 = vpop.f32.mrb[0].mxu0
  %v568 = vadd.f32 0.0, %v567
  %v569 = vpop.f32.mrb[0].mxu0
  %v570 = vpop.f32.mrb[0].mxu0
  %571 = vdwg.mxu0
  %572 = vmatprep.subr.bf16.mxu0 0
  %573 = vmatpush1.bf16.msra.mxu0 %v144
  %574 = vmatprep.subr.bf16.mxu0 0
  %575 = vmatpush1.bf16.msra.mxu0 %v147
  %576 = vmatprep.subr.bf16.mxu0 0
  %577 = vmatpush1.bf16.msra.mxu0 %v150
  %578 = vmatprep.subr.bf16.mxu0 0
  %579 = vmatpush1.bf16.msra.mxu0 %v153
  %580 = vmatprep.subr.bf16.mxu0 0
  %581 = vmatpush1.bf16.msra.mxu0 %v156
  %582 = vmatprep.subr.bf16.mxu0 0
  %583 = vmatpush1.bf16.msra.mxu0 %v159
  %584 = vmatprep.subr.bf16.mxu0 0
  %585 = vmatpush1.bf16.msra.mxu0 %v162
  %586 = vmatprep.subr.bf16.mxu0 0
  %587 = vmatpush1.bf16.msra.mxu0 %v165
  %588 = vmatprep.subr.bf16.mxu0 0
  %589 = vmatpush1.bf16.msra.mxu0 0
  %590 = vmatprep.subr.bf16.mxu0 0
  %591 = vmatpush1.bf16.msra.mxu0 0
  %592 = vmatprep.subr.bf16.mxu0 0
  %593 = vmatpush1.bf16.msra.mxu0 0
  %594 = vmatprep.subr.bf16.mxu0 0
  %595 = vmatpush1.bf16.msra.mxu0 0
  %596 = vmatprep.subr.bf16.mxu0 0
  %597 = vmatpush1.bf16.msra.mxu0 0
  %598 = vmatprep.subr.bf16.mxu0 0
  %599 = vmatpush1.bf16.msra.mxu0 0
  %600 = vmatprep.subr.bf16.mxu0 0
  %601 = vmatpush1.bf16.msra.mxu0 0
  %602 = vmatprep.subr.bf16.mxu0 0
  %603 = vmatpush1.bf16.msra.mxu0 0
  %604 = vmatprep.mubr.bf16.mxu0 0
  %605 = vmatmul.mubr.bf16.gmra.mrb[0].mxu0 %v530
  %v606 = vpop.f32.mrb[0].mxu0
  %v607 = vadd.f32 0.0, %v606
  %v608 = vpop.f32.mrb[0].mxu0
  %v609 = vpop.f32.mrb[0].mxu0
  %v610 = vpop.f32.mrb[0].mxu0
  %611 = vdwg.mxu0
  %v612 = vadd.f32 %v527, %v566
  %v613 = vxor.u32 %v612, 2147483648
  %v614 = vmul.f32 %v613, 1.442695
  %v615 = vpow.pop %v614
  %v616 = vadd.f32 %v615, 1.0
  %v617 = vrcp.pop %v616
  %v618 = vmul.f32 1.0, %v617
  %v619 = vadd.f32 %v528, %v568
  %v620 = vxor.u32 %v619, 2147483648
  %v621 = vmul.f32 %v620, 1.442695
  %v622 = vpow.pop %v621
  %v623 = vadd.f32 %v622, 1.0
  %v624 = vrcp.pop %v623
  %v625 = vmul.f32 1.0, %v624
  %v626 = vadd.f32 %v607, %v289
  %v627 = vmul.f32 %v618, %v626
  %v628 = vadd.f32 %v529, %v627
  %v629 = vtanh.pop %v628
  %v630 = vsub.f32 1.0, %v625
  %v631 = vmul.f32 %v630, %v629
  %v632 = vmul.f32 %v625, %v521
  %v633 = vadd.f32 %v631, %v632
  %s634 = scalar_lea.vmem %s3, 24
  %635 = vst [vmem:[%s634] sm:$0xff] %v633
  %s636 = scalar_lea.vmem %s0, 48
  %v637 = vld [vmem:[%s636] sm:$0xff]
  %v638 = vld [vmem:[%s636 + $0x8] sm:$0xf]
  %v639 = vunpack.c.l.bf16 %v637
  %v640 = vunpack.c.h.bf16 %v637
  %v641 = vunpack.c.l.bf16 %v638
  %v642 = vpack.c.bf16 %v633, %v633
  %643 = vmatprep.subr.bf16.mxu0 %v143
  %644 = vmatpush1.bf16.msra.mxu0 %v142
  %645 = vmatprep.subr.bf16.mxu0 %v146
  %646 = vmatpush1.bf16.msra.mxu0 %v145
  %647 = vmatprep.subr.bf16.mxu0 %v149
  %648 = vmatpush1.bf16.msra.mxu0 %v148
  %649 = vmatprep.subr.bf16.mxu0 %v152
  %650 = vmatpush1.bf16.msra.mxu0 %v151
  %651 = vmatprep.subr.bf16.mxu0 %v155
  %652 = vmatpush1.bf16.msra.mxu0 %v154
  %653 = vmatprep.subr.bf16.mxu0 %v158
  %654 = vmatpush1.bf16.msra.mxu0 %v157
  %655 = vmatprep.subr.bf16.mxu0 %v161
  %656 = vmatpush1.bf16.msra.mxu0 %v160
  %657 = vmatprep.subr.bf16.mxu0 %v164
  %658 = vmatpush1.bf16.msra.mxu0 %v163
  %659 = vmatprep.subr.bf16.mxu0 0
  %660 = vmatpush1.bf16.msra.mxu0 0
  %661 = vmatprep.subr.bf16.mxu0 0
  %662 = vmatpush1.bf16.msra.mxu0 0
  %663 = vmatprep.subr.bf16.mxu0 0
  %664 = vmatpush1.bf16.msra.mxu0 0
  %665 = vmatprep.subr.bf16.mxu0 0
  %666 = vmatpush1.bf16.msra.mxu0 0
  %667 = vmatprep.subr.bf16.mxu0 0
  %668 = vmatpush1.bf16.msra.mxu0 0
  %669 = vmatprep.subr.bf16.mxu0 0
  %670 = vmatpush1.bf16.msra.mxu0 0
  %671 = vmatprep.subr.bf16.mxu0 0
  %672 = vmatpush1.bf16.msra.mxu0 0
  %673 = vmatprep.subr.bf16.mxu0 0
  %674 = vmatpush1.bf16.msra.mxu0 0
  %675 = vmatprep.mubr.bf16.mxu0 0
  %676 = vmatmul.mubr.bf16.gmra.mrb[0].mxu0 %v642
  %v677 = vpop.f32.mrb[0].mxu0
  %v678 = vadd.f32 0.0, %v677
  %v679 = vpop.f32.mrb[0].mxu0
  %v680 = vadd.f32 0.0, %v679
  %v681 = vpop.f32.mrb[0].mxu0
  %v682 = vpop.f32.mrb[0].mxu0
  %683 = vdwg.mxu0
  %684 = vmatprep.subr.bf16.mxu0 0
  %685 = vmatpush1.bf16.msra.mxu0 %v144
  %686 = vmatprep.subr.bf16.mxu0 0
  %687 = vmatpush1.bf16.msra.mxu0 %v147
  %688 = vmatprep.subr.bf16.mxu0 0
  %689 = vmatpush1.bf16.msra.mxu0 %v150
  %690 = vmatprep.subr.bf16.mxu0 0
  %691 = vmatpush1.bf16.msra.mxu0 %v153
  %692 = vmatprep.subr.bf16.mxu0 0
  %693 = vmatpush1.bf16.msra.mxu0 %v156
  %694 = vmatprep.subr.bf16.mxu0 0
  %695 = vmatpush1.bf16.msra.mxu0 %v159
  %696 = vmatprep.subr.bf16.mxu0 0
  %697 = vmatpush1.bf16.msra.mxu0 %v162
  %698 = vmatprep.subr.bf16.mxu0 0
  %699 = vmatpush1.bf16.msra.mxu0 %v165
  %700 = vmatprep.subr.bf16.mxu0 0
  %701 = vmatpush1.bf16.msra.mxu0 0
  %702 = vmatprep.subr.bf16.mxu0 0
  %703 = vmatpush1.bf16.msra.mxu0 0
  %704 = vmatprep.subr.bf16.mxu0 0
  %705 = vmatpush1.bf16.msra.mxu0 0
  %706 = vmatprep.subr.bf16.mxu0 0
  %707 = vmatpush1.bf16.msra.mxu0 0
  %708 = vmatprep.subr.bf16.mxu0 0
  %709 = vmatpush1.bf16.msra.mxu0 0
  %710 = vmatprep.subr.bf16.mxu0 0
  %711 = vmatpush1.bf16.msra.mxu0 0
  %712 = vmatprep.subr.bf16.mxu0 0
  %713 = vmatpush1.bf16.msra.mxu0 0
  %714 = vmatprep.subr.bf16.mxu0 0
  %715 = vmatpush1.bf16.msra.mxu0 0
  %716 = vmatprep.mubr.bf16.mxu0 0
  %717 = vmatmul.mubr.bf16.gmra.mrb[0].mxu0 %v642
  %v718 = vpop.f32.mrb[0].mxu0
  %v719 = vadd.f32 0.0, %v718
  %v720 = vpop.f32.mrb[0].mxu0
  %v721 = vpop.f32.mrb[0].mxu0
  %v722 = vpop.f32.mrb[0].mxu0
  %723 = vdwg.mxu0
  %v724 = vadd.f32 %v639, %v678
  %v725 = vxor.u32 %v724, 2147483648
  %v726 = vmul.f32 %v725, 1.442695
  %v727 = vpow.pop %v726
  %v728 = vadd.f32 %v727, 1.0
  %v729 = vrcp.pop %v728
  %v730 = vmul.f32 1.0, %v729
  %v731 = vadd.f32 %v640, %v680
  %v732 = vxor.u32 %v731, 2147483648
  %v733 = vmul.f32 %v732, 1.442695
  %v734 = vpow.pop %v733
  %v735 = vadd.f32 %v734, 1.0
  %v736 = vrcp.pop %v735
  %v737 = vmul.f32 1.0, %v736
  %v738 = vadd.f32 %v719, %v289
  %v739 = vmul.f32 %v730, %v738
  %v740 = vadd.f32 %v641, %v739
  %v741 = vtanh.pop %v740
  %v742 = vsub.f32 1.0, %v737
  %v743 = vmul.f32 %v742, %v741
  %v744 = vmul.f32 %v737, %v633
  %v745 = vadd.f32 %v743, %v744
  %s746 = scalar_lea.vmem %s3, 32
  %747 = vst [vmem:[%s746] sm:$0xff] %v745
  %s748 = scalar_lea.vmem %s0, 60
  %v749 = vld [vmem:[%s748] sm:$0xff]
  %v750 = vld [vmem:[%s748 + $0x8] sm:$0xf]
  %v751 = vunpack.c.l.bf16 %v749
  %v752 = vunpack.c.h.bf16 %v749
  %v753 = vunpack.c.l.bf16 %v750
  %v754 = vpack.c.bf16 %v745, %v745
  %755 = vmatprep.subr.bf16.mxu0 %v143
  %756 = vmatpush1.bf16.msra.mxu0 %v142
  %757 = vmatprep.subr.bf16.mxu0 %v146
  %758 = vmatpush1.bf16.msra.mxu0 %v145
  %759 = vmatprep.subr.bf16.mxu0 %v149
  %760 = vmatpush1.bf16.msra.mxu0 %v148
  %761 = vmatprep.subr.bf16.mxu0 %v152
  %762 = vmatpush1.bf16.msra.mxu0 %v151
  %763 = vmatprep.subr.bf16.mxu0 %v155
  %764 = vmatpush1.bf16.msra.mxu0 %v154
  %765 = vmatprep.subr.bf16.mxu0 %v158
  %766 = vmatpush1.bf16.msra.mxu0 %v157
  %767 = vmatprep.subr.bf16.mxu0 %v161
  %768 = vmatpush1.bf16.msra.mxu0 %v160
  %769 = vmatprep.subr.bf16.mxu0 %v164
  %770 = vmatpush1.bf16.msra.mxu0 %v163
  %771 = vmatprep.subr.bf16.mxu0 0
  %772 = vmatpush1.bf16.msra.mxu0 0
  %773 = vmatprep.subr.bf16.mxu0 0
  %774 = vmatpush1.bf16.msra.mxu0 0
  %775 = vmatprep.subr.bf16.mxu0 0
  %776 = vmatpush1.bf16.msra.mxu0 0
  %777 = vmatprep.subr.bf16.mxu0 0
  %778 = vmatpush1.bf16.msra.mxu0 0
  %779 = vmatprep.subr.bf16.mxu0 0
  %780 = vmatpush1.bf16.msra.mxu0 0
  %781 = vmatprep.subr.bf16.mxu0 0
  %782 = vmatpush1.bf16.msra.mxu0 0
  %783 = vmatprep.subr.bf16.mxu0 0
  %784 = vmatpush1.bf16.msra.mxu0 0
  %785 = vmatprep.subr.bf16.mxu0 0
  %786 = vmatpush1.bf16.msra.mxu0 0
  %787 = vmatprep.mubr.bf16.mxu0 0
  %788 = vmatmul.mubr.bf16.gmra.mrb[0].mxu0 %v754
  %v789 = vpop.f32.mrb[0].mxu0
  %v790 = vadd.f32 0.0, %v789
  %v791 = vpop.f32.mrb[0].mxu0
  %v792 = vadd.f32 0.0, %v791
  %v793 = vpop.f32.mrb[0].mxu0
  %v794 = vpop.f32.mrb[0].mxu0
  %795 = vdwg.mxu0
  %796 = vmatprep.subr.bf16.mxu0 0
  %797 = vmatpush1.bf16.msra.mxu0 %v144
  %798 = vmatprep.subr.bf16.mxu0 0
  %799 = vmatpush1.bf16.msra.mxu0 %v147
  %800 = vmatprep.subr.bf16.mxu0 0
  %801 = vmatpush1.bf16.msra.mxu0 %v150
  %802 = vmatprep.subr.bf16.mxu0 0
  %803 = vmatpush1.bf16.msra.mxu0 %v153
  %804 = vmatprep.subr.bf16.mxu0 0
  %805 = vmatpush1.bf16.msra.mxu0 %v156
  %806 = vmatprep.subr.bf16.mxu0 0
  %807 = vmatpush1.bf16.msra.mxu0 %v159
  %808 = vmatprep.subr.bf16.mxu0 0
  %809 = vmatpush1.bf16.msra.mxu0 %v162
  %810 = vmatprep.subr.bf16.mxu0 0
  %811 = vmatpush1.bf16.msra.mxu0 %v165
  %812 = vmatprep.subr.bf16.mxu0 0
  %813 = vmatpush1.bf16.msra.mxu0 0
  %814 = vmatprep.subr.bf16.mxu0 0
  %815 = vmatpush1.bf16.msra.mxu0 0
  %816 = vmatprep.subr.bf16.mxu0 0
  %817 = vmatpush1.bf16.msra.mxu0 0
  %818 = vmatprep.subr.bf16.mxu0 0
  %819 = vmatpush1.bf16.msra.mxu0 0
  %820 = vmatprep.subr.bf16.mxu0 0
  %821 = vmatpush1.bf16.msra.mxu0 0
  %822 = vmatprep.subr.bf16.mxu0 0
  %823 = vmatpush1.bf16.msra.mxu0 0
  %824 = vmatprep.subr.bf16.mxu0 0
  %825 = vmatpush1.bf16.msra.mxu0 0
  %826 = vmatprep.subr.bf16.mxu0 0
  %827 = vmatpush1.bf16.msra.mxu0 0
  %828 = vmatprep.mubr.bf16.mxu0 0
  %829 = vmatmul.mubr.bf16.gmra.mrb[0].mxu0 %v754
  %v830 = vpop.f32.mrb[0].mxu0
  %v831 = vadd.f32 0.0, %v830
  %v832 = vpop.f32.mrb[0].mxu0
  %v833 = vpop.f32.mrb[0].mxu0
  %v834 = vpop.f32.mrb[0].mxu0
  %835 = vdwg.mxu0
  %v836 = vadd.f32 %v751, %v790
  %v837 = vxor.u32 %v836, 2147483648
  %v838 = vmul.f32 %v837, 1.442695
  %v839 = vpow.pop %v838
  %v840 = vadd.f32 %v839, 1.0
  %v841 = vrcp.pop %v840
  %v842 = vmul.f32 1.0, %v841
  %v843 = vadd.f32 %v752, %v792
  %v844 = vxor.u32 %v843, 2147483648
  %v845 = vmul.f32 %v844, 1.442695
  %v846 = vpow.pop %v845
  %v847 = vadd.f32 %v846, 1.0
  %v848 = vrcp.pop %v847
  %v849 = vmul.f32 1.0, %v848
  %v850 = vadd.f32 %v831, %v289
  %v851 = vmul.f32 %v842, %v850
  %v852 = vadd.f32 %v753, %v851
  %v853 = vtanh.pop %v852
  %v854 = vsub.f32 1.0, %v849
  %v855 = vmul.f32 %v854, %v853
  %v856 = vmul.f32 %v849, %v745
  %v857 = vadd.f32 %v855, %v856
  %s858 = scalar_lea.vmem %s3, 40
  %859 = vst [vmem:[%s858] sm:$0xff] %v857
  %s860 = scalar_lea.vmem %s0, 72
  %v861 = vld [vmem:[%s860] sm:$0xff]
  %v862 = vld [vmem:[%s860 + $0x8] sm:$0xf]
  %v863 = vunpack.c.l.bf16 %v861
  %v864 = vunpack.c.h.bf16 %v861
  %v865 = vunpack.c.l.bf16 %v862
  %v866 = vpack.c.bf16 %v857, %v857
  %867 = vmatprep.subr.bf16.mxu0 %v143
  %868 = vmatpush1.bf16.msra.mxu0 %v142
  %869 = vmatprep.subr.bf16.mxu0 %v146
  %870 = vmatpush1.bf16.msra.mxu0 %v145
  %871 = vmatprep.subr.bf16.mxu0 %v149
  %872 = vmatpush1.bf16.msra.mxu0 %v148
  %873 = vmatprep.subr.bf16.mxu0 %v152
  %874 = vmatpush1.bf16.msra.mxu0 %v151
  %875 = vmatprep.subr.bf16.mxu0 %v155
  %876 = vmatpush1.bf16.msra.mxu0 %v154
  %877 = vmatprep.subr.bf16.mxu0 %v158
  %878 = vmatpush1.bf16.msra.mxu0 %v157
  %879 = vmatprep.subr.bf16.mxu0 %v161
  %880 = vmatpush1.bf16.msra.mxu0 %v160
  %881 = vmatprep.subr.bf16.mxu0 %v164
  %882 = vmatpush1.bf16.msra.mxu0 %v163
  %883 = vmatprep.subr.bf16.mxu0 0
  %884 = vmatpush1.bf16.msra.mxu0 0
  %885 = vmatprep.subr.bf16.mxu0 0
  %886 = vmatpush1.bf16.msra.mxu0 0
  %887 = vmatprep.subr.bf16.mxu0 0
  %888 = vmatpush1.bf16.msra.mxu0 0
  %889 = vmatprep.subr.bf16.mxu0 0
  %890 = vmatpush1.bf16.msra.mxu0 0
  %891 = vmatprep.subr.bf16.mxu0 0
  %892 = vmatpush1.bf16.msra.mxu0 0
  %893 = vmatprep.subr.bf16.mxu0 0
  %894 = vmatpush1.bf16.msra.mxu0 0
  %895 = vmatprep.subr.bf16.mxu0 0
  %896 = vmatpush1.bf16.msra.mxu0 0
  %897 = vmatprep.subr.bf16.mxu0 0
  %898 = vmatpush1.bf16.msra.mxu0 0
  %899 = vmatprep.mubr.bf16.mxu0 0
  %900 = vmatmul.mubr.bf16.gmra.mrb[0].mxu0 %v866
  %v901 = vpop.f32.mrb[0].mxu0
  %v902 = vadd.f32 0.0, %v901
  %v903 = vpop.f32.mrb[0].mxu0
  %v904 = vadd.f32 0.0, %v903
  %v905 = vpop.f32.mrb[0].mxu0
  %v906 = vpop.f32.mrb[0].mxu0
  %907 = vdwg.mxu0
  %908 = vmatprep.subr.bf16.mxu0 0
  %909 = vmatpush1.bf16.msra.mxu0 %v144
  %910 = vmatprep.subr.bf16.mxu0 0
  %911 = vmatpush1.bf16.msra.mxu0 %v147
  %912 = vmatprep.subr.bf16.mxu0 0
  %913 = vmatpush1.bf16.msra.mxu0 %v150
  %914 = vmatprep.subr.bf16.mxu0 0
  %915 = vmatpush1.bf16.msra.mxu0 %v153
  %916 = vmatprep.subr.bf16.mxu0 0
  %917 = vmatpush1.bf16.msra.mxu0 %v156
  %918 = vmatprep.subr.bf16.mxu0 0
  %919 = vmatpush1.bf16.msra.mxu0 %v159
  %920 = vmatprep.subr.bf16.mxu0 0
  %921 = vmatpush1.bf16.msra.mxu0 %v162
  %922 = vmatprep.subr.bf16.mxu0 0
  %923 = vmatpush1.bf16.msra.mxu0 %v165
  %924 = vmatprep.subr.bf16.mxu0 0
  %925 = vmatpush1.bf16.msra.mxu0 0
  %926 = vmatprep.subr.bf16.mxu0 0
  %927 = vmatpush1.bf16.msra.mxu0 0
  %928 = vmatprep.subr.bf16.mxu0 0
  %929 = vmatpush1.bf16.msra.mxu0 0
  %930 = vmatprep.subr.bf16.mxu0 0
  %931 = vmatpush1.bf16.msra.mxu0 0
  %932 = vmatprep.subr.bf16.mxu0 0
  %933 = vmatpush1.bf16.msra.mxu0 0
  %934 = vmatprep.subr.bf16.mxu0 0
  %935 = vmatpush1.bf16.msra.mxu0 0
  %936 = vmatprep.subr.bf16.mxu0 0
  %937 = vmatpush1.bf16.msra.mxu0 0
  %938 = vmatprep.subr.bf16.mxu0 0
  %939 = vmatpush1.bf16.msra.mxu0 0
  %940 = vmatprep.mubr.bf16.mxu0 0
  %941 = vmatmul.mubr.bf16.gmra.mrb[0].mxu0 %v866
  %v942 = vpop.f32.mrb[0].mxu0
  %v943 = vadd.f32 0.0, %v942
  %v944 = vpop.f32.mrb[0].mxu0
  %v945 = vpop.f32.mrb[0].mxu0
  %v946 = vpop.f32.mrb[0].mxu0
  %947 = vdwg.mxu0
  %v948 = vadd.f32 %v863, %v902
  %v949 = vxor.u32 %v948, 2147483648
  %v950 = vmul.f32 %v949, 1.442695
  %v951 = vpow.pop %v950
  %v952 = vadd.f32 %v951, 1.0
  %v953 = vrcp.pop %v952
  %v954 = vmul.f32 1.0, %v953
  %v955 = vadd.f32 %v864, %v904
  %v956 = vxor.u32 %v955, 2147483648
  %v957 = vmul.f32 %v956, 1.442695
  %v958 = vpow.pop %v957
  %v959 = vadd.f32 %v958, 1.0
  %v960 = vrcp.pop %v959
  %v961 = vmul.f32 1.0, %v960
  %v962 = vadd.f32 %v943, %v289
  %v963 = vmul.f32 %v954, %v962
  %v964 = vadd.f32 %v865, %v963
  %v965 = vtanh.pop %v964
  %v966 = vsub.f32 1.0, %v961
  %v967 = vmul.f32 %v966, %v965
  %v968 = vmul.f32 %v961, %v857
  %v969 = vadd.f32 %v967, %v968
  %s970 = scalar_lea.vmem %s3, 48
  %971 = vst [vmem:[%s970] sm:$0xff] %v969
  %s972 = scalar_lea.vmem %s0, 84
  %v973 = vld [vmem:[%s972] sm:$0xff]
  %v974 = vld [vmem:[%s972 + $0x8] sm:$0xf]
  %v975 = vunpack.c.l.bf16 %v973
  %v976 = vunpack.c.h.bf16 %v973
  %v977 = vunpack.c.l.bf16 %v974
  %v978 = vpack.c.bf16 %v969, %v969
  %979 = vmatprep.subr.bf16.mxu0 %v143
  %980 = vmatpush1.bf16.msra.mxu0 %v142
  %981 = vmatprep.subr.bf16.mxu0 %v146
  %982 = vmatpush1.bf16.msra.mxu0 %v145
  %983 = vmatprep.subr.bf16.mxu0 %v149
  %984 = vmatpush1.bf16.msra.mxu0 %v148
  %985 = vmatprep.subr.bf16.mxu0 %v152
  %986 = vmatpush1.bf16.msra.mxu0 %v151
  %987 = vmatprep.subr.bf16.mxu0 %v155
  %988 = vmatpush1.bf16.msra.mxu0 %v154
  %989 = vmatprep.subr.bf16.mxu0 %v158
  %990 = vmatpush1.bf16.msra.mxu0 %v157
  %991 = vmatprep.subr.bf16.mxu0 %v161
  %992 = vmatpush1.bf16.msra.mxu0 %v160
  %993 = vmatprep.subr.bf16.mxu0 %v164
  %994 = vmatpush1.bf16.msra.mxu0 %v163
  %995 = vmatprep.subr.bf16.mxu0 0
  %996 = vmatpush1.bf16.msra.mxu0 0
  %997 = vmatprep.subr.bf16.mxu0 0
  %998 = vmatpush1.bf16.msra.mxu0 0
  %999 = vmatprep.subr.bf16.mxu0 0
  %1000 = vmatpush1.bf16.msra.mxu0 0
  %1001 = vmatprep.subr.bf16.mxu0 0
  %1002 = vmatpush1.bf16.msra.mxu0 0
  %1003 = vmatprep.subr.bf16.mxu0 0
  %1004 = vmatpush1.bf16.msra.mxu0 0
  %1005 = vmatprep.subr.bf16.mxu0 0
  %1006 = vmatpush1.bf16.msra.mxu0 0
  %1007 = vmatprep.subr.bf16.mxu0 0
  %1008 = vmatpush1.bf16.msra.mxu0 0
  %1009 = vmatprep.subr.bf16.mxu0 0
  %1010 = vmatpush1.bf16.msra.mxu0 0
  %1011 = vmatprep.mubr.bf16.mxu0 0
  %1012 = vmatmul.mubr.bf16.gmra.mrb[0].mxu0 %v978
  %v1013 = vpop.f32.mrb[0].mxu0
  %v1014 = vadd.f32 0.0, %v1013
  %v1015 = vpop.f32.mrb[0].mxu0
  %v1016 = vadd.f32 0.0, %v1015
  %v1017 = vpop.f32.mrb[0].mxu0
  %v1018 = vpop.f32.mrb[0].mxu0
  %1019 = vdwg.mxu0
  %1020 = vmatprep.subr.bf16.mxu0 0
  %1021 = vmatpush1.bf16.msra.mxu0 %v144
  %1022 = vmatprep.subr.bf16.mxu0 0
  %1023 = vmatpush1.bf16.msra.mxu0 %v147
  %1024 = vmatprep.subr.bf16.mxu0 0
  %1025 = vmatpush1.bf16.msra.mxu0 %v150
  %1026 = vmatprep.subr.bf16.mxu0 0
  %1027 = vmatpush1.bf16.msra.mxu0 %v153
  %1028 = vmatprep.subr.bf16.mxu0 0
  %1029 = vmatpush1.bf16.msra.mxu0 %v156
  %1030 = vmatprep.subr.bf16.mxu0 0
  %1031 = vmatpush1.bf16.msra.mxu0 %v159
  %1032 = vmatprep.subr.bf16.mxu0 0
  %1033 = vmatpush1.bf16.msra.mxu0 %v162
  %1034 = vmatprep.subr.bf16.mxu0 0
  %1035 = vmatpush1.bf16.msra.mxu0 %v165
  %1036 = vmatprep.subr.bf16.mxu0 0
  %1037 = vmatpush1.bf16.msra.mxu0 0
  %1038 = vmatprep.subr.bf16.mxu0 0
  %1039 = vmatpush1.bf16.msra.mxu0 0
  %1040 = vmatprep.subr.bf16.mxu0 0
  %1041 = vmatpush1.bf16.msra.mxu0 0
  %1042 = vmatprep.subr.bf16.mxu0 0
  %1043 = vmatpush1.bf16.msra.mxu0 0
  %1044 = vmatprep.subr.bf16.mxu0 0
  %1045 = vmatpush1.bf16.msra.mxu0 0
  %1046 = vmatprep.subr.bf16.mxu0 0
  %1047 = vmatpush1.bf16.msra.mxu0 0
  %1048 = vmatprep.subr.bf16.mxu0 0
  %1049 = vmatpush1.bf16.msra.mxu0 0
  %1050 = vmatprep.subr.bf16.mxu0 0
  %1051 = vmatpush1.bf16.msra.mxu0 0
  %1052 = vmatprep.mubr.bf16.mxu0 0
  %1053 = vmatmul.mubr.bf16.gmra.mrb[0].mxu0 %v978
  %v1054 = vpop.f32.mrb[0].mxu0
  %v1055 = vadd.f32 0.0, %v1054
  %v1056 = vpop.f32.mrb[0].mxu0
  %v1057 = vpop.f32.mrb[0].mxu0
  %v1058 = vpop.f32.mrb[0].mxu0
  %1059 = vdwg.mxu0
  %v1060 = vadd.f32 %v975, %v1014
  %v1061 = vxor.u32 %v1060, 2147483648
  %v1062 = vmul.f32 %v1061, 1.442695
  %v1063 = vpow.pop %v1062
  %v1064 = vadd.f32 %v1063, 1.0
  %v1065 = vrcp.pop %v1064
  %v1066 = vmul.f32 1.0, %v1065
  %v1067 = vadd.f32 %v976, %v1016
  %v1068 = vxor.u32 %v1067, 2147483648
  %v1069 = vmul.f32 %v1068, 1.442695
  %v1070 = vpow.pop %v1069
  %v1071 = vadd.f32 %v1070, 1.0
  %v1072 = vrcp.pop %v1071
  %v1073 = vmul.f32 1.0, %v1072
  %v1074 = vadd.f32 %v1055, %v289
  %v1075 = vmul.f32 %v1066, %v1074
  %v1076 = vadd.f32 %v977, %v1075
  %v1077 = vtanh.pop %v1076
  %v1078 = vsub.f32 1.0, %v1073
  %v1079 = vmul.f32 %v1078, %v1077
  %v1080 = vmul.f32 %v1073, %v969
  %v1081 = vadd.f32 %v1079, %v1080
  %s1082 = scalar_lea.vmem %s3, 56
  %1083 = vst [vmem:[%s1082] sm:$0xff] %v1081
  %1084 = vst [vmem:[#allocation2] sm:$0xff] %v1081
  // Predicated region
  $region18: #{encoder_forward.3} parent=0 // pred_check
    %p1085 = pneg %p17
  $region19: #{encoder_forward.3} parent=0 // pred_check_branch
    %1087 = sbr.rel (%p1085) target = $region21
  $region20: #{encoder_forward.3} parent=0 // pred_region
    %1088 = vst [vmem:[%s4] sm:$0xff] %v1081
  $region21: #{encoder_forward.3} parent=0 // pred_fallthru
    _
  // Predicated region
  $region22: #{encoder_forward.3} parent=0 // pred_check
    _
  $region23: #{encoder_forward.3} parent=0 // pred_check_branch
    %1090 = sbr.rel (0) target = $region25
  $region24: #{encoder_forward.3} parent=0 // pred_region
    _
  $region25: #{encoder_forward.3} parent=0 // pred_fallthru
    _
  // Predicated region
  $region26: #{encoder_forward.3} parent=0 // pred_check
    _
  $region27: #{encoder_forward.3} parent=0 // pred_check_branch
    %1092 = sbr.rel (0) target = $region29
  $region28: #{encoder_forward.3} parent=0 // pred_region
    _
  $region29: #{encoder_forward.3} parent=0 // pred_fallthru
    _
  // Predicated region
  $region30: #{encoder_forward.3} parent=0 // pred_check
    _
  $region31: #{encoder_forward.3} parent=0 // pred_check_branch
    %1094 = sbr.rel (0) target = $region33
  $region32: #{encoder_forward.3} parent=0 // pred_region
    _
  $region33: #{encoder_forward.3} parent=0 // pred_fallthru
    _
  // Predicated region
  $region34: #{encoder_forward.3} parent=0 // pred_check
    _
  $region35: #{encoder_forward.3} parent=0 // pred_check_branch
    %1096 = sbr.rel (0) target = $region37
  $region36: #{encoder_forward.3} parent=0 // pred_region
    _
  $region37: #{encoder_forward.3} parent=0 // pred_fallthru
    _

</llo_original>
